<compile_context>
chip_gen: v7x
topology: tpu7x:2x2x1
jax: 0.10.0
libtpu: 0.0.40
codegen_flags: <defaults>
</compile_context>

<pallas_src>
import numpy as np
import jax
import jax.numpy as jnp
from jax import lax
from jax.experimental import pallas as pl
from jax.experimental.pallas import tpu as pltpu

BN_EPS = 1e-5


# ------------------------------- fused kernel ------------------------------ #

def encoder_kernel(x_ref,
                   m1_ref, a1_ref, e1_ref, g1_ref, b1_ref,
                   m2_ref, a2_ref, e2_ref, g2_ref, b2_ref,
                   m3_ref, a3_ref, e3_ref, g3_ref, b3_ref,
                   wh_ref, bh_ref,
                   out_ref):
    """Whole Encoder forward in a single kernel invocation.

    x_ref  : (N, C0*S0)            input, NCHW flattened to channel-major rows
    m*_ref : (Cin*S_in, Cout*S_out) folded conv3x3(stride2,pad1) matrix
    a*_ref : (Cout*S_out, Cout)     per-channel spatial-average selector (1/S_out)
    e*_ref : (Cout, Cout*S_out)     channel -> flat-layout broadcast selector (0/1)
    g*_ref : (1, Cout)              BatchNorm gamma
    b*_ref : (1, Cout*S_out)        BatchNorm beta pre-broadcast to flat layout
    wh_ref : (C3*S3, 2L)            pool + flatten + merged mu/sigma head weights
    bh_ref : (1, 2L)                concatenated head bias
    out_ref: (N, 2L)                [mu | sigma]
    """
    n = x_ref.shape[0]
    inv_n = 1.0 / float(n)

    def conv_bn_relu(x, m_ref, a_ref, e_ref, g_ref, b_ref):
        # Conv3x3 stride-2 pad-1: ONE dense matmul (gather + channel mix folded).
        y = jnp.dot(x, m_ref[...], preferred_element_type=jnp.float32)       # (N, CS)
        # BatchNorm (training-mode batch stats, biased variance), all in f32.
        mean_c = jnp.sum(jnp.dot(y, a_ref[...],
                                 preferred_element_type=jnp.float32),
                         axis=0, keepdims=True) * inv_n                       # (1, C)
        d = y - jnp.dot(mean_c, e_ref[...], preferred_element_type=jnp.float32)
        var_c = jnp.sum(jnp.dot(d * d, a_ref[...],
                                preferred_element_type=jnp.float32),
                        axis=0, keepdims=True) * inv_n                        # (1, C)
        scale_c = g_ref[...] * lax.rsqrt(var_c + BN_EPS)                      # (1, C)
        scale_bc = jnp.dot(scale_c, e_ref[...],
                           preferred_element_type=jnp.float32)                # (1, CS)
        return jnp.maximum(d * scale_bc + b_ref[...], 0.0)                    # (N, CS)

    h = conv_bn_relu(x_ref[...], m1_ref, a1_ref, e1_ref, g1_ref, b1_ref)
    h = conv_bn_relu(h, m2_ref, a2_ref, e2_ref, g2_ref, b2_ref)
    h = conv_bn_relu(h, m3_ref, a3_ref, e3_ref, g3_ref, b3_ref)               # (N, C3*S3)

    # AdaptiveAvgPool2d(4) + Flatten + [mu | sigma] heads, folded into wh/bh.
    out_ref[...] = (jnp.dot(h, wh_ref[...], preferred_element_type=jnp.float32)
                    + bh_ref[...])


# ------------------------- wrapper + preprocessing ------------------------- #

def _vmem():
    return pl.BlockSpec(memory_space=pltpu.MemorySpace.VMEM)


def _cost_estimate(n, x2, args, out_elems):
    flops = 0
    bytes_accessed = int(x2.size) * 4 + int(out_elems) * 4
    for a in args:
        bytes_accessed += int(a.size) * int(a.dtype.itemsize)
        if a.ndim == 2 and a.shape[0] > 1 and a.shape[1] > 1:   # matmul weights
            flops += 2 * n * int(a.shape[0]) * int(a.shape[1])
    return pl.CostEstimate(flops=int(flops), transcendentals=64,
                           bytes_accessed=int(bytes_accessed))


def encoder_forward(x_nchw, prep):
    n, c, h, w = x_nchw.shape
    x2 = x_nchw.reshape(n, c * h * w).astype(jnp.float32)
    latent = prep["latent_dim"]
    num_in = 1 + len(prep["args"])
    out = pl.pallas_call(
        encoder_kernel,
        out_shape=jax.ShapeDtypeStruct((n, 2 * latent), jnp.float32),
        in_specs=[_vmem() for _ in range(num_in)],
        out_specs=_vmem(),
        compiler_params=pltpu.CompilerParams(vmem_limit_bytes=16 * 1024 * 1024),
        cost_estimate=_cost_estimate(n, x2, prep["args"], n * 2 * latent),
    )(x2, *prep["args"])
    return out[:, :latent], out[:, latent:]


def _build_gather_mats(h_in, w_in, k=3, stride=2, pad=1):
    """One 0/1 gather matrix per conv tap: G[t, s_out, s_in]=1 iff input pixel
    s_in feeds output pixel s_out for tap t (zero padding = all-zero columns)."""
    h_out = (h_in + 2 * pad - k) // stride + 1
    w_out = (w_in + 2 * pad - k) // stride + 1
    g = np.zeros((k * k, h_out * w_out, h_in * w_in), np.float32)
    for kh in range(k):
        for kw in range(k):
            t = kh * k + kw
            for ho in range(h_out):
                hi = ho * stride + kh - pad
                if hi < 0 or hi >= h_in:
                    continue
                for wo in range(w_out):
                    wi = wo * stride + kw - pad
                    if wi < 0 or wi >= w_in:
                        continue
                    g[t, ho * w_out + wo, hi * w_in + wi] = 1.0
    return g, (h_out, w_out)


def _build_pool_matrix(h, w, out=4):
    p = np.zeros((h * w, out * out), np.float32)
    for oh in range(out):
        sh, eh = (oh * h) // out, -((-(oh + 1) * h) // out)
        for ow in range(out):
            sw, ew = (ow * w) // out, -((-(ow + 1) * w) // out)
            area = float((eh - sh) * (ew - sw))
            for ih in range(sh, eh):
                for iw in range(sw, ew):
                    p[ih * w + iw, oh * out + ow] = 1.0 / area
    return p


def preprocess_params(params, h_in, w_in, pool_out=4):
    """One-time parameter preprocessing (hoisted out of the forward path)."""
    args = []
    h, w = h_in, w_in
    for (wconv, gamma, beta) in params["blocks"]:
        wconv = np.asarray(wconv, np.float32)
        gamma = np.asarray(gamma, np.float32)
        beta = np.asarray(beta, np.float32)
        cout, cin = wconv.shape[0], wconv.shape[1]
        g, (h2, w2) = _build_gather_mats(h, w, k=3, stride=2, pad=1)
        s_in, s_out = h * w, h2 * w2
        # Fold tap weights and spatial gather into one dense matrix (exact).
        w_taps = np.transpose(wconv, (2, 3, 0, 1)).reshape(9, cout, cin)
        m = np.einsum('tkc,tos->csko', w_taps, g).reshape(cin * s_in, cout * s_out)
        # BN selector matrices: per-channel spatial average / channel broadcast.
        a_sel = np.zeros((cout * s_out, cout), np.float32)
        e_sel = np.zeros((cout, cout * s_out), np.float32)
        for ci in range(cout):
            a_sel[ci * s_out:(ci + 1) * s_out, ci] = 1.0 / s_out
            e_sel[ci, ci * s_out:(ci + 1) * s_out] = 1.0
        beta_bc = np.repeat(beta, s_out).reshape(1, cout * s_out)
        args += [jnp.asarray(m), jnp.asarray(a_sel), jnp.asarray(e_sel),
                 jnp.asarray(gamma.reshape(1, cout)), jnp.asarray(beta_bc)]
        h, w = h2, w2

    # Fold AdaptiveAvgPool2d + Flatten into the merged (mu|sigma) head weights.
    c3 = params["blocks"][-1][0].shape[0]
    latent = params["wmu"].shape[0]
    s3 = h * w
    p = _build_pool_matrix(h, w, pool_out)                          # (S3, 16)
    wmu = np.asarray(params["wmu"], np.float32).reshape(latent, c3, pool_out * pool_out)
    wsg = np.asarray(params["wsig"], np.float32).reshape(latent, c3, pool_out * pool_out)
    rmu = np.einsum('jcp,sp->csj', wmu, p)                          # (C3, S3, L)
    rsg = np.einsum('jcp,sp->csj', wsg, p)
    wh = np.concatenate([rmu, rsg], axis=2).reshape(c3 * s3, 2 * latent)
    bh = np.concatenate([np.asarray(params["bmu"]), np.asarray(params["bsig"])]
                        ).astype(np.float32).reshape(1, 2 * latent)
    args += [jnp.asarray(wh), jnp.asarray(bh)]
    return {"args": tuple(args), "latent_dim": latent}


# ------------------------- pure-JAX reference check ------------------------ #

def reference_forward(x_nchw, params):
    x = x_nchw.astype(jnp.float32)
    for (w, g, b) in params["blocks"]:
        x = jax.lax.conv_general_dilated(
            x, w, window_strides=(2, 2), padding=((1, 1), (1, 1)),
            dimension_numbers=("NCHW", "OIHW", "NCHW"))
        mean = jnp.mean(x, axis=(0, 2, 3), keepdims=True)
        var = jnp.mean((x - mean) ** 2, axis=(0, 2, 3), keepdims=True)
        x = (x - mean) * jax.lax.rsqrt(var + BN_EPS)
        x = jnp.maximum(x * g.reshape(1, -1, 1, 1) + b.reshape(1, -1, 1, 1), 0.0)
    N, C, H, W = x.shape
    out = 4
    rows = []
    for oh in range(out):
        sh, eh = (oh * H) // out, -((-(oh + 1) * H) // out)
        cols = []
        for ow in range(out):
            sw, ew = (ow * W) // out, -((-(ow + 1) * W) // out)
            cols.append(jnp.mean(x[:, :, sh:eh, sw:ew], axis=(2, 3)))
        rows.append(jnp.stack(cols, axis=-1))
    pooled = jnp.stack(rows, axis=-2)                               # (N, C, 4, 4)
    feat = pooled.reshape(N, C * 16)
    mu = feat @ params["wmu"].T + params["bmu"]
    sigma = feat @ params["wsig"].T + params["bsig"]
    return mu, sigma


# ---------------------------------- main ----------------------------------- #

if __name__ == "__main__":
    batch, channel_dim, spatial = 2, 4, 16
    hidden_dim, latent_dim = 32, 8

    key = jax.random.PRNGKey(0)
    ks = jax.random.split(key, 14)

    c1, c2, c3 = hidden_dim // 4, hidden_dim // 2, hidden_dim
    params = {
        "blocks": [
            (0.1 * jax.random.normal(ks[0], (c1, channel_dim, 3, 3), jnp.float32),
             1.0 + 0.1 * jax.random.normal(ks[1], (c1,), jnp.float32),
             0.1 * jax.random.normal(ks[2], (c1,), jnp.float32)),
            (0.1 * jax.random.normal(ks[3], (c2, c1, 3, 3), jnp.float32),
             1.0 + 0.1 * jax.random.normal(ks[4], (c2,), jnp.float32),
             0.1 * jax.random.normal(ks[5], (c2,), jnp.float32)),
            (0.1 * jax.random.normal(ks[6], (c3, c2, 3, 3), jnp.float32),
             1.0 + 0.1 * jax.random.normal(ks[7], (c3,), jnp.float32),
             0.1 * jax.random.normal(ks[8], (c3,), jnp.float32)),
        ],
        "wmu": 0.05 * jax.random.normal(ks[9], (latent_dim, hidden_dim * 16), jnp.float32),
        "bmu": 0.05 * jax.random.normal(ks[10], (latent_dim,), jnp.float32),
        "wsig": 0.05 * jax.random.normal(ks[11], (latent_dim, hidden_dim * 16), jnp.float32),
        "bsig": 0.05 * jax.random.normal(ks[12], (latent_dim,), jnp.float32),
    }

    x = jax.random.normal(ks[13], (batch, channel_dim, spatial, spatial), jnp.float32)

    prep = preprocess_params(params, spatial, spatial)     # one-time preprocessing
    mu, sigma = encoder_forward(x, prep)
    jax.block_until_ready((mu, sigma))

    mu_ref, sigma_ref = reference_forward(x, params)
    assert mu.shape == (batch, latent_dim) and sigma.shape == (batch, latent_dim)
    assert np.allclose(np.asarray(mu), np.asarray(mu_ref), atol=1e-3, rtol=1e-3), \
        float(np.abs(np.asarray(mu) - np.asarray(mu_ref)).max())
    assert np.allclose(np.asarray(sigma), np.asarray(sigma_ref), atol=1e-3, rtol=1e-3), \
        float(np.abs(np.asarray(sigma) - np.asarray(sigma_ref)).max())

    print("KERNEL_OK")
</pallas_src>

<mosaic_0001>
module attributes {stable_mosaic.version = 11 : i64} {
  func.func @encoder_kernel(%arg0: memref<2x1024xf32, #tpu.memory_space<vmem>>, %arg1: memref<1024x512xf32, #tpu.memory_space<vmem>>, %arg2: memref<512x8xf32, #tpu.memory_space<vmem>>, %arg3: memref<8x512xf32, #tpu.memory_space<vmem>>, %arg4: memref<1x8xf32, #tpu.memory_space<vmem>>, %arg5: memref<1x512xf32, #tpu.memory_space<vmem>>, %arg6: memref<512x256xf32, #tpu.memory_space<vmem>>, %arg7: memref<256x16xf32, #tpu.memory_space<vmem>>, %arg8: memref<16x256xf32, #tpu.memory_space<vmem>>, %arg9: memref<1x16xf32, #tpu.memory_space<vmem>>, %arg10: memref<1x256xf32, #tpu.memory_space<vmem>>, %arg11: memref<256x128xf32, #tpu.memory_space<vmem>>, %arg12: memref<128x32xf32, #tpu.memory_space<vmem>>, %arg13: memref<32x128xf32, #tpu.memory_space<vmem>>, %arg14: memref<1x32xf32, #tpu.memory_space<vmem>>, %arg15: memref<1x128xf32, #tpu.memory_space<vmem>>, %arg16: memref<128x16xf32, #tpu.memory_space<vmem>>, %arg17: memref<1x16xf32, #tpu.memory_space<vmem>>, %arg18: memref<2x16xf32, #tpu.memory_space<vmem>>) attributes {dimension_semantics = [], scalar_prefetch = 0 : i64, scratch_operands = 0 : i64, tpu.core_type = #tpu.core_type<tc>} {
    %c0 = arith.constant 0 : index
    %c0_0 = arith.constant 0 : index
    %0 = vector.load %arg0[%c0, %c0_0] : memref<2x1024xf32, #tpu.memory_space<vmem>>, vector<2x1024xf32>
    %c0_1 = arith.constant 0 : index
    %c0_2 = arith.constant 0 : index
    %1 = vector.load %arg1[%c0_1, %c0_2] : memref<1024x512xf32, #tpu.memory_space<vmem>>, vector<1024x512xf32>
    %cst = arith.constant dense<0.000000e+00> : vector<2x512xf32>
    %2 = tpu.matmul %0, %1, %cst {dimension_numbers = #tpu.dot_dimension_numbers<[1], [0], [0], [1], [0, 0, 1, 1], [], []>} : vector<2x1024xf32>, vector<1024x512xf32>, vector<2x512xf32> -> vector<2x512xf32>
    %c0_3 = arith.constant 0 : index
    %c0_4 = arith.constant 0 : index
    %3 = vector.load %arg2[%c0_3, %c0_4] : memref<512x8xf32, #tpu.memory_space<vmem>>, vector<512x8xf32>
    %cst_5 = arith.constant dense<0.000000e+00> : vector<2x8xf32>
    %4 = tpu.matmul %2, %3, %cst_5 {dimension_numbers = #tpu.dot_dimension_numbers<[1], [0], [0], [1], [0, 0, 1, 1], [], []>} : vector<2x512xf32>, vector<512x8xf32>, vector<2x8xf32> -> vector<2x8xf32>
    %cst_6 = arith.constant dense<0.000000e+00> : vector<8xf32>
    %5 = vector.multi_reduction <add>, %4, %cst_6 [0] : vector<2x8xf32> to vector<8xf32>
    %6 = vector.shape_cast %5 : vector<8xf32> to vector<1x8xf32>
    %cst_7 = arith.constant 5.000000e-01 : f32
    %7 = vector.broadcast %cst_7 : f32 to vector<1x8xf32>
    %8 = arith.mulf %6, %7 : vector<1x8xf32>
    %c0_8 = arith.constant 0 : index
    %c0_9 = arith.constant 0 : index
    %9 = vector.load %arg3[%c0_8, %c0_9] : memref<8x512xf32, #tpu.memory_space<vmem>>, vector<8x512xf32>
    %cst_10 = arith.constant dense<0.000000e+00> : vector<1x512xf32>
    %10 = tpu.matmul %8, %9, %cst_10 {dimension_numbers = #tpu.dot_dimension_numbers<[1], [0], [0], [1], [0, 0, 1, 1], [], []>} : vector<1x8xf32>, vector<8x512xf32>, vector<1x512xf32> -> vector<1x512xf32>
    %11 = vector.broadcast %10 : vector<1x512xf32> to vector<2x512xf32>
    %12 = arith.subf %2, %11 : vector<2x512xf32>
    %13 = arith.mulf %12, %12 : vector<2x512xf32>
    %c0_11 = arith.constant 0 : index
    %c0_12 = arith.constant 0 : index
    %14 = vector.load %arg2[%c0_11, %c0_12] : memref<512x8xf32, #tpu.memory_space<vmem>>, vector<512x8xf32>
    %cst_13 = arith.constant dense<0.000000e+00> : vector<2x8xf32>
    %15 = tpu.matmul %13, %14, %cst_13 {dimension_numbers = #tpu.dot_dimension_numbers<[1], [0], [0], [1], [0, 0, 1, 1], [], []>} : vector<2x512xf32>, vector<512x8xf32>, vector<2x8xf32> -> vector<2x8xf32>
    %cst_14 = arith.constant dense<0.000000e+00> : vector<8xf32>
    %16 = vector.multi_reduction <add>, %15, %cst_14 [0] : vector<2x8xf32> to vector<8xf32>
    %17 = vector.shape_cast %16 : vector<8xf32> to vector<1x8xf32>
    %cst_15 = arith.constant 5.000000e-01 : f32
    %18 = vector.broadcast %cst_15 : f32 to vector<1x8xf32>
    %19 = arith.mulf %17, %18 : vector<1x8xf32>
    %c0_16 = arith.constant 0 : index
    %c0_17 = arith.constant 0 : index
    %20 = vector.load %arg4[%c0_16, %c0_17] : memref<1x8xf32, #tpu.memory_space<vmem>>, vector<1x8xf32>
    %cst_18 = arith.constant 9.99999974E-6 : f32
    %21 = vector.broadcast %cst_18 : f32 to vector<1x8xf32>
    %22 = arith.addf %19, %21 : vector<1x8xf32>
    %23 = math.rsqrt %22 : vector<1x8xf32>
    %24 = arith.mulf %20, %23 : vector<1x8xf32>
    %c0_19 = arith.constant 0 : index
    %c0_20 = arith.constant 0 : index
    %25 = vector.load %arg3[%c0_19, %c0_20] : memref<8x512xf32, #tpu.memory_space<vmem>>, vector<8x512xf32>
    %cst_21 = arith.constant dense<0.000000e+00> : vector<1x512xf32>
    %26 = tpu.matmul %24, %25, %cst_21 {dimension_numbers = #tpu.dot_dimension_numbers<[1], [0], [0], [1], [0, 0, 1, 1], [], []>} : vector<1x8xf32>, vector<8x512xf32>, vector<1x512xf32> -> vector<1x512xf32>
    %27 = vector.broadcast %26 : vector<1x512xf32> to vector<2x512xf32>
    %28 = arith.mulf %12, %27 : vector<2x512xf32>
    %c0_22 = arith.constant 0 : index
    %c0_23 = arith.constant 0 : index
    %29 = vector.load %arg5[%c0_22, %c0_23] : memref<1x512xf32, #tpu.memory_space<vmem>>, vector<1x512xf32>
    %30 = vector.broadcast %29 : vector<1x512xf32> to vector<2x512xf32>
    %31 = arith.addf %28, %30 : vector<2x512xf32>
    %cst_24 = arith.constant 0.000000e+00 : f32
    %32 = vector.broadcast %cst_24 : f32 to vector<2x512xf32>
    %33 = arith.maximumf %31, %32 : vector<2x512xf32>
    %c0_25 = arith.constant 0 : index
    %c0_26 = arith.constant 0 : index
    %34 = vector.load %arg6[%c0_25, %c0_26] : memref<512x256xf32, #tpu.memory_space<vmem>>, vector<512x256xf32>
    %cst_27 = arith.constant dense<0.000000e+00> : vector<2x256xf32>
    %35 = tpu.matmul %33, %34, %cst_27 {dimension_numbers = #tpu.dot_dimension_numbers<[1], [0], [0], [1], [0, 0, 1, 1], [], []>} : vector<2x512xf32>, vector<512x256xf32>, vector<2x256xf32> -> vector<2x256xf32>
    %c0_28 = arith.constant 0 : index
    %c0_29 = arith.constant 0 : index
    %36 = vector.load %arg7[%c0_28, %c0_29] : memref<256x16xf32, #tpu.memory_space<vmem>>, vector<256x16xf32>
    %cst_30 = arith.constant dense<0.000000e+00> : vector<2x16xf32>
    %37 = tpu.matmul %35, %36, %cst_30 {dimension_numbers = #tpu.dot_dimension_numbers<[1], [0], [0], [1], [0, 0, 1, 1], [], []>} : vector<2x256xf32>, vector<256x16xf32>, vector<2x16xf32> -> vector<2x16xf32>
    %cst_31 = arith.constant dense<0.000000e+00> : vector<16xf32>
    %38 = vector.multi_reduction <add>, %37, %cst_31 [0] : vector<2x16xf32> to vector<16xf32>
    %39 = vector.shape_cast %38 : vector<16xf32> to vector<1x16xf32>
    %cst_32 = arith.constant 5.000000e-01 : f32
    %40 = vector.broadcast %cst_32 : f32 to vector<1x16xf32>
    %41 = arith.mulf %39, %40 : vector<1x16xf32>
    %c0_33 = arith.constant 0 : index
    %c0_34 = arith.constant 0 : index
    %42 = vector.load %arg8[%c0_33, %c0_34] : memref<16x256xf32, #tpu.memory_space<vmem>>, vector<16x256xf32>
    %cst_35 = arith.constant dense<0.000000e+00> : vector<1x256xf32>
    %43 = tpu.matmul %41, %42, %cst_35 {dimension_numbers = #tpu.dot_dimension_numbers<[1], [0], [0], [1], [0, 0, 1, 1], [], []>} : vector<1x16xf32>, vector<16x256xf32>, vector<1x256xf32> -> vector<1x256xf32>
    %44 = vector.broadcast %43 : vector<1x256xf32> to vector<2x256xf32>
    %45 = arith.subf %35, %44 : vector<2x256xf32>
    %46 = arith.mulf %45, %45 : vector<2x256xf32>
    %c0_36 = arith.constant 0 : index
    %c0_37 = arith.constant 0 : index
    %47 = vector.load %arg7[%c0_36, %c0_37] : memref<256x16xf32, #tpu.memory_space<vmem>>, vector<256x16xf32>
    %cst_38 = arith.constant dense<0.000000e+00> : vector<2x16xf32>
    %48 = tpu.matmul %46, %47, %cst_38 {dimension_numbers = #tpu.dot_dimension_numbers<[1], [0], [0], [1], [0, 0, 1, 1], [], []>} : vector<2x256xf32>, vector<256x16xf32>, vector<2x16xf32> -> vector<2x16xf32>
    %cst_39 = arith.constant dense<0.000000e+00> : vector<16xf32>
    %49 = vector.multi_reduction <add>, %48, %cst_39 [0] : vector<2x16xf32> to vector<16xf32>
    %50 = vector.shape_cast %49 : vector<16xf32> to vector<1x16xf32>
    %cst_40 = arith.constant 5.000000e-01 : f32
    %51 = vector.broadcast %cst_40 : f32 to vector<1x16xf32>
    %52 = arith.mulf %50, %51 : vector<1x16xf32>
    %c0_41 = arith.constant 0 : index
    %c0_42 = arith.constant 0 : index
    %53 = vector.load %arg9[%c0_41, %c0_42] : memref<1x16xf32, #tpu.memory_space<vmem>>, vector<1x16xf32>
    %cst_43 = arith.constant 9.99999974E-6 : f32
    %54 = vector.broadcast %cst_43 : f32 to vector<1x16xf32>
    %55 = arith.addf %52, %54 : vector<1x16xf32>
    %56 = math.rsqrt %55 : vector<1x16xf32>
    %57 = arith.mulf %53, %56 : vector<1x16xf32>
    %c0_44 = arith.constant 0 : index
    %c0_45 = arith.constant 0 : index
    %58 = vector.load %arg8[%c0_44, %c0_45] : memref<16x256xf32, #tpu.memory_space<vmem>>, vector<16x256xf32>
    %cst_46 = arith.constant dense<0.000000e+00> : vector<1x256xf32>
    %59 = tpu.matmul %57, %58, %cst_46 {dimension_numbers = #tpu.dot_dimension_numbers<[1], [0], [0], [1], [0, 0, 1, 1], [], []>} : vector<1x16xf32>, vector<16x256xf32>, vector<1x256xf32> -> vector<1x256xf32>
    %60 = vector.broadcast %59 : vector<1x256xf32> to vector<2x256xf32>
    %61 = arith.mulf %45, %60 : vector<2x256xf32>
    %c0_47 = arith.constant 0 : index
    %c0_48 = arith.constant 0 : index
    %62 = vector.load %arg10[%c0_47, %c0_48] : memref<1x256xf32, #tpu.memory_space<vmem>>, vector<1x256xf32>
    %63 = vector.broadcast %62 : vector<1x256xf32> to vector<2x256xf32>
    %64 = arith.addf %61, %63 : vector<2x256xf32>
    %cst_49 = arith.constant 0.000000e+00 : f32
    %65 = vector.broadcast %cst_49 : f32 to vector<2x256xf32>
    %66 = arith.maximumf %64, %65 : vector<2x256xf32>
    %c0_50 = arith.constant 0 : index
    %c0_51 = arith.constant 0 : index
    %67 = vector.load %arg11[%c0_50, %c0_51] : memref<256x128xf32, #tpu.memory_space<vmem>>, vector<256x128xf32>
    %cst_52 = arith.constant dense<0.000000e+00> : vector<2x128xf32>
    %68 = tpu.matmul %66, %67, %cst_52 {dimension_numbers = #tpu.dot_dimension_numbers<[1], [0], [0], [1], [0, 0, 1, 1], [], []>} : vector<2x256xf32>, vector<256x128xf32>, vector<2x128xf32> -> vector<2x128xf32>
    %c0_53 = arith.constant 0 : index
    %c0_54 = arith.constant 0 : index
    %69 = vector.load %arg12[%c0_53, %c0_54] : memref<128x32xf32, #tpu.memory_space<vmem>>, vector<128x32xf32>
    %cst_55 = arith.constant dense<0.000000e+00> : vector<2x32xf32>
    %70 = tpu.matmul %68, %69, %cst_55 {dimension_numbers = #tpu.dot_dimension_numbers<[1], [0], [0], [1], [0, 0, 1, 1], [], []>} : vector<2x128xf32>, vector<128x32xf32>, vector<2x32xf32> -> vector<2x32xf32>
    %cst_56 = arith.constant dense<0.000000e+00> : vector<32xf32>
    %71 = vector.multi_reduction <add>, %70, %cst_56 [0] : vector<2x32xf32> to vector<32xf32>
    %72 = vector.shape_cast %71 : vector<32xf32> to vector<1x32xf32>
    %cst_57 = arith.constant 5.000000e-01 : f32
    %73 = vector.broadcast %cst_57 : f32 to vector<1x32xf32>
    %74 = arith.mulf %72, %73 : vector<1x32xf32>
    %c0_58 = arith.constant 0 : index
    %c0_59 = arith.constant 0 : index
    %75 = vector.load %arg13[%c0_58, %c0_59] : memref<32x128xf32, #tpu.memory_space<vmem>>, vector<32x128xf32>
    %cst_60 = arith.constant dense<0.000000e+00> : vector<1x128xf32>
    %76 = tpu.matmul %74, %75, %cst_60 {dimension_numbers = #tpu.dot_dimension_numbers<[1], [0], [0], [1], [0, 0, 1, 1], [], []>} : vector<1x32xf32>, vector<32x128xf32>, vector<1x128xf32> -> vector<1x128xf32>
    %77 = vector.broadcast %76 : vector<1x128xf32> to vector<2x128xf32>
    %78 = arith.subf %68, %77 : vector<2x128xf32>
    %79 = arith.mulf %78, %78 : vector<2x128xf32>
    %c0_61 = arith.constant 0 : index
    %c0_62 = arith.constant 0 : index
    %80 = vector.load %arg12[%c0_61, %c0_62] : memref<128x32xf32, #tpu.memory_space<vmem>>, vector<128x32xf32>
    %cst_63 = arith.constant dense<0.000000e+00> : vector<2x32xf32>
    %81 = tpu.matmul %79, %80, %cst_63 {dimension_numbers = #tpu.dot_dimension_numbers<[1], [0], [0], [1], [0, 0, 1, 1], [], []>} : vector<2x128xf32>, vector<128x32xf32>, vector<2x32xf32> -> vector<2x32xf32>
    %cst_64 = arith.constant dense<0.000000e+00> : vector<32xf32>
    %82 = vector.multi_reduction <add>, %81, %cst_64 [0] : vector<2x32xf32> to vector<32xf32>
    %83 = vector.shape_cast %82 : vector<32xf32> to vector<1x32xf32>
    %cst_65 = arith.constant 5.000000e-01 : f32
    %84 = vector.broadcast %cst_65 : f32 to vector<1x32xf32>
    %85 = arith.mulf %83, %84 : vector<1x32xf32>
    %c0_66 = arith.constant 0 : index
    %c0_67 = arith.constant 0 : index
    %86 = vector.load %arg14[%c0_66, %c0_67] : memref<1x32xf32, #tpu.memory_space<vmem>>, vector<1x32xf32>
    %cst_68 = arith.constant 9.99999974E-6 : f32
    %87 = vector.broadcast %cst_68 : f32 to vector<1x32xf32>
    %88 = arith.addf %85, %87 : vector<1x32xf32>
    %89 = math.rsqrt %88 : vector<1x32xf32>
    %90 = arith.mulf %86, %89 : vector<1x32xf32>
    %c0_69 = arith.constant 0 : index
    %c0_70 = arith.constant 0 : index
    %91 = vector.load %arg13[%c0_69, %c0_70] : memref<32x128xf32, #tpu.memory_space<vmem>>, vector<32x128xf32>
    %cst_71 = arith.constant dense<0.000000e+00> : vector<1x128xf32>
    %92 = tpu.matmul %90, %91, %cst_71 {dimension_numbers = #tpu.dot_dimension_numbers<[1], [0], [0], [1], [0, 0, 1, 1], [], []>} : vector<1x32xf32>, vector<32x128xf32>, vector<1x128xf32> -> vector<1x128xf32>
    %93 = vector.broadcast %92 : vector<1x128xf32> to vector<2x128xf32>
    %94 = arith.mulf %78, %93 : vector<2x128xf32>
    %c0_72 = arith.constant 0 : index
    %c0_73 = arith.constant 0 : index
    %95 = vector.load %arg15[%c0_72, %c0_73] : memref<1x128xf32, #tpu.memory_space<vmem>>, vector<1x128xf32>
    %96 = vector.broadcast %95 : vector<1x128xf32> to vector<2x128xf32>
    %97 = arith.addf %94, %96 : vector<2x128xf32>
    %cst_74 = arith.constant 0.000000e+00 : f32
    %98 = vector.broadcast %cst_74 : f32 to vector<2x128xf32>
    %99 = arith.maximumf %97, %98 : vector<2x128xf32>
    %c0_75 = arith.constant 0 : index
    %c0_76 = arith.constant 0 : index
    %100 = vector.load %arg16[%c0_75, %c0_76] : memref<128x16xf32, #tpu.memory_space<vmem>>, vector<128x16xf32>
    %cst_77 = arith.constant dense<0.000000e+00> : vector<2x16xf32>
    %101 = tpu.matmul %99, %100, %cst_77 {dimension_numbers = #tpu.dot_dimension_numbers<[1], [0], [0], [1], [0, 0, 1, 1], [], []>} : vector<2x128xf32>, vector<128x16xf32>, vector<2x16xf32> -> vector<2x16xf32>
    %c0_78 = arith.constant 0 : index
    %c0_79 = arith.constant 0 : index
    %102 = vector.load %arg17[%c0_78, %c0_79] : memref<1x16xf32, #tpu.memory_space<vmem>>, vector<1x16xf32>
    %103 = vector.broadcast %102 : vector<1x16xf32> to vector<2x16xf32>
    %104 = arith.addf %101, %103 : vector<2x16xf32>
    %c0_80 = arith.constant 0 : index
    %c0_81 = arith.constant 0 : index
    %105 = vector.load %arg18[%c0_80, %c0_81] : memref<2x16xf32, #tpu.memory_space<vmem>>, vector<2x16xf32>
    tpu.vector_store %arg18[%c0_80, %c0_81], %104 {strides = array<i32>} : memref<2x16xf32, #tpu.memory_space<vmem>>, vector<2x16xf32>,
    return
  }
}

</mosaic_0001>

<llo_original>
// kernel: tpu_custom_call.1
$region0: #{tpu_custom_call.1}
  #allocation0 [shape = 'u32[]', space=smem, size = 0x4, offset = 0x4, fixed_abs, tag = 'smem constant byte address 0x4 - core index']
  #allocation1 [shape = 'u32[144,128]{1,0:T(1,128)}', space=vmem, size = 0x12000, scoped, tag = 'internal scratch']
  %s0 = inlined_call_operand.hbm [shape: f32[2,1024], index: 0, kind: input, shape index: {}]
  %s1 = inlined_call_operand.hbm [shape: f32[1024,512], index: 1, kind: input, shape index: {}]
  %s2 = inlined_call_operand.vmem [shape: f32[512,8], index: 2, kind: input, shape index: {}]
  %s3 = inlined_call_operand.hbm [shape: f32[8,512], index: 3, kind: input, shape index: {}]
  %s4 = inlined_call_operand.hbm [shape: f32[1,8], index: 4, kind: input, shape index: {}]
  %s5 = inlined_call_operand.hbm [shape: f32[1,512], index: 5, kind: input, shape index: {}]
  %s6 = inlined_call_operand.hbm [shape: f32[512,256], index: 6, kind: input, shape index: {}]
  %s7 = inlined_call_operand.vmem [shape: f32[256,16], index: 7, kind: input, shape index: {}]
  %s8 = inlined_call_operand.hbm [shape: f32[16,256], index: 8, kind: input, shape index: {}]
  %s9 = inlined_call_operand.hbm [shape: f32[1,16], index: 9, kind: input, shape index: {}]
  %s10 = inlined_call_operand.hbm [shape: f32[1,256], index: 10, kind: input, shape index: {}]
  %s11 = inlined_call_operand.hbm [shape: f32[256,128], index: 11, kind: input, shape index: {}]
  %s12 = inlined_call_operand.vmem [shape: f32[128,32], index: 12, kind: input, shape index: {}]
  %s13 = inlined_call_operand.hbm [shape: f32[32,128], index: 13, kind: input, shape index: {}]
  %s14 = inlined_call_operand.hbm [shape: f32[1,32], index: 14, kind: input, shape index: {}]
  %s15 = inlined_call_operand.hbm [shape: f32[1,128], index: 15, kind: input, shape index: {}]
  %s16 = inlined_call_operand.vmem [shape: f32[128,16], index: 16, kind: input, shape index: {}]
  %s17 = inlined_call_operand.hbm [shape: f32[1,16], index: 17, kind: input, shape index: {}]
  %s18 = inlined_call_operand.hbm [shape: f32[2,16], index: 18, kind: output, shape index: {}]
  %s19 = sld [smem:[#allocation0]]
  $region138: #{tpu_custom_call.1} parent=0
    _
  %s21 = ssub.s32 1, %s19
  %s22 = scalar_select 0, %s21, %s19
  $region1: #{tpu_custom_call.1} parent=0
    #allocation2 [shape = 'u8[8192]{0}', space=vmem, size = 0x2000, scoped, tag = 'input window, operand 0, single buffered']
    #allocation3 [shape = 's32[1]{0}', space=sflag, size = 0x4, scoped, tag = 'scoped memory for tpu_custom_call.1']
    #allocation4 [shape = 's32[1]{0}', space=sflag, size = 0x4, scoped, tag = 'scoped memory for tpu_custom_call.1']
    #allocation5 [shape = 'u8[2097152]{0}', space=vmem, size = 0x200000, scoped, tag = 'input window, operand 1, single buffered']
    #allocation6 [shape = 's32[1]{0}', space=sflag, size = 0x4, scoped, tag = 'scoped memory for tpu_custom_call.1']
    #allocation7 [shape = 'u8[16384]{0}', space=vmem, size = 0x4000, scoped, tag = 'input window, operand 3, single buffered']
    #allocation8 [shape = 'u8[512]{0}', space=vmem, size = 0x400, scoped, tag = 'input window, operand 4, single buffered']
    #allocation9 [shape = 's32[1]{0}', space=sflag, size = 0x4, scoped, tag = 'scoped memory for tpu_custom_call.1']
    #allocation10 [shape = 'u8[2048]{0}', space=vmem, size = 0x800, scoped, tag = 'input window, operand 5, single buffered']
    #allocation11 [shape = 'u8[524288]{0}', space=vmem, size = 0x80000, scoped, tag = 'input window, operand 6, single buffered']
    #allocation12 [shape = 's32[1]{0}', space=sflag, size = 0x4, scoped, tag = 'scoped memory for tpu_custom_call.1']
    #allocation13 [shape = 'u8[16384]{0}', space=vmem, size = 0x4000, scoped, tag = 'input window, operand 8, single buffered']
    #allocation14 [shape = 'u8[512]{0}', space=vmem, size = 0x400, scoped, tag = 'input window, operand 9, single buffered']
    #allocation15 [shape = 's32[1]{0}', space=sflag, size = 0x4, scoped, tag = 'scoped memory for tpu_custom_call.1']
    #allocation16 [shape = 'u8[1024]{0}', space=vmem, size = 0x400, scoped, tag = 'input window, operand 10, single buffered']
    #allocation17 [shape = 'u8[131072]{0}', space=vmem, size = 0x20000, scoped, tag = 'input window, operand 11, single buffered']
    #allocation18 [shape = 's32[1]{0}', space=sflag, size = 0x4, scoped, tag = 'scoped memory for tpu_custom_call.1']
    #allocation19 [shape = 'u8[16384]{0}', space=vmem, size = 0x4000, scoped, tag = 'input window, operand 13, single buffered']
    #allocation20 [shape = 'u8[512]{0}', space=vmem, size = 0x400, scoped, tag = 'input window, operand 14, single buffered']
    #allocation21 [shape = 's32[1]{0}', space=sflag, size = 0x4, scoped, tag = 'scoped memory for tpu_custom_call.1']
    #allocation22 [shape = 'u8[512]{0}', space=vmem, size = 0x400, scoped, tag = 'input window, operand 15, single buffered']
    #allocation23 [shape = 'u8[512]{0}', space=vmem, size = 0x400, scoped, tag = 'input window, operand 17, single buffered']
    #allocation24 [shape = 's32[1]{0}', space=sflag, size = 0x4, scoped, tag = 'scoped memory for tpu_custom_call.1']
    #allocation25 [shape = 'u8[1024]{0}', space=vmem, size = 0x400, scoped, tag = 'output window, operand 0, single buffered']
    %23 = vsyncpa [#allocation3], 0
    %24 = vsyncpa [#allocation6], 0
    %25 = vsyncpa [#allocation9], 0
    %26 = vsyncpa [#allocation12], 0
    %27 = vsyncpa [#allocation15], 0
    %28 = vsyncpa [#allocation18], 0
    %29 = vsyncpa [#allocation21], 0
    %30 = vsyncpa [#allocation24], 0
    %31 = vsyncpa [#allocation4], 0
    // Predicated region
    $region2: #{tpu_custom_call.1} parent=1 // pred_check
      _
    $region3: #{tpu_custom_call.1} parent=1 // pred_check_branch
      %33 = sbr.rel (0) target = $region5
    $region4: #{tpu_custom_call.1} parent=1 // pred_region
      %s35 = ssub.s32 256, 256
      %36 = vsyncadd [#allocation3], %s35
      %s38 = sshll.u32 [#allocation2], 4
      %s39 = int_to_ptr.vmem [resolvable:$true] %s38
      %41 = dma.hbm_to_vmem [thread:$0]  %s0, 256, %s39, [#allocation3]
    $region5: #{tpu_custom_call.1} parent=1 // pred_fallthru
      _
    // Predicated region
    $region6: #{tpu_custom_call.1} parent=1 // pred_check
      _
    $region7: #{tpu_custom_call.1} parent=1 // pred_check_branch
      %43 = sbr.rel (0) target = $region9
    $region8: #{tpu_custom_call.1} parent=1 // pred_region
      %s45 = ssub.s32 65536, 65536
      %46 = vsyncadd [#allocation6], %s45
      %s47 = sshll.u32 [#allocation5], 4
      %s48 = int_to_ptr.vmem [resolvable:$true] %s47
      %53 = dma.hbm_to_vmem [thread:$0]  %s1, 65536, %s48, [#allocation6], 512, 512, 32
    $region9: #{tpu_custom_call.1} parent=1 // pred_fallthru
      _
    // Predicated region
    $region10: #{tpu_custom_call.1} parent=1 // pred_check
      _
    $region11: #{tpu_custom_call.1} parent=1 // pred_check_branch
      %55 = sbr.rel (0) target = $region13
    $region12: #{tpu_custom_call.1} parent=1 // pred_region
      _
    $region13: #{tpu_custom_call.1} parent=1 // pred_fallthru
      _
    // Predicated region
    $region14: #{tpu_custom_call.1} parent=1 // pred_check
      _
    $region15: #{tpu_custom_call.1} parent=1 // pred_check_branch
      %57 = sbr.rel (0) target = $region17
    $region16: #{tpu_custom_call.1} parent=1 // pred_region
      %s59 = ssub.s32 512, 512
      %60 = vsyncadd [#allocation6], %s59
      %s62 = sshll.u32 [#allocation7], 4
      %s63 = int_to_ptr.vmem [resolvable:$true] %s62
      %65 = dma.hbm_to_vmem [thread:$0]  %s3, 512, %s63, [#allocation6]
    $region17: #{tpu_custom_call.1} parent=1 // pred_fallthru
      _
    // Predicated region
    $region18: #{tpu_custom_call.1} parent=1 // pred_check
      _
    $region19: #{tpu_custom_call.1} parent=1 // pred_check_branch
      %67 = sbr.rel (0) target = $region21
    $region20: #{tpu_custom_call.1} parent=1 // pred_region
      %s69 = ssub.s32 16, 16
      %70 = vsyncadd [#allocation9], %s69
      %s72 = sshll.u32 [#allocation8], 4
      %s73 = int_to_ptr.vmem [resolvable:$true] %s72
      %75 = dma.hbm_to_vmem [thread:$0]  %s4, 16, %s73, [#allocation9]
    $region21: #{tpu_custom_call.1} parent=1 // pred_fallthru
      _
    // Predicated region
    $region22: #{tpu_custom_call.1} parent=1 // pred_check
      _
    $region23: #{tpu_custom_call.1} parent=1 // pred_check_branch
      %77 = sbr.rel (0) target = $region25
    $region24: #{tpu_custom_call.1} parent=1 // pred_region
      %s79 = ssub.s32 64, 64
      %80 = vsyncadd [#allocation9], %s79
      %s82 = sshll.u32 [#allocation10], 4
      %s83 = int_to_ptr.vmem [resolvable:$true] %s82
      %85 = dma.hbm_to_vmem [thread:$0]  %s5, 64, %s83, [#allocation9]
    $region25: #{tpu_custom_call.1} parent=1 // pred_fallthru
      _
    // Predicated region
    $region26: #{tpu_custom_call.1} parent=1 // pred_check
      _
    $region27: #{tpu_custom_call.1} parent=1 // pred_check_branch
      %87 = sbr.rel (0) target = $region29
    $region28: #{tpu_custom_call.1} parent=1 // pred_region
      %s89 = ssub.s32 16384, 16384
      %90 = vsyncadd [#allocation12], %s89
      %s91 = sshll.u32 [#allocation11], 4
      %s92 = int_to_ptr.vmem [resolvable:$true] %s91
      %97 = dma.hbm_to_vmem [thread:$0]  %s6, 16384, %s92, [#allocation12], 256, 256, 16
    $region29: #{tpu_custom_call.1} parent=1 // pred_fallthru
      _
    // Predicated region
    $region30: #{tpu_custom_call.1} parent=1 // pred_check
      _
    $region31: #{tpu_custom_call.1} parent=1 // pred_check_branch
      %99 = sbr.rel (0) target = $region33
    $region32: #{tpu_custom_call.1} parent=1 // pred_region
      _
    $region33: #{tpu_custom_call.1} parent=1 // pred_fallthru
      _
    // Predicated region
    $region34: #{tpu_custom_call.1} parent=1 // pred_check
      _
    $region35: #{tpu_custom_call.1} parent=1 // pred_check_branch
      %101 = sbr.rel (0) target = $region37
    $region36: #{tpu_custom_call.1} parent=1 // pred_region
      %s103 = ssub.s32 512, 512
      %104 = vsyncadd [#allocation12], %s103
      %s105 = sshll.u32 [#allocation13], 4
      %s106 = int_to_ptr.vmem [resolvable:$true] %s105
      %111 = dma.hbm_to_vmem [thread:$0]  %s8, 512, %s106, [#allocation12], 256, 256, 16
    $region37: #{tpu_custom_call.1} parent=1 // pred_fallthru
      _
    // Predicated region
    $region38: #{tpu_custom_call.1} parent=1 // pred_check
      _
    $region39: #{tpu_custom_call.1} parent=1 // pred_check_branch
      %113 = sbr.rel (0) target = $region41
    $region40: #{tpu_custom_call.1} parent=1 // pred_region
      %s115 = ssub.s32 16, 16
      %116 = vsyncadd [#allocation15], %s115
      %s118 = sshll.u32 [#allocation14], 4
      %s119 = int_to_ptr.vmem [resolvable:$true] %s118
      %121 = dma.hbm_to_vmem [thread:$0]  %s9, 16, %s119, [#allocation15]
    $region41: #{tpu_custom_call.1} parent=1 // pred_fallthru
      _
    // Predicated region
    $region42: #{tpu_custom_call.1} parent=1 // pred_check
      _
    $region43: #{tpu_custom_call.1} parent=1 // pred_check_branch
      %123 = sbr.rel (0) target = $region45
    $region44: #{tpu_custom_call.1} parent=1 // pred_region
      %s125 = ssub.s32 32, 32
      %126 = vsyncadd [#allocation15], %s125
      %s128 = sshll.u32 [#allocation16], 4
      %s129 = int_to_ptr.vmem [resolvable:$true] %s128
      %131 = dma.hbm_to_vmem [thread:$0]  %s10, 32, %s129, [#allocation15]
    $region45: #{tpu_custom_call.1} parent=1 // pred_fallthru
      _
    // Predicated region
    $region46: #{tpu_custom_call.1} parent=1 // pred_check
      _
    $region47: #{tpu_custom_call.1} parent=1 // pred_check_branch
      %133 = sbr.rel (0) target = $region49
    $region48: #{tpu_custom_call.1} parent=1 // pred_region
      %s135 = ssub.s32 4096, 4096
      %136 = vsyncadd [#allocation18], %s135
      %s137 = sshll.u32 [#allocation17], 4
      %s138 = int_to_ptr.vmem [resolvable:$true] %s137
      %143 = dma.hbm_to_vmem [thread:$0]  %s11, 4096, %s138, [#allocation18], 128, 128, 8
    $region49: #{tpu_custom_call.1} parent=1 // pred_fallthru
      _
    // Predicated region
    $region50: #{tpu_custom_call.1} parent=1 // pred_check
      _
    $region51: #{tpu_custom_call.1} parent=1 // pred_check_branch
      %145 = sbr.rel (0) target = $region53
    $region52: #{tpu_custom_call.1} parent=1 // pred_region
      _
    $region53: #{tpu_custom_call.1} parent=1 // pred_fallthru
      _
    // Predicated region
    $region54: #{tpu_custom_call.1} parent=1 // pred_check
      _
    $region55: #{tpu_custom_call.1} parent=1 // pred_check_branch
      %147 = sbr.rel (0) target = $region57
    $region56: #{tpu_custom_call.1} parent=1 // pred_region
      %s149 = ssub.s32 512, 512
      %150 = vsyncadd [#allocation18], %s149
      %s151 = sshll.u32 [#allocation19], 4
      %s152 = int_to_ptr.vmem [resolvable:$true] %s151
      %157 = dma.hbm_to_vmem [thread:$0]  %s13, 512, %s152, [#allocation18], 128, 128, 8
    $region57: #{tpu_custom_call.1} parent=1 // pred_fallthru
      _
    // Predicated region
    $region58: #{tpu_custom_call.1} parent=1 // pred_check
      _
    $region59: #{tpu_custom_call.1} parent=1 // pred_check_branch
      %159 = sbr.rel (0) target = $region61
    $region60: #{tpu_custom_call.1} parent=1 // pred_region
      %s161 = ssub.s32 16, 16
      %162 = vsyncadd [#allocation21], %s161
      %s164 = sshll.u32 [#allocation20], 4
      %s165 = int_to_ptr.vmem [resolvable:$true] %s164
      %167 = dma.hbm_to_vmem [thread:$0]  %s14, 16, %s165, [#allocation21]
    $region61: #{tpu_custom_call.1} parent=1 // pred_fallthru
      _
    // Predicated region
    $region62: #{tpu_custom_call.1} parent=1 // pred_check
      _
    $region63: #{tpu_custom_call.1} parent=1 // pred_check_branch
      %169 = sbr.rel (0) target = $region65
    $region64: #{tpu_custom_call.1} parent=1 // pred_region
      %s171 = ssub.s32 16, 16
      %172 = vsyncadd [#allocation21], %s171
      %s174 = sshll.u32 [#allocation22], 4
      %s175 = int_to_ptr.vmem [resolvable:$true] %s174
      %177 = dma.hbm_to_vmem [thread:$0]  %s15, 16, %s175, [#allocation21]
    $region65: #{tpu_custom_call.1} parent=1 // pred_fallthru
      _
    // Predicated region
    $region66: #{tpu_custom_call.1} parent=1 // pred_check
      _
    $region67: #{tpu_custom_call.1} parent=1 // pred_check_branch
      %179 = sbr.rel (0) target = $region69
    $region68: #{tpu_custom_call.1} parent=1 // pred_region
      _
    $region69: #{tpu_custom_call.1} parent=1 // pred_fallthru
      _
    // Predicated region
    $region70: #{tpu_custom_call.1} parent=1 // pred_check
      _
    $region71: #{tpu_custom_call.1} parent=1 // pred_check_branch
      %181 = sbr.rel (0) target = $region73
    $region72: #{tpu_custom_call.1} parent=1 // pred_region
      %s183 = ssub.s32 16, 16
      %184 = vsyncadd [#allocation24], %s183
      %s186 = sshll.u32 [#allocation23], 4
      %s187 = int_to_ptr.vmem [resolvable:$true] %s186
      %189 = dma.hbm_to_vmem [thread:$0]  %s17, 16, %s187, [#allocation24]
    $region73: #{tpu_custom_call.1} parent=1 // pred_fallthru
      _
    // Predicated region
    $region74: #{tpu_custom_call.1} parent=1 // pred_check
      _
    $region75: #{tpu_custom_call.1} parent=1 // pred_check_branch
      %191 = sbr.rel (0) target = $region77
    $region76: #{tpu_custom_call.1} parent=1 // pred_region
      %192 = dma.done [#allocation3], 256
    $region77: #{tpu_custom_call.1} parent=1 // pred_fallthru
      _
    // Predicated region
    $region78: #{tpu_custom_call.1} parent=1 // pred_check
      _
    $region79: #{tpu_custom_call.1} parent=1 // pred_check_branch
      %194 = sbr.rel (0) target = $region81
    $region80: #{tpu_custom_call.1} parent=1 // pred_region
      %195 = dma.done [#allocation6], 65536
    $region81: #{tpu_custom_call.1} parent=1 // pred_fallthru
      _
    // Predicated region
    $region82: #{tpu_custom_call.1} parent=1 // pred_check
      _
    $region83: #{tpu_custom_call.1} parent=1 // pred_check_branch
      %197 = sbr.rel (0) target = $region85
    $region84: #{tpu_custom_call.1} parent=1 // pred_region
      %198 = dma.done [#allocation6], 512
    $region85: #{tpu_custom_call.1} parent=1 // pred_fallthru
      _
    // Predicated region
    $region86: #{tpu_custom_call.1} parent=1 // pred_check
      _
    $region87: #{tpu_custom_call.1} parent=1 // pred_check_branch
      %200 = sbr.rel (0) target = $region89
    $region88: #{tpu_custom_call.1} parent=1 // pred_region
      %201 = dma.done [#allocation9], 16
    $region89: #{tpu_custom_call.1} parent=1 // pred_fallthru
      _
    // Predicated region
    $region90: #{tpu_custom_call.1} parent=1 // pred_check
      _
    $region91: #{tpu_custom_call.1} parent=1 // pred_check_branch
      %203 = sbr.rel (0) target = $region93
    $region92: #{tpu_custom_call.1} parent=1 // pred_region
      %204 = dma.done [#allocation9], 64
    $region93: #{tpu_custom_call.1} parent=1 // pred_fallthru
      _
    // Predicated region
    $region94: #{tpu_custom_call.1} parent=1 // pred_check
      _
    $region95: #{tpu_custom_call.1} parent=1 // pred_check_branch
      %206 = sbr.rel (0) target = $region97
    $region96: #{tpu_custom_call.1} parent=1 // pred_region
      %207 = dma.done [#allocation12], 16384
    $region97: #{tpu_custom_call.1} parent=1 // pred_fallthru
      _
    // Predicated region
    $region98: #{tpu_custom_call.1} parent=1 // pred_check
      _
    $region99: #{tpu_custom_call.1} parent=1 // pred_check_branch
      %209 = sbr.rel (0) target = $region101
    $region100: #{tpu_custom_call.1} parent=1 // pred_region
      %210 = dma.done [#allocation12], 512
    $region101: #{tpu_custom_call.1} parent=1 // pred_fallthru
      _
    // Predicated region
    $region102: #{tpu_custom_call.1} parent=1 // pred_check
      _
    $region103: #{tpu_custom_call.1} parent=1 // pred_check_branch
      %212 = sbr.rel (0) target = $region105
    $region104: #{tpu_custom_call.1} parent=1 // pred_region
      %213 = dma.done [#allocation15], 16
    $region105: #{tpu_custom_call.1} parent=1 // pred_fallthru
      _
    // Predicated region
    $region106: #{tpu_custom_call.1} parent=1 // pred_check
      _
    $region107: #{tpu_custom_call.1} parent=1 // pred_check_branch
      %215 = sbr.rel (0) target = $region109
    $region108: #{tpu_custom_call.1} parent=1 // pred_region
      %216 = dma.done [#allocation15], 32
    $region109: #{tpu_custom_call.1} parent=1 // pred_fallthru
      _
    // Predicated region
    $region110: #{tpu_custom_call.1} parent=1 // pred_check
      _
    $region111: #{tpu_custom_call.1} parent=1 // pred_check_branch
      %218 = sbr.rel (0) target = $region113
    $region112: #{tpu_custom_call.1} parent=1 // pred_region
      %219 = dma.done [#allocation18], 4096
    $region113: #{tpu_custom_call.1} parent=1 // pred_fallthru
      _
    // Predicated region
    $region114: #{tpu_custom_call.1} parent=1 // pred_check
      _
    $region115: #{tpu_custom_call.1} parent=1 // pred_check_branch
      %221 = sbr.rel (0) target = $region117
    $region116: #{tpu_custom_call.1} parent=1 // pred_region
      %222 = dma.done [#allocation18], 512
    $region117: #{tpu_custom_call.1} parent=1 // pred_fallthru
      _
    // Predicated region
    $region118: #{tpu_custom_call.1} parent=1 // pred_check
      _
    $region119: #{tpu_custom_call.1} parent=1 // pred_check_branch
      %224 = sbr.rel (0) target = $region121
    $region120: #{tpu_custom_call.1} parent=1 // pred_region
      %225 = dma.done [#allocation21], 16
    $region121: #{tpu_custom_call.1} parent=1 // pred_fallthru
      _
    // Predicated region
    $region122: #{tpu_custom_call.1} parent=1 // pred_check
      _
    $region123: #{tpu_custom_call.1} parent=1 // pred_check_branch
      %227 = sbr.rel (0) target = $region125
    $region124: #{tpu_custom_call.1} parent=1 // pred_region
      %228 = dma.done [#allocation21], 16
    $region125: #{tpu_custom_call.1} parent=1 // pred_fallthru
      _
    // Predicated region
    $region126: #{tpu_custom_call.1} parent=1 // pred_check
      _
    $region127: #{tpu_custom_call.1} parent=1 // pred_check_branch
      %230 = sbr.rel (0) target = $region129
    $region128: #{tpu_custom_call.1} parent=1 // pred_region
      %231 = dma.done [#allocation24], 16
    $region129: #{tpu_custom_call.1} parent=1 // pred_fallthru
      _
    %v232 = vld [vmem:[#allocation2] sm:$0xff]
    %v233 = vld [vmem:[#allocation2 + $0x8] sm:$0xff]
    %v234 = vld [vmem:[#allocation5] sm:$0xff]
    %v235 = vld [vmem:[#allocation5 + $0x8] sm:$0xff]
    %v236 = vld [vmem:[#allocation5 + $0x10] sm:$0xff]
    %v237 = vld [vmem:[#allocation5 + $0x18] sm:$0xff]
    %v238 = vld [vmem:[#allocation5 + $0x20] sm:$0xff]
    %v239 = vld [vmem:[#allocation5 + $0x28] sm:$0xff]
    %v240 = vld [vmem:[#allocation5 + $0x30] sm:$0xff]
    %v241 = vld [vmem:[#allocation5 + $0x38] sm:$0xff]
    %v242 = vld [vmem:[#allocation5 + $0x40] sm:$0xff]
    %v243 = vld [vmem:[#allocation5 + $0x48] sm:$0xff]
    %v244 = vld [vmem:[#allocation5 + $0x50] sm:$0xff]
    %v245 = vld [vmem:[#allocation5 + $0x58] sm:$0xff]
    %v246 = vld [vmem:[#allocation5 + $0x60] sm:$0xff]
    %v247 = vld [vmem:[#allocation5 + $0x68] sm:$0xff]
    %v248 = vld [vmem:[#allocation5 + $0x70] sm:$0xff]
    %v249 = vld [vmem:[#allocation5 + $0x78] sm:$0xff]
    %v250 = vld [vmem:[#allocation5 + $0x80] sm:$0xff]
    %v251 = vld [vmem:[#allocation5 + $0x88] sm:$0xff]
    %v252 = vld [vmem:[#allocation5 + $0x90] sm:$0xff]
    %v253 = vld [vmem:[#allocation5 + $0x98] sm:$0xff]
    %v254 = vld [vmem:[#allocation5 + $0xa0] sm:$0xff]
    %v255 = vld [vmem:[#allocation5 + $0xa8] sm:$0xff]
    %v256 = vld [vmem:[#allocation5 + $0xb0] sm:$0xff]
    %v257 = vld [vmem:[#allocation5 + $0xb8] sm:$0xff]
    %v258 = vld [vmem:[#allocation5 + $0xc0] sm:$0xff]
    %v259 = vld [vmem:[#allocation5 + $0xc8] sm:$0xff]
    %v260 = vld [vmem:[#allocation5 + $0xd0] sm:$0xff]
    %v261 = vld [vmem:[#allocation5 + $0xd8] sm:$0xff]
    %v262 = vld [vmem:[#allocation5 + $0xe0] sm:$0xff]
    %v263 = vld [vmem:[#allocation5 + $0xe8] sm:$0xff]
    %v264 = vld [vmem:[#allocation5 + $0xf0] sm:$0xff]
    %v265 = vld [vmem:[#allocation5 + $0xf8] sm:$0xff]
    %v266 = vld [vmem:[#allocation5 + $0x100] sm:$0xff]
    %v267 = vld [vmem:[#allocation5 + $0x108] sm:$0xff]
    %v268 = vld [vmem:[#allocation5 + $0x110] sm:$0xff]
    %v269 = vld [vmem:[#allocation5 + $0x118] sm:$0xff]
    %v270 = vld [vmem:[#allocation5 + $0x120] sm:$0xff]
    %v271 = vld [vmem:[#allocation5 + $0x128] sm:$0xff]
    %v272 = vld [vmem:[#allocation5 + $0x130] sm:$0xff]
    %v273 = vld [vmem:[#allocation5 + $0x138] sm:$0xff]
    %v274 = vld [vmem:[#allocation5 + $0x140] sm:$0xff]
    %v275 = vld [vmem:[#allocation5 + $0x148] sm:$0xff]
    %v276 = vld [vmem:[#allocation5 + $0x150] sm:$0xff]
    %v277 = vld [vmem:[#allocation5 + $0x158] sm:$0xff]
    %v278 = vld [vmem:[#allocation5 + $0x160] sm:$0xff]
    %v279 = vld [vmem:[#allocation5 + $0x168] sm:$0xff]
    %v280 = vld [vmem:[#allocation5 + $0x170] sm:$0xff]
    %v281 = vld [vmem:[#allocation5 + $0x178] sm:$0xff]
    %v282 = vld [vmem:[#allocation5 + $0x180] sm:$0xff]
    %v283 = vld [vmem:[#allocation5 + $0x188] sm:$0xff]
    %v284 = vld [vmem:[#allocation5 + $0x190] sm:$0xff]
    %v285 = vld [vmem:[#allocation5 + $0x198] sm:$0xff]
    %v286 = vld [vmem:[#allocation5 + $0x1a0] sm:$0xff]
    %v287 = vld [vmem:[#allocation5 + $0x1a8] sm:$0xff]
    %v288 = vld [vmem:[#allocation5 + $0x1b0] sm:$0xff]
    %v289 = vld [vmem:[#allocation5 + $0x1b8] sm:$0xff]
    %v290 = vld [vmem:[#allocation5 + $0x1c0] sm:$0xff]
    %v291 = vld [vmem:[#allocation5 + $0x1c8] sm:$0xff]
    %v292 = vld [vmem:[#allocation5 + $0x1d0] sm:$0xff]
    %v293 = vld [vmem:[#allocation5 + $0x1d8] sm:$0xff]
    %v294 = vld [vmem:[#allocation5 + $0x1e0] sm:$0xff]
    %v295 = vld [vmem:[#allocation5 + $0x1e8] sm:$0xff]
    %v296 = vld [vmem:[#allocation5 + $0x1f0] sm:$0xff]
    %v297 = vld [vmem:[#allocation5 + $0x1f8] sm:$0xff]
    %v298 = vld [vmem:[#allocation5 + $0x200] sm:$0xff]
    %v299 = vld [vmem:[#allocation5 + $0x208] sm:$0xff]
    %v300 = vld [vmem:[#allocation5 + $0x210] sm:$0xff]
    %v301 = vld [vmem:[#allocation5 + $0x218] sm:$0xff]
    %v302 = vld [vmem:[#allocation5 + $0x220] sm:$0xff]
    %v303 = vld [vmem:[#allocation5 + $0x228] sm:$0xff]
    %v304 = vld [vmem:[#allocation5 + $0x230] sm:$0xff]
    %v305 = vld [vmem:[#allocation5 + $0x238] sm:$0xff]
    %v306 = vld [vmem:[#allocation5 + $0x240] sm:$0xff]
    %v307 = vld [vmem:[#allocation5 + $0x248] sm:$0xff]
    %v308 = vld [vmem:[#allocation5 + $0x250] sm:$0xff]
    %v309 = vld [vmem:[#allocation5 + $0x258] sm:$0xff]
    %v310 = vld [vmem:[#allocation5 + $0x260] sm:$0xff]
    %v311 = vld [vmem:[#allocation5 + $0x268] sm:$0xff]
    %v312 = vld [vmem:[#allocation5 + $0x270] sm:$0xff]
    %v313 = vld [vmem:[#allocation5 + $0x278] sm:$0xff]
    %v314 = vld [vmem:[#allocation5 + $0x280] sm:$0xff]
    %v315 = vld [vmem:[#allocation5 + $0x288] sm:$0xff]
    %v316 = vld [vmem:[#allocation5 + $0x290] sm:$0xff]
    %v317 = vld [vmem:[#allocation5 + $0x298] sm:$0xff]
    %v318 = vld [vmem:[#allocation5 + $0x2a0] sm:$0xff]
    %v319 = vld [vmem:[#allocation5 + $0x2a8] sm:$0xff]
    %v320 = vld [vmem:[#allocation5 + $0x2b0] sm:$0xff]
    %v321 = vld [vmem:[#allocation5 + $0x2b8] sm:$0xff]
    %v322 = vld [vmem:[#allocation5 + $0x2c0] sm:$0xff]
    %v323 = vld [vmem:[#allocation5 + $0x2c8] sm:$0xff]
    %v324 = vld [vmem:[#allocation5 + $0x2d0] sm:$0xff]
    %v325 = vld [vmem:[#allocation5 + $0x2d8] sm:$0xff]
    %v326 = vld [vmem:[#allocation5 + $0x2e0] sm:$0xff]
    %v327 = vld [vmem:[#allocation5 + $0x2e8] sm:$0xff]
    %v328 = vld [vmem:[#allocation5 + $0x2f0] sm:$0xff]
    %v329 = vld [vmem:[#allocation5 + $0x2f8] sm:$0xff]
    %v330 = vld [vmem:[#allocation5 + $0x300] sm:$0xff]
    %v331 = vld [vmem:[#allocation5 + $0x308] sm:$0xff]
    %v332 = vld [vmem:[#allocation5 + $0x310] sm:$0xff]
    %v333 = vld [vmem:[#allocation5 + $0x318] sm:$0xff]
    %v334 = vld [vmem:[#allocation5 + $0x320] sm:$0xff]
    %v335 = vld [vmem:[#allocation5 + $0x328] sm:$0xff]
    %v336 = vld [vmem:[#allocation5 + $0x330] sm:$0xff]
    %v337 = vld [vmem:[#allocation5 + $0x338] sm:$0xff]
    %v338 = vld [vmem:[#allocation5 + $0x340] sm:$0xff]
    %v339 = vld [vmem:[#allocation5 + $0x348] sm:$0xff]
    %v340 = vld [vmem:[#allocation5 + $0x350] sm:$0xff]
    %v341 = vld [vmem:[#allocation5 + $0x358] sm:$0xff]
    %v342 = vld [vmem:[#allocation5 + $0x360] sm:$0xff]
    %v343 = vld [vmem:[#allocation5 + $0x368] sm:$0xff]
    %v344 = vld [vmem:[#allocation5 + $0x370] sm:$0xff]
    %v345 = vld [vmem:[#allocation5 + $0x378] sm:$0xff]
    %v346 = vld [vmem:[#allocation5 + $0x380] sm:$0xff]
    %v347 = vld [vmem:[#allocation5 + $0x388] sm:$0xff]
    %v348 = vld [vmem:[#allocation5 + $0x390] sm:$0xff]
    %v349 = vld [vmem:[#allocation5 + $0x398] sm:$0xff]
    %v350 = vld [vmem:[#allocation5 + $0x3a0] sm:$0xff]
    %v351 = vld [vmem:[#allocation5 + $0x3a8] sm:$0xff]
    %v352 = vld [vmem:[#allocation5 + $0x3b0] sm:$0xff]
    %v353 = vld [vmem:[#allocation5 + $0x3b8] sm:$0xff]
    %v354 = vld [vmem:[#allocation5 + $0x3c0] sm:$0xff]
    %v355 = vld [vmem:[#allocation5 + $0x3c8] sm:$0xff]
    %v356 = vld [vmem:[#allocation5 + $0x3d0] sm:$0xff]
    %v357 = vld [vmem:[#allocation5 + $0x3d8] sm:$0xff]
    %v358 = vld [vmem:[#allocation5 + $0x3e0] sm:$0xff]
    %v359 = vld [vmem:[#allocation5 + $0x3e8] sm:$0xff]
    %v360 = vld [vmem:[#allocation5 + $0x3f0] sm:$0xff]
    %v361 = vld [vmem:[#allocation5 + $0x3f8] sm:$0xff]
    %v362 = vld [vmem:[#allocation5 + $0x400] sm:$0xff]
    %v363 = vld [vmem:[#allocation5 + $0x408] sm:$0xff]
    %v364 = vld [vmem:[#allocation5 + $0x410] sm:$0xff]
    %v365 = vld [vmem:[#allocation5 + $0x418] sm:$0xff]
    %v366 = vld [vmem:[#allocation5 + $0x420] sm:$0xff]
    %v367 = vld [vmem:[#allocation5 + $0x428] sm:$0xff]
    %v368 = vld [vmem:[#allocation5 + $0x430] sm:$0xff]
    %v369 = vld [vmem:[#allocation5 + $0x438] sm:$0xff]
    %v370 = vld [vmem:[#allocation5 + $0x440] sm:$0xff]
    %v371 = vld [vmem:[#allocation5 + $0x448] sm:$0xff]
    %v372 = vld [vmem:[#allocation5 + $0x450] sm:$0xff]
    %v373 = vld [vmem:[#allocation5 + $0x458] sm:$0xff]
    %v374 = vld [vmem:[#allocation5 + $0x460] sm:$0xff]
    %v375 = vld [vmem:[#allocation5 + $0x468] sm:$0xff]
    %v376 = vld [vmem:[#allocation5 + $0x470] sm:$0xff]
    %v377 = vld [vmem:[#allocation5 + $0x478] sm:$0xff]
    %v378 = vld [vmem:[#allocation5 + $0x480] sm:$0xff]
    %v379 = vld [vmem:[#allocation5 + $0x488] sm:$0xff]
    %v380 = vld [vmem:[#allocation5 + $0x490] sm:$0xff]
    %v381 = vld [vmem:[#allocation5 + $0x498] sm:$0xff]
    %v382 = vld [vmem:[#allocation5 + $0x4a0] sm:$0xff]
    %v383 = vld [vmem:[#allocation5 + $0x4a8] sm:$0xff]
    %v384 = vld [vmem:[#allocation5 + $0x4b0] sm:$0xff]
    %v385 = vld [vmem:[#allocation5 + $0x4b8] sm:$0xff]
    %v386 = vld [vmem:[#allocation5 + $0x4c0] sm:$0xff]
    %v387 = vld [vmem:[#allocation5 + $0x4c8] sm:$0xff]
    %v388 = vld [vmem:[#allocation5 + $0x4d0] sm:$0xff]
    %v389 = vld [vmem:[#allocation5 + $0x4d8] sm:$0xff]
    %v390 = vld [vmem:[#allocation5 + $0x4e0] sm:$0xff]
    %v391 = vld [vmem:[#allocation5 + $0x4e8] sm:$0xff]
    %v392 = vld [vmem:[#allocation5 + $0x4f0] sm:$0xff]
    %v393 = vld [vmem:[#allocation5 + $0x4f8] sm:$0xff]
    %v394 = vld [vmem:[#allocation5 + $0x500] sm:$0xff]
    %v395 = vld [vmem:[#allocation5 + $0x508] sm:$0xff]
    %v396 = vld [vmem:[#allocation5 + $0x510] sm:$0xff]
    %v397 = vld [vmem:[#allocation5 + $0x518] sm:$0xff]
    %v398 = vld [vmem:[#allocation5 + $0x520] sm:$0xff]
    %v399 = vld [vmem:[#allocation5 + $0x528] sm:$0xff]
    %v400 = vld [vmem:[#allocation5 + $0x530] sm:$0xff]
    %v401 = vld [vmem:[#allocation5 + $0x538] sm:$0xff]
    %v402 = vld [vmem:[#allocation5 + $0x540] sm:$0xff]
    %v403 = vld [vmem:[#allocation5 + $0x548] sm:$0xff]
    %v404 = vld [vmem:[#allocation5 + $0x550] sm:$0xff]
    %v405 = vld [vmem:[#allocation5 + $0x558] sm:$0xff]
    %v406 = vld [vmem:[#allocation5 + $0x560] sm:$0xff]
    %v407 = vld [vmem:[#allocation5 + $0x568] sm:$0xff]
    %v408 = vld [vmem:[#allocation5 + $0x570] sm:$0xff]
    %v409 = vld [vmem:[#allocation5 + $0x578] sm:$0xff]
    %v410 = vld [vmem:[#allocation5 + $0x580] sm:$0xff]
    %v411 = vld [vmem:[#allocation5 + $0x588] sm:$0xff]
    %v412 = vld [vmem:[#allocation5 + $0x590] sm:$0xff]
    %v413 = vld [vmem:[#allocation5 + $0x598] sm:$0xff]
    %v414 = vld [vmem:[#allocation5 + $0x5a0] sm:$0xff]
    %v415 = vld [vmem:[#allocation5 + $0x5a8] sm:$0xff]
    %v416 = vld [vmem:[#allocation5 + $0x5b0] sm:$0xff]
    %v417 = vld [vmem:[#allocation5 + $0x5b8] sm:$0xff]
    %v418 = vld [vmem:[#allocation5 + $0x5c0] sm:$0xff]
    %v419 = vld [vmem:[#allocation5 + $0x5c8] sm:$0xff]
    %v420 = vld [vmem:[#allocation5 + $0x5d0] sm:$0xff]
    %v421 = vld [vmem:[#allocation5 + $0x5d8] sm:$0xff]
    %v422 = vld [vmem:[#allocation5 + $0x5e0] sm:$0xff]
    %v423 = vld [vmem:[#allocation5 + $0x5e8] sm:$0xff]
    %v424 = vld [vmem:[#allocation5 + $0x5f0] sm:$0xff]
    %v425 = vld [vmem:[#allocation5 + $0x5f8] sm:$0xff]
    %v426 = vld [vmem:[#allocation5 + $0x600] sm:$0xff]
    %v427 = vld [vmem:[#allocation5 + $0x608] sm:$0xff]
    %v428 = vld [vmem:[#allocation5 + $0x610] sm:$0xff]
    %v429 = vld [vmem:[#allocation5 + $0x618] sm:$0xff]
    %v430 = vld [vmem:[#allocation5 + $0x620] sm:$0xff]
    %v431 = vld [vmem:[#allocation5 + $0x628] sm:$0xff]
    %v432 = vld [vmem:[#allocation5 + $0x630] sm:$0xff]
    %v433 = vld [vmem:[#allocation5 + $0x638] sm:$0xff]
    %v434 = vld [vmem:[#allocation5 + $0x640] sm:$0xff]
    %v435 = vld [vmem:[#allocation5 + $0x648] sm:$0xff]
    %v436 = vld [vmem:[#allocation5 + $0x650] sm:$0xff]
    %v437 = vld [vmem:[#allocation5 + $0x658] sm:$0xff]
    %v438 = vld [vmem:[#allocation5 + $0x660] sm:$0xff]
    %v439 = vld [vmem:[#allocation5 + $0x668] sm:$0xff]
    %v440 = vld [vmem:[#allocation5 + $0x670] sm:$0xff]
    %v441 = vld [vmem:[#allocation5 + $0x678] sm:$0xff]
    %v442 = vld [vmem:[#allocation5 + $0x680] sm:$0xff]
    %v443 = vld [vmem:[#allocation5 + $0x688] sm:$0xff]
    %v444 = vld [vmem:[#allocation5 + $0x690] sm:$0xff]
    %v445 = vld [vmem:[#allocation5 + $0x698] sm:$0xff]
    %v446 = vld [vmem:[#allocation5 + $0x6a0] sm:$0xff]
    %v447 = vld [vmem:[#allocation5 + $0x6a8] sm:$0xff]
    %v448 = vld [vmem:[#allocation5 + $0x6b0] sm:$0xff]
    %v449 = vld [vmem:[#allocation5 + $0x6b8] sm:$0xff]
    %v450 = vld [vmem:[#allocation5 + $0x6c0] sm:$0xff]
    %v451 = vld [vmem:[#allocation5 + $0x6c8] sm:$0xff]
    %v452 = vld [vmem:[#allocation5 + $0x6d0] sm:$0xff]
    %v453 = vld [vmem:[#allocation5 + $0x6d8] sm:$0xff]
    %v454 = vld [vmem:[#allocation5 + $0x6e0] sm:$0xff]
    %v455 = vld [vmem:[#allocation5 + $0x6e8] sm:$0xff]
    %v456 = vld [vmem:[#allocation5 + $0x6f0] sm:$0xff]
    %v457 = vld [vmem:[#allocation5 + $0x6f8] sm:$0xff]
    %v458 = vld [vmem:[#allocation5 + $0x700] sm:$0xff]
    %v459 = vld [vmem:[#allocation5 + $0x708] sm:$0xff]
    %v460 = vld [vmem:[#allocation5 + $0x710] sm:$0xff]
    %v461 = vld [vmem:[#allocation5 + $0x718] sm:$0xff]
    %v462 = vld [vmem:[#allocation5 + $0x720] sm:$0xff]
    %v463 = vld [vmem:[#allocation5 + $0x728] sm:$0xff]
    %v464 = vld [vmem:[#allocation5 + $0x730] sm:$0xff]
    %v465 = vld [vmem:[#allocation5 + $0x738] sm:$0xff]
    %v466 = vld [vmem:[#allocation5 + $0x740] sm:$0xff]
    %v467 = vld [vmem:[#allocation5 + $0x748] sm:$0xff]
    %v468 = vld [vmem:[#allocation5 + $0x750] sm:$0xff]
    %v469 = vld [vmem:[#allocation5 + $0x758] sm:$0xff]
    %v470 = vld [vmem:[#allocation5 + $0x760] sm:$0xff]
    %v471 = vld [vmem:[#allocation5 + $0x768] sm:$0xff]
    %v472 = vld [vmem:[#allocation5 + $0x770] sm:$0xff]
    %v473 = vld [vmem:[#allocation5 + $0x778] sm:$0xff]
    %v474 = vld [vmem:[#allocation5 + $0x780] sm:$0xff]
    %v475 = vld [vmem:[#allocation5 + $0x788] sm:$0xff]
    %v476 = vld [vmem:[#allocation5 + $0x790] sm:$0xff]
    %v477 = vld [vmem:[#allocation5 + $0x798] sm:$0xff]
    %v478 = vld [vmem:[#allocation5 + $0x7a0] sm:$0xff]
    %v479 = vld [vmem:[#allocation5 + $0x7a8] sm:$0xff]
    %v480 = vld [vmem:[#allocation5 + $0x7b0] sm:$0xff]
    %v481 = vld [vmem:[#allocation5 + $0x7b8] sm:$0xff]
    %v482 = vld [vmem:[#allocation5 + $0x7c0] sm:$0xff]
    %v483 = vld [vmem:[#allocation5 + $0x7c8] sm:$0xff]
    %v484 = vld [vmem:[#allocation5 + $0x7d0] sm:$0xff]
    %v485 = vld [vmem:[#allocation5 + $0x7d8] sm:$0xff]
    %v486 = vld [vmem:[#allocation5 + $0x7e0] sm:$0xff]
    %v487 = vld [vmem:[#allocation5 + $0x7e8] sm:$0xff]
    %v488 = vld [vmem:[#allocation5 + $0x7f0] sm:$0xff]
    %v489 = vld [vmem:[#allocation5 + $0x7f8] sm:$0xff]
    %v490 = vld [vmem:[#allocation5 + $0x800] sm:$0xff]
    %v491 = vld [vmem:[#allocation5 + $0x808] sm:$0xff]
    %v492 = vld [vmem:[#allocation5 + $0x810] sm:$0xff]
    %v493 = vld [vmem:[#allocation5 + $0x818] sm:$0xff]
    %v494 = vld [vmem:[#allocation5 + $0x820] sm:$0xff]
    %v495 = vld [vmem:[#allocation5 + $0x828] sm:$0xff]
    %v496 = vld [vmem:[#allocation5 + $0x830] sm:$0xff]
    %v497 = vld [vmem:[#allocation5 + $0x838] sm:$0xff]
    %v498 = vld [vmem:[#allocation5 + $0x840] sm:$0xff]
    %v499 = vld [vmem:[#allocation5 + $0x848] sm:$0xff]
    %v500 = vld [vmem:[#allocation5 + $0x850] sm:$0xff]
    %v501 = vld [vmem:[#allocation5 + $0x858] sm:$0xff]
    %v502 = vld [vmem:[#allocation5 + $0x860] sm:$0xff]
    %v503 = vld [vmem:[#allocation5 + $0x868] sm:$0xff]
    %v504 = vld [vmem:[#allocation5 + $0x870] sm:$0xff]
    %v505 = vld [vmem:[#allocation5 + $0x878] sm:$0xff]
    %v506 = vld [vmem:[#allocation5 + $0x880] sm:$0xff]
    %v507 = vld [vmem:[#allocation5 + $0x888] sm:$0xff]
    %v508 = vld [vmem:[#allocation5 + $0x890] sm:$0xff]
    %v509 = vld [vmem:[#allocation5 + $0x898] sm:$0xff]
    %v510 = vld [vmem:[#allocation5 + $0x8a0] sm:$0xff]
    %v511 = vld [vmem:[#allocation5 + $0x8a8] sm:$0xff]
    %v512 = vld [vmem:[#allocation5 + $0x8b0] sm:$0xff]
    %v513 = vld [vmem:[#allocation5 + $0x8b8] sm:$0xff]
    %v514 = vld [vmem:[#allocation5 + $0x8c0] sm:$0xff]
    %v515 = vld [vmem:[#allocation5 + $0x8c8] sm:$0xff]
    %v516 = vld [vmem:[#allocation5 + $0x8d0] sm:$0xff]
    %v517 = vld [vmem:[#allocation5 + $0x8d8] sm:$0xff]
    %v518 = vld [vmem:[#allocation5 + $0x8e0] sm:$0xff]
    %v519 = vld [vmem:[#allocation5 + $0x8e8] sm:$0xff]
    %v520 = vld [vmem:[#allocation5 + $0x8f0] sm:$0xff]
    %v521 = vld [vmem:[#allocation5 + $0x8f8] sm:$0xff]
    %v522 = vld [vmem:[#allocation5 + $0x900] sm:$0xff]
    %v523 = vld [vmem:[#allocation5 + $0x908] sm:$0xff]
    %v524 = vld [vmem:[#allocation5 + $0x910] sm:$0xff]
    %v525 = vld [vmem:[#allocation5 + $0x918] sm:$0xff]
    %v526 = vld [vmem:[#allocation5 + $0x920] sm:$0xff]
    %v527 = vld [vmem:[#allocation5 + $0x928] sm:$0xff]
    %v528 = vld [vmem:[#allocation5 + $0x930] sm:$0xff]
    %v529 = vld [vmem:[#allocation5 + $0x938] sm:$0xff]
    %v530 = vld [vmem:[#allocation5 + $0x940] sm:$0xff]
    %v531 = vld [vmem:[#allocation5 + $0x948] sm:$0xff]
    %v532 = vld [vmem:[#allocation5 + $0x950] sm:$0xff]
    %v533 = vld [vmem:[#allocation5 + $0x958] sm:$0xff]
    %v534 = vld [vmem:[#allocation5 + $0x960] sm:$0xff]
    %v535 = vld [vmem:[#allocation5 + $0x968] sm:$0xff]
    %v536 = vld [vmem:[#allocation5 + $0x970] sm:$0xff]
    %v537 = vld [vmem:[#allocation5 + $0x978] sm:$0xff]
    %v538 = vld [vmem:[#allocation5 + $0x980] sm:$0xff]
    %v539 = vld [vmem:[#allocation5 + $0x988] sm:$0xff]
    %v540 = vld [vmem:[#allocation5 + $0x990] sm:$0xff]
    %v541 = vld [vmem:[#allocation5 + $0x998] sm:$0xff]
    %v542 = vld [vmem:[#allocation5 + $0x9a0] sm:$0xff]
    %v543 = vld [vmem:[#allocation5 + $0x9a8] sm:$0xff]
    %v544 = vld [vmem:[#allocation5 + $0x9b0] sm:$0xff]
    %v545 = vld [vmem:[#allocation5 + $0x9b8] sm:$0xff]
    %v546 = vld [vmem:[#allocation5 + $0x9c0] sm:$0xff]
    %v547 = vld [vmem:[#allocation5 + $0x9c8] sm:$0xff]
    %v548 = vld [vmem:[#allocation5 + $0x9d0] sm:$0xff]
    %v549 = vld [vmem:[#allocation5 + $0x9d8] sm:$0xff]
    %v550 = vld [vmem:[#allocation5 + $0x9e0] sm:$0xff]
    %v551 = vld [vmem:[#allocation5 + $0x9e8] sm:$0xff]
    %v552 = vld [vmem:[#allocation5 + $0x9f0] sm:$0xff]
    %v553 = vld [vmem:[#allocation5 + $0x9f8] sm:$0xff]
    %v554 = vld [vmem:[#allocation5 + $0xa00] sm:$0xff]
    %v555 = vld [vmem:[#allocation5 + $0xa08] sm:$0xff]
    %v556 = vld [vmem:[#allocation5 + $0xa10] sm:$0xff]
    %v557 = vld [vmem:[#allocation5 + $0xa18] sm:$0xff]
    %v558 = vld [vmem:[#allocation5 + $0xa20] sm:$0xff]
    %v559 = vld [vmem:[#allocation5 + $0xa28] sm:$0xff]
    %v560 = vld [vmem:[#allocation5 + $0xa30] sm:$0xff]
    %v561 = vld [vmem:[#allocation5 + $0xa38] sm:$0xff]
    %v562 = vld [vmem:[#allocation5 + $0xa40] sm:$0xff]
    %v563 = vld [vmem:[#allocation5 + $0xa48] sm:$0xff]
    %v564 = vld [vmem:[#allocation5 + $0xa50] sm:$0xff]
    %v565 = vld [vmem:[#allocation5 + $0xa58] sm:$0xff]
    %v566 = vld [vmem:[#allocation5 + $0xa60] sm:$0xff]
    %v567 = vld [vmem:[#allocation5 + $0xa68] sm:$0xff]
    %v568 = vld [vmem:[#allocation5 + $0xa70] sm:$0xff]
    %v569 = vld [vmem:[#allocation5 + $0xa78] sm:$0xff]
    %v570 = vld [vmem:[#allocation5 + $0xa80] sm:$0xff]
    %v571 = vld [vmem:[#allocation5 + $0xa88] sm:$0xff]
    %v572 = vld [vmem:[#allocation5 + $0xa90] sm:$0xff]
    %v573 = vld [vmem:[#allocation5 + $0xa98] sm:$0xff]
    %v574 = vld [vmem:[#allocation5 + $0xaa0] sm:$0xff]
    %v575 = vld [vmem:[#allocation5 + $0xaa8] sm:$0xff]
    %v576 = vld [vmem:[#allocation5 + $0xab0] sm:$0xff]
    %v577 = vld [vmem:[#allocation5 + $0xab8] sm:$0xff]
    %v578 = vld [vmem:[#allocation5 + $0xac0] sm:$0xff]
    %v579 = vld [vmem:[#allocation5 + $0xac8] sm:$0xff]
    %v580 = vld [vmem:[#allocation5 + $0xad0] sm:$0xff]
    %v581 = vld [vmem:[#allocation5 + $0xad8] sm:$0xff]
    %v582 = vld [vmem:[#allocation5 + $0xae0] sm:$0xff]
    %v583 = vld [vmem:[#allocation5 + $0xae8] sm:$0xff]
    %v584 = vld [vmem:[#allocation5 + $0xaf0] sm:$0xff]
    %v585 = vld [vmem:[#allocation5 + $0xaf8] sm:$0xff]
    %v586 = vld [vmem:[#allocation5 + $0xb00] sm:$0xff]
    %v587 = vld [vmem:[#allocation5 + $0xb08] sm:$0xff]
    %v588 = vld [vmem:[#allocation5 + $0xb10] sm:$0xff]
    %v589 = vld [vmem:[#allocation5 + $0xb18] sm:$0xff]
    %v590 = vld [vmem:[#allocation5 + $0xb20] sm:$0xff]
    %v591 = vld [vmem:[#allocation5 + $0xb28] sm:$0xff]
    %v592 = vld [vmem:[#allocation5 + $0xb30] sm:$0xff]
    %v593 = vld [vmem:[#allocation5 + $0xb38] sm:$0xff]
    %v594 = vld [vmem:[#allocation5 + $0xb40] sm:$0xff]
    %v595 = vld [vmem:[#allocation5 + $0xb48] sm:$0xff]
    %v596 = vld [vmem:[#allocation5 + $0xb50] sm:$0xff]
    %v597 = vld [vmem:[#allocation5 + $0xb58] sm:$0xff]
    %v598 = vld [vmem:[#allocation5 + $0xb60] sm:$0xff]
    %v599 = vld [vmem:[#allocation5 + $0xb68] sm:$0xff]
    %v600 = vld [vmem:[#allocation5 + $0xb70] sm:$0xff]
    %v601 = vld [vmem:[#allocation5 + $0xb78] sm:$0xff]
    %v602 = vld [vmem:[#allocation5 + $0xb80] sm:$0xff]
    %v603 = vld [vmem:[#allocation5 + $0xb88] sm:$0xff]
    %v604 = vld [vmem:[#allocation5 + $0xb90] sm:$0xff]
    %v605 = vld [vmem:[#allocation5 + $0xb98] sm:$0xff]
    %v606 = vld [vmem:[#allocation5 + $0xba0] sm:$0xff]
    %v607 = vld [vmem:[#allocation5 + $0xba8] sm:$0xff]
    %v608 = vld [vmem:[#allocation5 + $0xbb0] sm:$0xff]
    %v609 = vld [vmem:[#allocation5 + $0xbb8] sm:$0xff]
    %v610 = vld [vmem:[#allocation5 + $0xbc0] sm:$0xff]
    %v611 = vld [vmem:[#allocation5 + $0xbc8] sm:$0xff]
    %v612 = vld [vmem:[#allocation5 + $0xbd0] sm:$0xff]
    %v613 = vld [vmem:[#allocation5 + $0xbd8] sm:$0xff]
    %v614 = vld [vmem:[#allocation5 + $0xbe0] sm:$0xff]
    %v615 = vld [vmem:[#allocation5 + $0xbe8] sm:$0xff]
    %v616 = vld [vmem:[#allocation5 + $0xbf0] sm:$0xff]
    %v617 = vld [vmem:[#allocation5 + $0xbf8] sm:$0xff]
    %v618 = vld [vmem:[#allocation5 + $0xc00] sm:$0xff]
    %v619 = vld [vmem:[#allocation5 + $0xc08] sm:$0xff]
    %v620 = vld [vmem:[#allocation5 + $0xc10] sm:$0xff]
    %v621 = vld [vmem:[#allocation5 + $0xc18] sm:$0xff]
    %v622 = vld [vmem:[#allocation5 + $0xc20] sm:$0xff]
    %v623 = vld [vmem:[#allocation5 + $0xc28] sm:$0xff]
    %v624 = vld [vmem:[#allocation5 + $0xc30] sm:$0xff]
    %v625 = vld [vmem:[#allocation5 + $0xc38] sm:$0xff]
    %v626 = vld [vmem:[#allocation5 + $0xc40] sm:$0xff]
    %v627 = vld [vmem:[#allocation5 + $0xc48] sm:$0xff]
    %v628 = vld [vmem:[#allocation5 + $0xc50] sm:$0xff]
    %v629 = vld [vmem:[#allocation5 + $0xc58] sm:$0xff]
    %v630 = vld [vmem:[#allocation5 + $0xc60] sm:$0xff]
    %v631 = vld [vmem:[#allocation5 + $0xc68] sm:$0xff]
    %v632 = vld [vmem:[#allocation5 + $0xc70] sm:$0xff]
    %v633 = vld [vmem:[#allocation5 + $0xc78] sm:$0xff]
    %v634 = vld [vmem:[#allocation5 + $0xc80] sm:$0xff]
    %v635 = vld [vmem:[#allocation5 + $0xc88] sm:$0xff]
    %v636 = vld [vmem:[#allocation5 + $0xc90] sm:$0xff]
    %v637 = vld [vmem:[#allocation5 + $0xc98] sm:$0xff]
    %v638 = vld [vmem:[#allocation5 + $0xca0] sm:$0xff]
    %v639 = vld [vmem:[#allocation5 + $0xca8] sm:$0xff]
    %v640 = vld [vmem:[#allocation5 + $0xcb0] sm:$0xff]
    %v641 = vld [vmem:[#allocation5 + $0xcb8] sm:$0xff]
    %v642 = vld [vmem:[#allocation5 + $0xcc0] sm:$0xff]
    %v643 = vld [vmem:[#allocation5 + $0xcc8] sm:$0xff]
    %v644 = vld [vmem:[#allocation5 + $0xcd0] sm:$0xff]
    %v645 = vld [vmem:[#allocation5 + $0xcd8] sm:$0xff]
    %v646 = vld [vmem:[#allocation5 + $0xce0] sm:$0xff]
    %v647 = vld [vmem:[#allocation5 + $0xce8] sm:$0xff]
    %v648 = vld [vmem:[#allocation5 + $0xcf0] sm:$0xff]
    %v649 = vld [vmem:[#allocation5 + $0xcf8] sm:$0xff]
    %v650 = vld [vmem:[#allocation5 + $0xd00] sm:$0xff]
    %v651 = vld [vmem:[#allocation5 + $0xd08] sm:$0xff]
    %v652 = vld [vmem:[#allocation5 + $0xd10] sm:$0xff]
    %v653 = vld [vmem:[#allocation5 + $0xd18] sm:$0xff]
    %v654 = vld [vmem:[#allocation5 + $0xd20] sm:$0xff]
    %v655 = vld [vmem:[#allocation5 + $0xd28] sm:$0xff]
    %v656 = vld [vmem:[#allocation5 + $0xd30] sm:$0xff]
    %v657 = vld [vmem:[#allocation5 + $0xd38] sm:$0xff]
    %v658 = vld [vmem:[#allocation5 + $0xd40] sm:$0xff]
    %v659 = vld [vmem:[#allocation5 + $0xd48] sm:$0xff]
    %v660 = vld [vmem:[#allocation5 + $0xd50] sm:$0xff]
    %v661 = vld [vmem:[#allocation5 + $0xd58] sm:$0xff]
    %v662 = vld [vmem:[#allocation5 + $0xd60] sm:$0xff]
    %v663 = vld [vmem:[#allocation5 + $0xd68] sm:$0xff]
    %v664 = vld [vmem:[#allocation5 + $0xd70] sm:$0xff]
    %v665 = vld [vmem:[#allocation5 + $0xd78] sm:$0xff]
    %v666 = vld [vmem:[#allocation5 + $0xd80] sm:$0xff]
    %v667 = vld [vmem:[#allocation5 + $0xd88] sm:$0xff]
    %v668 = vld [vmem:[#allocation5 + $0xd90] sm:$0xff]
    %v669 = vld [vmem:[#allocation5 + $0xd98] sm:$0xff]
    %v670 = vld [vmem:[#allocation5 + $0xda0] sm:$0xff]
    %v671 = vld [vmem:[#allocation5 + $0xda8] sm:$0xff]
    %v672 = vld [vmem:[#allocation5 + $0xdb0] sm:$0xff]
    %v673 = vld [vmem:[#allocation5 + $0xdb8] sm:$0xff]
    %v674 = vld [vmem:[#allocation5 + $0xdc0] sm:$0xff]
    %v675 = vld [vmem:[#allocation5 + $0xdc8] sm:$0xff]
    %v676 = vld [vmem:[#allocation5 + $0xdd0] sm:$0xff]
    %v677 = vld [vmem:[#allocation5 + $0xdd8] sm:$0xff]
    %v678 = vld [vmem:[#allocation5 + $0xde0] sm:$0xff]
    %v679 = vld [vmem:[#allocation5 + $0xde8] sm:$0xff]
    %v680 = vld [vmem:[#allocation5 + $0xdf0] sm:$0xff]
    %v681 = vld [vmem:[#allocation5 + $0xdf8] sm:$0xff]
    %v682 = vld [vmem:[#allocation5 + $0xe00] sm:$0xff]
    %v683 = vld [vmem:[#allocation5 + $0xe08] sm:$0xff]
    %v684 = vld [vmem:[#allocation5 + $0xe10] sm:$0xff]
    %v685 = vld [vmem:[#allocation5 + $0xe18] sm:$0xff]
    %v686 = vld [vmem:[#allocation5 + $0xe20] sm:$0xff]
    %v687 = vld [vmem:[#allocation5 + $0xe28] sm:$0xff]
    %v688 = vld [vmem:[#allocation5 + $0xe30] sm:$0xff]
    %v689 = vld [vmem:[#allocation5 + $0xe38] sm:$0xff]
    %v690 = vld [vmem:[#allocation5 + $0xe40] sm:$0xff]
    %v691 = vld [vmem:[#allocation5 + $0xe48] sm:$0xff]
    %v692 = vld [vmem:[#allocation5 + $0xe50] sm:$0xff]
    %v693 = vld [vmem:[#allocation5 + $0xe58] sm:$0xff]
    %v694 = vld [vmem:[#allocation5 + $0xe60] sm:$0xff]
    %v695 = vld [vmem:[#allocation5 + $0xe68] sm:$0xff]
    %v696 = vld [vmem:[#allocation5 + $0xe70] sm:$0xff]
    %v697 = vld [vmem:[#allocation5 + $0xe78] sm:$0xff]
    %v698 = vld [vmem:[#allocation5 + $0xe80] sm:$0xff]
    %v699 = vld [vmem:[#allocation5 + $0xe88] sm:$0xff]
    %v700 = vld [vmem:[#allocation5 + $0xe90] sm:$0xff]
    %v701 = vld [vmem:[#allocation5 + $0xe98] sm:$0xff]
    %v702 = vld [vmem:[#allocation5 + $0xea0] sm:$0xff]
    %v703 = vld [vmem:[#allocation5 + $0xea8] sm:$0xff]
    %v704 = vld [vmem:[#allocation5 + $0xeb0] sm:$0xff]
    %v705 = vld [vmem:[#allocation5 + $0xeb8] sm:$0xff]
    %v706 = vld [vmem:[#allocation5 + $0xec0] sm:$0xff]
    %v707 = vld [vmem:[#allocation5 + $0xec8] sm:$0xff]
    %v708 = vld [vmem:[#allocation5 + $0xed0] sm:$0xff]
    %v709 = vld [vmem:[#allocation5 + $0xed8] sm:$0xff]
    %v710 = vld [vmem:[#allocation5 + $0xee0] sm:$0xff]
    %v711 = vld [vmem:[#allocation5 + $0xee8] sm:$0xff]
    %v712 = vld [vmem:[#allocation5 + $0xef0] sm:$0xff]
    %v713 = vld [vmem:[#allocation5 + $0xef8] sm:$0xff]
    %v714 = vld [vmem:[#allocation5 + $0xf00] sm:$0xff]
    %v715 = vld [vmem:[#allocation5 + $0xf08] sm:$0xff]
    %v716 = vld [vmem:[#allocation5 + $0xf10] sm:$0xff]
    %v717 = vld [vmem:[#allocation5 + $0xf18] sm:$0xff]
    %v718 = vld [vmem:[#allocation5 + $0xf20] sm:$0xff]
    %v719 = vld [vmem:[#allocation5 + $0xf28] sm:$0xff]
    %v720 = vld [vmem:[#allocation5 + $0xf30] sm:$0xff]
    %v721 = vld [vmem:[#allocation5 + $0xf38] sm:$0xff]
    %v722 = vld [vmem:[#allocation5 + $0xf40] sm:$0xff]
    %v723 = vld [vmem:[#allocation5 + $0xf48] sm:$0xff]
    %v724 = vld [vmem:[#allocation5 + $0xf50] sm:$0xff]
    %v725 = vld [vmem:[#allocation5 + $0xf58] sm:$0xff]
    %v726 = vld [vmem:[#allocation5 + $0xf60] sm:$0xff]
    %v727 = vld [vmem:[#allocation5 + $0xf68] sm:$0xff]
    %v728 = vld [vmem:[#allocation5 + $0xf70] sm:$0xff]
    %v729 = vld [vmem:[#allocation5 + $0xf78] sm:$0xff]
    %v730 = vld [vmem:[#allocation5 + $0xf80] sm:$0xff]
    %v731 = vld [vmem:[#allocation5 + $0xf88] sm:$0xff]
    %v732 = vld [vmem:[#allocation5 + $0xf90] sm:$0xff]
    %v733 = vld [vmem:[#allocation5 + $0xf98] sm:$0xff]
    %v734 = vld [vmem:[#allocation5 + $0xfa0] sm:$0xff]
    %v735 = vld [vmem:[#allocation5 + $0xfa8] sm:$0xff]
    %v736 = vld [vmem:[#allocation5 + $0xfb0] sm:$0xff]
    %v737 = vld [vmem:[#allocation5 + $0xfb8] sm:$0xff]
    %v738 = vld [vmem:[#allocation5 + $0xfc0] sm:$0xff]
    %v739 = vld [vmem:[#allocation5 + $0xfc8] sm:$0xff]
    %v740 = vld [vmem:[#allocation5 + $0xfd0] sm:$0xff]
    %v741 = vld [vmem:[#allocation5 + $0xfd8] sm:$0xff]
    %v742 = vld [vmem:[#allocation5 + $0xfe0] sm:$0xff]
    %v743 = vld [vmem:[#allocation5 + $0xfe8] sm:$0xff]
    %v744 = vld [vmem:[#allocation5 + $0xff0] sm:$0xff]
    %v745 = vld [vmem:[#allocation5 + $0xff8] sm:$0xff]
    %v748 = vcombine.high %v232, %v232
    %v750 = vunpack.c.l.s4 1983009808
    %v751 = vunpack.c.0.s8 %v750
    %v752 = vlaneseq
    %v753 = vshrl.u32 %v752, 7
    %v754 = vsub.s32 %v751, %v753
    %v755 = vrot.slane %v232, %v754
    %v757 = vunpack.c.l.s4 1983009808
    %v758 = vunpack.c.0.s8 %v757
    %v759 = vlaneseq
    %v760 = vshrl.u32 %v759, 7
    %v761 = vsub.s32 %v758, %v760
    %v762 = vrot.slane %v748, %v761
    %v763 = vcombine.high %v755, %v755
    %v764 = vcombine.high %v762, %v762
    %v765 = vcombine.high %v233, %v233
    %v767 = vunpack.c.l.s4 1983009808
    %v768 = vunpack.c.0.s8 %v767
    %v769 = vlaneseq
    %v770 = vshrl.u32 %v769, 7
    %v771 = vsub.s32 %v768, %v770
    %v772 = vrot.slane %v233, %v771
    %v774 = vunpack.c.l.s4 1983009808
    %v775 = vunpack.c.0.s8 %v774
    %v776 = vlaneseq
    %v777 = vshrl.u32 %v776, 7
    %v778 = vsub.s32 %v775, %v777
    %v779 = vrot.slane %v765, %v778
    %v780 = vcombine.high %v772, %v772
    %v781 = vcombine.high %v779, %v779
    %790 = vmatprep.subr.mxu0 %v235
    %791 = vmatpush1.msra.mxu0 %v234
    %792 = vmatprep.subr.mxu0 %v239
    %793 = vmatpush1.msra.mxu0 %v238
    %794 = vmatprep.subr.mxu0 %v243
    %795 = vmatpush1.msra.mxu0 %v242
    %796 = vmatprep.subr.mxu0 %v247
    %797 = vmatpush1.msra.mxu0 %v246
    %798 = vmatprep.subr.mxu0 %v251
    %799 = vmatpush1.msra.mxu0 %v250
    %800 = vmatprep.subr.mxu0 %v255
    %801 = vmatpush1.msra.mxu0 %v254
    %802 = vmatprep.subr.mxu0 %v259
    %803 = vmatpush1.msra.mxu0 %v258
    %804 = vmatprep.subr.mxu0 %v263
    %805 = vmatpush1.msra.mxu0 %v262
    %806 = vmatprep.subr.mxu0 %v267
    %807 = vmatpush1.msra.mxu0 %v266
    %808 = vmatprep.subr.mxu0 %v271
    %809 = vmatpush1.msra.mxu0 %v270
    %810 = vmatprep.subr.mxu0 %v275
    %811 = vmatpush1.msra.mxu0 %v274
    %812 = vmatprep.subr.mxu0 %v279
    %813 = vmatpush1.msra.mxu0 %v278
    %814 = vmatprep.subr.mxu0 %v283
    %815 = vmatpush1.msra.mxu0 %v282
    %816 = vmatprep.subr.mxu0 %v287
    %817 = vmatpush1.msra.mxu0 %v286
    %818 = vmatprep.subr.mxu0 %v291
    %819 = vmatpush1.msra.mxu0 %v290
    %820 = vmatprep.subr.mxu0 %v295
    %821 = vmatpush1.msra.mxu0 %v294
    %822 = vmatprep.subr.mxu0 %v299
    %823 = vmatpush1.msra.mxu0 %v298
    %824 = vmatprep.subr.mxu0 %v303
    %825 = vmatpush1.msra.mxu0 %v302
    %826 = vmatprep.subr.mxu0 %v307
    %827 = vmatpush1.msra.mxu0 %v306
    %828 = vmatprep.subr.mxu0 %v311
    %829 = vmatpush1.msra.mxu0 %v310
    %830 = vmatprep.subr.mxu0 %v315
    %831 = vmatpush1.msra.mxu0 %v314
    %832 = vmatprep.subr.mxu0 %v319
    %833 = vmatpush1.msra.mxu0 %v318
    %834 = vmatprep.subr.mxu0 %v323
    %835 = vmatpush1.msra.mxu0 %v322
    %836 = vmatprep.subr.mxu0 %v327
    %837 = vmatpush1.msra.mxu0 %v326
    %838 = vmatprep.subr.mxu0 %v331
    %839 = vmatpush1.msra.mxu0 %v330
    %840 = vmatprep.subr.mxu0 %v335
    %841 = vmatpush1.msra.mxu0 %v334
    %842 = vmatprep.subr.mxu0 %v339
    %843 = vmatpush1.msra.mxu0 %v338
    %844 = vmatprep.subr.mxu0 %v343
    %845 = vmatpush1.msra.mxu0 %v342
    %846 = vmatprep.subr.mxu0 %v347
    %847 = vmatpush1.msra.mxu0 %v346
    %848 = vmatprep.subr.mxu0 %v351
    %849 = vmatpush1.msra.mxu0 %v350
    %850 = vmatprep.subr.mxu0 %v355
    %851 = vmatpush1.msra.mxu0 %v354
    %852 = vmatprep.subr.mxu0 %v359
    %853 = vmatpush1.msra.mxu0 %v358
    %854 = vmatprep.mubr.f32.mxu0 %v763
    %855 = vmatmul.mubr.f32.gmra.mrb[0].mxu0 %v755
    %v856 = vpop.f32.mrb[0].mxu0
    %v857 = vadd.f32 0.0, %v856
    %v858 = vpop.f32.mrb[0].mxu0
    %v859 = vadd.f32 0.0, %v858
    %860 = vdwg.mxu0
    %861 = vmatprep.subr.mxu0 %v363
    %862 = vmatpush1.msra.mxu0 %v362
    %863 = vmatprep.subr.mxu0 %v367
    %864 = vmatpush1.msra.mxu0 %v366
    %865 = vmatprep.subr.mxu0 %v371
    %866 = vmatpush1.msra.mxu0 %v370
    %867 = vmatprep.subr.mxu0 %v375
    %868 = vmatpush1.msra.mxu0 %v374
    %869 = vmatprep.subr.mxu0 %v379
    %870 = vmatpush1.msra.mxu0 %v378
    %871 = vmatprep.subr.mxu0 %v383
    %872 = vmatpush1.msra.mxu0 %v382
    %873 = vmatprep.subr.mxu0 %v387
    %874 = vmatpush1.msra.mxu0 %v386
    %875 = vmatprep.subr.mxu0 %v391
    %876 = vmatpush1.msra.mxu0 %v390
    %877 = vmatprep.subr.mxu0 %v395
    %878 = vmatpush1.msra.mxu0 %v394
    %879 = vmatprep.subr.mxu0 %v399
    %880 = vmatpush1.msra.mxu0 %v398
    %881 = vmatprep.subr.mxu0 %v403
    %882 = vmatpush1.msra.mxu0 %v402
    %883 = vmatprep.subr.mxu0 %v407
    %884 = vmatpush1.msra.mxu0 %v406
    %885 = vmatprep.subr.mxu0 %v411
    %886 = vmatpush1.msra.mxu0 %v410
    %887 = vmatprep.subr.mxu0 %v415
    %888 = vmatpush1.msra.mxu0 %v414
    %889 = vmatprep.subr.mxu0 %v419
    %890 = vmatpush1.msra.mxu0 %v418
    %891 = vmatprep.subr.mxu0 %v423
    %892 = vmatpush1.msra.mxu0 %v422
    %893 = vmatprep.subr.mxu0 %v427
    %894 = vmatpush1.msra.mxu0 %v426
    %895 = vmatprep.subr.mxu0 %v431
    %896 = vmatpush1.msra.mxu0 %v430
    %897 = vmatprep.subr.mxu0 %v435
    %898 = vmatpush1.msra.mxu0 %v434
    %899 = vmatprep.subr.mxu0 %v439
    %900 = vmatpush1.msra.mxu0 %v438
    %901 = vmatprep.subr.mxu0 %v443
    %902 = vmatpush1.msra.mxu0 %v442
    %903 = vmatprep.subr.mxu0 %v447
    %904 = vmatpush1.msra.mxu0 %v446
    %905 = vmatprep.subr.mxu0 %v451
    %906 = vmatpush1.msra.mxu0 %v450
    %907 = vmatprep.subr.mxu0 %v455
    %908 = vmatpush1.msra.mxu0 %v454
    %909 = vmatprep.subr.mxu0 %v459
    %910 = vmatpush1.msra.mxu0 %v458
    %911 = vmatprep.subr.mxu0 %v463
    %912 = vmatpush1.msra.mxu0 %v462
    %913 = vmatprep.subr.mxu0 %v467
    %914 = vmatpush1.msra.mxu0 %v466
    %915 = vmatprep.subr.mxu0 %v471
    %916 = vmatpush1.msra.mxu0 %v470
    %917 = vmatprep.subr.mxu0 %v475
    %918 = vmatpush1.msra.mxu0 %v474
    %919 = vmatprep.subr.mxu0 %v479
    %920 = vmatpush1.msra.mxu0 %v478
    %921 = vmatprep.subr.mxu0 %v483
    %922 = vmatpush1.msra.mxu0 %v482
    %923 = vmatprep.subr.mxu0 %v487
    %924 = vmatpush1.msra.mxu0 %v486
    %925 = vmatprep.mubr.f32.mxu0 %v764
    %926 = vmatmul.mubr.f32.gmra.mrb[0].mxu0 %v762
    %v927 = vpop.f32.mrb[0].mxu0
    %v928 = vadd.f32 %v857, %v927
    %v929 = vpop.f32.mrb[0].mxu0
    %v930 = vadd.f32 %v859, %v929
    %931 = vdwg.mxu0
    %932 = vmatprep.subr.mxu0 %v491
    %933 = vmatpush1.msra.mxu0 %v490
    %934 = vmatprep.subr.mxu0 %v495
    %935 = vmatpush1.msra.mxu0 %v494
    %936 = vmatprep.subr.mxu0 %v499
    %937 = vmatpush1.msra.mxu0 %v498
    %938 = vmatprep.subr.mxu0 %v503
    %939 = vmatpush1.msra.mxu0 %v502
    %940 = vmatprep.subr.mxu0 %v507
    %941 = vmatpush1.msra.mxu0 %v506
    %942 = vmatprep.subr.mxu0 %v511
    %943 = vmatpush1.msra.mxu0 %v510
    %944 = vmatprep.subr.mxu0 %v515
    %945 = vmatpush1.msra.mxu0 %v514
    %946 = vmatprep.subr.mxu0 %v519
    %947 = vmatpush1.msra.mxu0 %v518
    %948 = vmatprep.subr.mxu0 %v523
    %949 = vmatpush1.msra.mxu0 %v522
    %950 = vmatprep.subr.mxu0 %v527
    %951 = vmatpush1.msra.mxu0 %v526
    %952 = vmatprep.subr.mxu0 %v531
    %953 = vmatpush1.msra.mxu0 %v530
    %954 = vmatprep.subr.mxu0 %v535
    %955 = vmatpush1.msra.mxu0 %v534
    %956 = vmatprep.subr.mxu0 %v539
    %957 = vmatpush1.msra.mxu0 %v538
    %958 = vmatprep.subr.mxu0 %v543
    %959 = vmatpush1.msra.mxu0 %v542
    %960 = vmatprep.subr.mxu0 %v547
    %961 = vmatpush1.msra.mxu0 %v546
    %962 = vmatprep.subr.mxu0 %v551
    %963 = vmatpush1.msra.mxu0 %v550
    %964 = vmatprep.subr.mxu0 %v555
    %965 = vmatpush1.msra.mxu0 %v554
    %966 = vmatprep.subr.mxu0 %v559
    %967 = vmatpush1.msra.mxu0 %v558
    %968 = vmatprep.subr.mxu0 %v563
    %969 = vmatpush1.msra.mxu0 %v562
    %970 = vmatprep.subr.mxu0 %v567
    %971 = vmatpush1.msra.mxu0 %v566
    %972 = vmatprep.subr.mxu0 %v571
    %973 = vmatpush1.msra.mxu0 %v570
    %974 = vmatprep.subr.mxu0 %v575
    %975 = vmatpush1.msra.mxu0 %v574
    %976 = vmatprep.subr.mxu0 %v579
    %977 = vmatpush1.msra.mxu0 %v578
    %978 = vmatprep.subr.mxu0 %v583
    %979 = vmatpush1.msra.mxu0 %v582
    %980 = vmatprep.subr.mxu0 %v587
    %981 = vmatpush1.msra.mxu0 %v586
    %982 = vmatprep.subr.mxu0 %v591
    %983 = vmatpush1.msra.mxu0 %v590
    %984 = vmatprep.subr.mxu0 %v595
    %985 = vmatpush1.msra.mxu0 %v594
    %986 = vmatprep.subr.mxu0 %v599
    %987 = vmatpush1.msra.mxu0 %v598
    %988 = vmatprep.subr.mxu0 %v603
    %989 = vmatpush1.msra.mxu0 %v602
    %990 = vmatprep.subr.mxu0 %v607
    %991 = vmatpush1.msra.mxu0 %v606
    %992 = vmatprep.subr.mxu0 %v611
    %993 = vmatpush1.msra.mxu0 %v610
    %994 = vmatprep.subr.mxu0 %v615
    %995 = vmatpush1.msra.mxu0 %v614
    %996 = vmatprep.mubr.f32.mxu0 %v780
    %997 = vmatmul.mubr.f32.gmra.mrb[0].mxu0 %v772
    %v998 = vpop.f32.mrb[0].mxu0
    %v999 = vadd.f32 %v928, %v998
    %v1000 = vpop.f32.mrb[0].mxu0
    %v1001 = vadd.f32 %v930, %v1000
    %1002 = vdwg.mxu0
    %1003 = vmatprep.subr.mxu0 %v619
    %1004 = vmatpush1.msra.mxu0 %v618
    %1005 = vmatprep.subr.mxu0 %v623
    %1006 = vmatpush1.msra.mxu0 %v622
    %1007 = vmatprep.subr.mxu0 %v627
    %1008 = vmatpush1.msra.mxu0 %v626
    %1009 = vmatprep.subr.mxu0 %v631
    %1010 = vmatpush1.msra.mxu0 %v630
    %1011 = vmatprep.subr.mxu0 %v635
    %1012 = vmatpush1.msra.mxu0 %v634
    %1013 = vmatprep.subr.mxu0 %v639
    %1014 = vmatpush1.msra.mxu0 %v638
    %1015 = vmatprep.subr.mxu0 %v643
    %1016 = vmatpush1.msra.mxu0 %v642
    %1017 = vmatprep.subr.mxu0 %v647
    %1018 = vmatpush1.msra.mxu0 %v646
    %1019 = vmatprep.subr.mxu0 %v651
    %1020 = vmatpush1.msra.mxu0 %v650
    %1021 = vmatprep.subr.mxu0 %v655
    %1022 = vmatpush1.msra.mxu0 %v654
    %1023 = vmatprep.subr.mxu0 %v659
    %1024 = vmatpush1.msra.mxu0 %v658
    %1025 = vmatprep.subr.mxu0 %v663
    %1026 = vmatpush1.msra.mxu0 %v662
    %1027 = vmatprep.subr.mxu0 %v667
    %1028 = vmatpush1.msra.mxu0 %v666
    %1029 = vmatprep.subr.mxu0 %v671
    %1030 = vmatpush1.msra.mxu0 %v670
    %1031 = vmatprep.subr.mxu0 %v675
    %1032 = vmatpush1.msra.mxu0 %v674
    %1033 = vmatprep.subr.mxu0 %v679
    %1034 = vmatpush1.msra.mxu0 %v678
    %1035 = vmatprep.subr.mxu0 %v683
    %1036 = vmatpush1.msra.mxu0 %v682
    %1037 = vmatprep.subr.mxu0 %v687
    %1038 = vmatpush1.msra.mxu0 %v686
    %1039 = vmatprep.subr.mxu0 %v691
    %1040 = vmatpush1.msra.mxu0 %v690
    %1041 = vmatprep.subr.mxu0 %v695
    %1042 = vmatpush1.msra.mxu0 %v694
    %1043 = vmatprep.subr.mxu0 %v699
    %1044 = vmatpush1.msra.mxu0 %v698
    %1045 = vmatprep.subr.mxu0 %v703
    %1046 = vmatpush1.msra.mxu0 %v702
    %1047 = vmatprep.subr.mxu0 %v707
    %1048 = vmatpush1.msra.mxu0 %v706
    %1049 = vmatprep.subr.mxu0 %v711
    %1050 = vmatpush1.msra.mxu0 %v710
    %1051 = vmatprep.subr.mxu0 %v715
    %1052 = vmatpush1.msra.mxu0 %v714
    %1053 = vmatprep.subr.mxu0 %v719
    %1054 = vmatpush1.msra.mxu0 %v718
    %1055 = vmatprep.subr.mxu0 %v723
    %1056 = vmatpush1.msra.mxu0 %v722
    %1057 = vmatprep.subr.mxu0 %v727
    %1058 = vmatpush1.msra.mxu0 %v726
    %1059 = vmatprep.subr.mxu0 %v731
    %1060 = vmatpush1.msra.mxu0 %v730
    %1061 = vmatprep.subr.mxu0 %v735
    %1062 = vmatpush1.msra.mxu0 %v734
    %1063 = vmatprep.subr.mxu0 %v739
    %1064 = vmatpush1.msra.mxu0 %v738
    %1065 = vmatprep.subr.mxu0 %v743
    %1066 = vmatpush1.msra.mxu0 %v742
    %1067 = vmatprep.mubr.f32.mxu0 %v781
    %1068 = vmatmul.mubr.f32.gmra.mrb[0].mxu0 %v779
    %v1069 = vpop.f32.mrb[0].mxu0
    %v1070 = vadd.f32 %v999, %v1069
    %v1071 = vpop.f32.mrb[0].mxu0
    %v1072 = vadd.f32 %v1001, %v1071
    %1073 = vdwg.mxu0
    %1074 = vmatprep.subr.mxu0 %v237
    %1075 = vmatpush1.msra.mxu0 %v236
    %1076 = vmatprep.subr.mxu0 %v241
    %1077 = vmatpush1.msra.mxu0 %v240
    %1078 = vmatprep.subr.mxu0 %v245
    %1079 = vmatpush1.msra.mxu0 %v244
    %1080 = vmatprep.subr.mxu0 %v249
    %1081 = vmatpush1.msra.mxu0 %v248
    %1082 = vmatprep.subr.mxu0 %v253
    %1083 = vmatpush1.msra.mxu0 %v252
    %1084 = vmatprep.subr.mxu0 %v257
    %1085 = vmatpush1.msra.mxu0 %v256
    %1086 = vmatprep.subr.mxu0 %v261
    %1087 = vmatpush1.msra.mxu0 %v260
    %1088 = vmatprep.subr.mxu0 %v265
    %1089 = vmatpush1.msra.mxu0 %v264
    %1090 = vmatprep.subr.mxu0 %v269
    %1091 = vmatpush1.msra.mxu0 %v268
    %1092 = vmatprep.subr.mxu0 %v273
    %1093 = vmatpush1.msra.mxu0 %v272
    %1094 = vmatprep.subr.mxu0 %v277
    %1095 = vmatpush1.msra.mxu0 %v276
    %1096 = vmatprep.subr.mxu0 %v281
    %1097 = vmatpush1.msra.mxu0 %v280
    %1098 = vmatprep.subr.mxu0 %v285
    %1099 = vmatpush1.msra.mxu0 %v284
    %1100 = vmatprep.subr.mxu0 %v289
    %1101 = vmatpush1.msra.mxu0 %v288
    %1102 = vmatprep.subr.mxu0 %v293
    %1103 = vmatpush1.msra.mxu0 %v292
    %1104 = vmatprep.subr.mxu0 %v297
    %1105 = vmatpush1.msra.mxu0 %v296
    %1106 = vmatprep.subr.mxu0 %v301
    %1107 = vmatpush1.msra.mxu0 %v300
    %1108 = vmatprep.subr.mxu0 %v305
    %1109 = vmatpush1.msra.mxu0 %v304
    %1110 = vmatprep.subr.mxu0 %v309
    %1111 = vmatpush1.msra.mxu0 %v308
    %1112 = vmatprep.subr.mxu0 %v313
    %1113 = vmatpush1.msra.mxu0 %v312
    %1114 = vmatprep.subr.mxu0 %v317
    %1115 = vmatpush1.msra.mxu0 %v316
    %1116 = vmatprep.subr.mxu0 %v321
    %1117 = vmatpush1.msra.mxu0 %v320
    %1118 = vmatprep.subr.mxu0 %v325
    %1119 = vmatpush1.msra.mxu0 %v324
    %1120 = vmatprep.subr.mxu0 %v329
    %1121 = vmatpush1.msra.mxu0 %v328
    %1122 = vmatprep.subr.mxu0 %v333
    %1123 = vmatpush1.msra.mxu0 %v332
    %1124 = vmatprep.subr.mxu0 %v337
    %1125 = vmatpush1.msra.mxu0 %v336
    %1126 = vmatprep.subr.mxu0 %v341
    %1127 = vmatpush1.msra.mxu0 %v340
    %1128 = vmatprep.subr.mxu0 %v345
    %1129 = vmatpush1.msra.mxu0 %v344
    %1130 = vmatprep.subr.mxu0 %v349
    %1131 = vmatpush1.msra.mxu0 %v348
    %1132 = vmatprep.subr.mxu0 %v353
    %1133 = vmatpush1.msra.mxu0 %v352
    %1134 = vmatprep.subr.mxu0 %v357
    %1135 = vmatpush1.msra.mxu0 %v356
    %1136 = vmatprep.subr.mxu0 %v361
    %1137 = vmatpush1.msra.mxu0 %v360
    %1138 = vmatprep.mubr.f32.mxu0 %v763
    %1139 = vmatmul.mubr.f32.gmra.mrb[0].mxu0 %v755
    %v1140 = vpop.f32.mrb[0].mxu0
    %v1141 = vadd.f32 0.0, %v1140
    %v1142 = vpop.f32.mrb[0].mxu0
    %v1143 = vadd.f32 0.0, %v1142
    %1144 = vdwg.mxu0
    %1145 = vmatprep.subr.mxu0 %v365
    %1146 = vmatpush1.msra.mxu0 %v364
    %1147 = vmatprep.subr.mxu0 %v369
    %1148 = vmatpush1.msra.mxu0 %v368
    %1149 = vmatprep.subr.mxu0 %v373
    %1150 = vmatpush1.msra.mxu0 %v372
    %1151 = vmatprep.subr.mxu0 %v377
    %1152 = vmatpush1.msra.mxu0 %v376
    %1153 = vmatprep.subr.mxu0 %v381
    %1154 = vmatpush1.msra.mxu0 %v380
    %1155 = vmatprep.subr.mxu0 %v385
    %1156 = vmatpush1.msra.mxu0 %v384
    %1157 = vmatprep.subr.mxu0 %v389
    %1158 = vmatpush1.msra.mxu0 %v388
    %1159 = vmatprep.subr.mxu0 %v393
    %1160 = vmatpush1.msra.mxu0 %v392
    %1161 = vmatprep.subr.mxu0 %v397
    %1162 = vmatpush1.msra.mxu0 %v396
    %1163 = vmatprep.subr.mxu0 %v401
    %1164 = vmatpush1.msra.mxu0 %v400
    %1165 = vmatprep.subr.mxu0 %v405
    %1166 = vmatpush1.msra.mxu0 %v404
    %1167 = vmatprep.subr.mxu0 %v409
    %1168 = vmatpush1.msra.mxu0 %v408
    %1169 = vmatprep.subr.mxu0 %v413
    %1170 = vmatpush1.msra.mxu0 %v412
    %1171 = vmatprep.subr.mxu0 %v417
    %1172 = vmatpush1.msra.mxu0 %v416
    %1173 = vmatprep.subr.mxu0 %v421
    %1174 = vmatpush1.msra.mxu0 %v420
    %1175 = vmatprep.subr.mxu0 %v425
    %1176 = vmatpush1.msra.mxu0 %v424
    %1177 = vmatprep.subr.mxu0 %v429
    %1178 = vmatpush1.msra.mxu0 %v428
    %1179 = vmatprep.subr.mxu0 %v433
    %1180 = vmatpush1.msra.mxu0 %v432
    %1181 = vmatprep.subr.mxu0 %v437
    %1182 = vmatpush1.msra.mxu0 %v436
    %1183 = vmatprep.subr.mxu0 %v441
    %1184 = vmatpush1.msra.mxu0 %v440
    %1185 = vmatprep.subr.mxu0 %v445
    %1186 = vmatpush1.msra.mxu0 %v444
    %1187 = vmatprep.subr.mxu0 %v449
    %1188 = vmatpush1.msra.mxu0 %v448
    %1189 = vmatprep.subr.mxu0 %v453
    %1190 = vmatpush1.msra.mxu0 %v452
    %1191 = vmatprep.subr.mxu0 %v457
    %1192 = vmatpush1.msra.mxu0 %v456
    %1193 = vmatprep.subr.mxu0 %v461
    %1194 = vmatpush1.msra.mxu0 %v460
    %1195 = vmatprep.subr.mxu0 %v465
    %1196 = vmatpush1.msra.mxu0 %v464
    %1197 = vmatprep.subr.mxu0 %v469
    %1198 = vmatpush1.msra.mxu0 %v468
    %1199 = vmatprep.subr.mxu0 %v473
    %1200 = vmatpush1.msra.mxu0 %v472
    %1201 = vmatprep.subr.mxu0 %v477
    %1202 = vmatpush1.msra.mxu0 %v476
    %1203 = vmatprep.subr.mxu0 %v481
    %1204 = vmatpush1.msra.mxu0 %v480
    %1205 = vmatprep.subr.mxu0 %v485
    %1206 = vmatpush1.msra.mxu0 %v484
    %1207 = vmatprep.subr.mxu0 %v489
    %1208 = vmatpush1.msra.mxu0 %v488
    %1209 = vmatprep.mubr.f32.mxu0 %v764
    %1210 = vmatmul.mubr.f32.gmra.mrb[0].mxu0 %v762
    %v1211 = vpop.f32.mrb[0].mxu0
    %v1212 = vadd.f32 %v1141, %v1211
    %v1213 = vpop.f32.mrb[0].mxu0
    %v1214 = vadd.f32 %v1143, %v1213
    %1215 = vdwg.mxu0
    %1216 = vmatprep.subr.mxu0 %v493
    %1217 = vmatpush1.msra.mxu0 %v492
    %1218 = vmatprep.subr.mxu0 %v497
    %1219 = vmatpush1.msra.mxu0 %v496
    %1220 = vmatprep.subr.mxu0 %v501
    %1221 = vmatpush1.msra.mxu0 %v500
    %1222 = vmatprep.subr.mxu0 %v505
    %1223 = vmatpush1.msra.mxu0 %v504
    %1224 = vmatprep.subr.mxu0 %v509
    %1225 = vmatpush1.msra.mxu0 %v508
    %1226 = vmatprep.subr.mxu0 %v513
    %1227 = vmatpush1.msra.mxu0 %v512
    %1228 = vmatprep.subr.mxu0 %v517
    %1229 = vmatpush1.msra.mxu0 %v516
    %1230 = vmatprep.subr.mxu0 %v521
    %1231 = vmatpush1.msra.mxu0 %v520
    %1232 = vmatprep.subr.mxu0 %v525
    %1233 = vmatpush1.msra.mxu0 %v524
    %1234 = vmatprep.subr.mxu0 %v529
    %1235 = vmatpush1.msra.mxu0 %v528
    %1236 = vmatprep.subr.mxu0 %v533
    %1237 = vmatpush1.msra.mxu0 %v532
    %1238 = vmatprep.subr.mxu0 %v537
    %1239 = vmatpush1.msra.mxu0 %v536
    %1240 = vmatprep.subr.mxu0 %v541
    %1241 = vmatpush1.msra.mxu0 %v540
    %1242 = vmatprep.subr.mxu0 %v545
    %1243 = vmatpush1.msra.mxu0 %v544
    %1244 = vmatprep.subr.mxu0 %v549
    %1245 = vmatpush1.msra.mxu0 %v548
    %1246 = vmatprep.subr.mxu0 %v553
    %1247 = vmatpush1.msra.mxu0 %v552
    %1248 = vmatprep.subr.mxu0 %v557
    %1249 = vmatpush1.msra.mxu0 %v556
    %1250 = vmatprep.subr.mxu0 %v561
    %1251 = vmatpush1.msra.mxu0 %v560
    %1252 = vmatprep.subr.mxu0 %v565
    %1253 = vmatpush1.msra.mxu0 %v564
    %1254 = vmatprep.subr.mxu0 %v569
    %1255 = vmatpush1.msra.mxu0 %v568
    %1256 = vmatprep.subr.mxu0 %v573
    %1257 = vmatpush1.msra.mxu0 %v572
    %1258 = vmatprep.subr.mxu0 %v577
    %1259 = vmatpush1.msra.mxu0 %v576
    %1260 = vmatprep.subr.mxu0 %v581
    %1261 = vmatpush1.msra.mxu0 %v580
    %1262 = vmatprep.subr.mxu0 %v585
    %1263 = vmatpush1.msra.mxu0 %v584
    %1264 = vmatprep.subr.mxu0 %v589
    %1265 = vmatpush1.msra.mxu0 %v588
    %1266 = vmatprep.subr.mxu0 %v593
    %1267 = vmatpush1.msra.mxu0 %v592
    %1268 = vmatprep.subr.mxu0 %v597
    %1269 = vmatpush1.msra.mxu0 %v596
    %1270 = vmatprep.subr.mxu0 %v601
    %1271 = vmatpush1.msra.mxu0 %v600
    %1272 = vmatprep.subr.mxu0 %v605
    %1273 = vmatpush1.msra.mxu0 %v604
    %1274 = vmatprep.subr.mxu0 %v609
    %1275 = vmatpush1.msra.mxu0 %v608
    %1276 = vmatprep.subr.mxu0 %v613
    %1277 = vmatpush1.msra.mxu0 %v612
    %1278 = vmatprep.subr.mxu0 %v617
    %1279 = vmatpush1.msra.mxu0 %v616
    %1280 = vmatprep.mubr.f32.mxu0 %v780
    %1281 = vmatmul.mubr.f32.gmra.mrb[0].mxu0 %v772
    %v1282 = vpop.f32.mrb[0].mxu0
    %v1283 = vadd.f32 %v1212, %v1282
    %v1284 = vpop.f32.mrb[0].mxu0
    %v1285 = vadd.f32 %v1214, %v1284
    %1286 = vdwg.mxu0
    %1287 = vmatprep.subr.mxu0 %v621
    %1288 = vmatpush1.msra.mxu0 %v620
    %1289 = vmatprep.subr.mxu0 %v625
    %1290 = vmatpush1.msra.mxu0 %v624
    %1291 = vmatprep.subr.mxu0 %v629
    %1292 = vmatpush1.msra.mxu0 %v628
    %1293 = vmatprep.subr.mxu0 %v633
    %1294 = vmatpush1.msra.mxu0 %v632
    %1295 = vmatprep.subr.mxu0 %v637
    %1296 = vmatpush1.msra.mxu0 %v636
    %1297 = vmatprep.subr.mxu0 %v641
    %1298 = vmatpush1.msra.mxu0 %v640
    %1299 = vmatprep.subr.mxu0 %v645
    %1300 = vmatpush1.msra.mxu0 %v644
    %1301 = vmatprep.subr.mxu0 %v649
    %1302 = vmatpush1.msra.mxu0 %v648
    %1303 = vmatprep.subr.mxu0 %v653
    %1304 = vmatpush1.msra.mxu0 %v652
    %1305 = vmatprep.subr.mxu0 %v657
    %1306 = vmatpush1.msra.mxu0 %v656
    %1307 = vmatprep.subr.mxu0 %v661
    %1308 = vmatpush1.msra.mxu0 %v660
    %1309 = vmatprep.subr.mxu0 %v665
    %1310 = vmatpush1.msra.mxu0 %v664
    %1311 = vmatprep.subr.mxu0 %v669
    %1312 = vmatpush1.msra.mxu0 %v668
    %1313 = vmatprep.subr.mxu0 %v673
    %1314 = vmatpush1.msra.mxu0 %v672
    %1315 = vmatprep.subr.mxu0 %v677
    %1316 = vmatpush1.msra.mxu0 %v676
    %1317 = vmatprep.subr.mxu0 %v681
    %1318 = vmatpush1.msra.mxu0 %v680
    %1319 = vmatprep.subr.mxu0 %v685
    %1320 = vmatpush1.msra.mxu0 %v684
    %1321 = vmatprep.subr.mxu0 %v689
    %1322 = vmatpush1.msra.mxu0 %v688
    %1323 = vmatprep.subr.mxu0 %v693
    %1324 = vmatpush1.msra.mxu0 %v692
    %1325 = vmatprep.subr.mxu0 %v697
    %1326 = vmatpush1.msra.mxu0 %v696
    %1327 = vmatprep.subr.mxu0 %v701
    %1328 = vmatpush1.msra.mxu0 %v700
    %1329 = vmatprep.subr.mxu0 %v705
    %1330 = vmatpush1.msra.mxu0 %v704
    %1331 = vmatprep.subr.mxu0 %v709
    %1332 = vmatpush1.msra.mxu0 %v708
    %1333 = vmatprep.subr.mxu0 %v713
    %1334 = vmatpush1.msra.mxu0 %v712
    %1335 = vmatprep.subr.mxu0 %v717
    %1336 = vmatpush1.msra.mxu0 %v716
    %1337 = vmatprep.subr.mxu0 %v721
    %1338 = vmatpush1.msra.mxu0 %v720
    %1339 = vmatprep.subr.mxu0 %v725
    %1340 = vmatpush1.msra.mxu0 %v724
    %1341 = vmatprep.subr.mxu0 %v729
    %1342 = vmatpush1.msra.mxu0 %v728
    %1343 = vmatprep.subr.mxu0 %v733
    %1344 = vmatpush1.msra.mxu0 %v732
    %1345 = vmatprep.subr.mxu0 %v737
    %1346 = vmatpush1.msra.mxu0 %v736
    %1347 = vmatprep.subr.mxu0 %v741
    %1348 = vmatpush1.msra.mxu0 %v740
    %1349 = vmatprep.subr.mxu0 %v745
    %1350 = vmatpush1.msra.mxu0 %v744
    %1351 = vmatprep.mubr.f32.mxu0 %v781
    %1352 = vmatmul.mubr.f32.gmra.mrb[0].mxu0 %v779
    %v1353 = vpop.f32.mrb[0].mxu0
    %v1354 = vadd.f32 %v1283, %v1353
    %v1355 = vpop.f32.mrb[0].mxu0
    %v1356 = vadd.f32 %v1285, %v1355
    %1357 = vdwg.mxu0
    %v1358 = vld [vmem:[%s2] sm:$0xff]
    %v1359 = vld [vmem:[%s2 + $0x8] sm:$0xff]
    %v1360 = vld [vmem:[%s2 + $0x10] sm:$0xff]
    %v1361 = vld [vmem:[%s2 + $0x18] sm:$0xff]
    %v1362 = vld [vmem:[%s2 + $0x20] sm:$0xff]
    %v1363 = vld [vmem:[%s2 + $0x28] sm:$0xff]
    %v1364 = vld [vmem:[%s2 + $0x30] sm:$0xff]
    %v1365 = vld [vmem:[%s2 + $0x38] sm:$0xff]
    %v1366 = vld [vmem:[%s2 + $0x40] sm:$0xff]
    %v1367 = vld [vmem:[%s2 + $0x48] sm:$0xff]
    %v1368 = vld [vmem:[%s2 + $0x50] sm:$0xff]
    %v1369 = vld [vmem:[%s2 + $0x58] sm:$0xff]
    %v1370 = vld [vmem:[%s2 + $0x60] sm:$0xff]
    %v1371 = vld [vmem:[%s2 + $0x68] sm:$0xff]
    %v1372 = vld [vmem:[%s2 + $0x70] sm:$0xff]
    %v1373 = vld [vmem:[%s2 + $0x78] sm:$0xff]
    %v1374 = vld [vmem:[%s2 + $0x80] sm:$0xff]
    %v1375 = vld [vmem:[%s2 + $0x88] sm:$0xff]
    %v1376 = vld [vmem:[%s2 + $0x90] sm:$0xff]
    %v1377 = vld [vmem:[%s2 + $0x98] sm:$0xff]
    %v1378 = vld [vmem:[%s2 + $0xa0] sm:$0xff]
    %v1379 = vld [vmem:[%s2 + $0xa8] sm:$0xff]
    %v1380 = vld [vmem:[%s2 + $0xb0] sm:$0xff]
    %v1381 = vld [vmem:[%s2 + $0xb8] sm:$0xff]
    %v1382 = vld [vmem:[%s2 + $0xc0] sm:$0xff]
    %v1383 = vld [vmem:[%s2 + $0xc8] sm:$0xff]
    %v1384 = vld [vmem:[%s2 + $0xd0] sm:$0xff]
    %v1385 = vld [vmem:[%s2 + $0xd8] sm:$0xff]
    %v1386 = vld [vmem:[%s2 + $0xe0] sm:$0xff]
    %v1387 = vld [vmem:[%s2 + $0xe8] sm:$0xff]
    %v1388 = vld [vmem:[%s2 + $0xf0] sm:$0xff]
    %v1389 = vld [vmem:[%s2 + $0xf8] sm:$0xff]
    %v1390 = vld [vmem:[%s2 + $0x100] sm:$0xff]
    %v1391 = vld [vmem:[%s2 + $0x108] sm:$0xff]
    %v1392 = vld [vmem:[%s2 + $0x110] sm:$0xff]
    %v1393 = vld [vmem:[%s2 + $0x118] sm:$0xff]
    %v1394 = vld [vmem:[%s2 + $0x120] sm:$0xff]
    %v1395 = vld [vmem:[%s2 + $0x128] sm:$0xff]
    %v1396 = vld [vmem:[%s2 + $0x130] sm:$0xff]
    %v1397 = vld [vmem:[%s2 + $0x138] sm:$0xff]
    %v1398 = vld [vmem:[%s2 + $0x140] sm:$0xff]
    %v1399 = vld [vmem:[%s2 + $0x148] sm:$0xff]
    %v1400 = vld [vmem:[%s2 + $0x150] sm:$0xff]
    %v1401 = vld [vmem:[%s2 + $0x158] sm:$0xff]
    %v1402 = vld [vmem:[%s2 + $0x160] sm:$0xff]
    %v1403 = vld [vmem:[%s2 + $0x168] sm:$0xff]
    %v1404 = vld [vmem:[%s2 + $0x170] sm:$0xff]
    %v1405 = vld [vmem:[%s2 + $0x178] sm:$0xff]
    %v1406 = vld [vmem:[%s2 + $0x180] sm:$0xff]
    %v1407 = vld [vmem:[%s2 + $0x188] sm:$0xff]
    %v1408 = vld [vmem:[%s2 + $0x190] sm:$0xff]
    %v1409 = vld [vmem:[%s2 + $0x198] sm:$0xff]
    %v1410 = vld [vmem:[%s2 + $0x1a0] sm:$0xff]
    %v1411 = vld [vmem:[%s2 + $0x1a8] sm:$0xff]
    %v1412 = vld [vmem:[%s2 + $0x1b0] sm:$0xff]
    %v1413 = vld [vmem:[%s2 + $0x1b8] sm:$0xff]
    %v1414 = vld [vmem:[%s2 + $0x1c0] sm:$0xff]
    %v1415 = vld [vmem:[%s2 + $0x1c8] sm:$0xff]
    %v1416 = vld [vmem:[%s2 + $0x1d0] sm:$0xff]
    %v1417 = vld [vmem:[%s2 + $0x1d8] sm:$0xff]
    %v1418 = vld [vmem:[%s2 + $0x1e0] sm:$0xff]
    %v1419 = vld [vmem:[%s2 + $0x1e8] sm:$0xff]
    %v1420 = vld [vmem:[%s2 + $0x1f0] sm:$0xff]
    %v1421 = vld [vmem:[%s2 + $0x1f8] sm:$0xff]
    %1422 = vmatprep.subr.mxu0 0.0
    %1423 = vmatpush1.msra.mxu0 %v1358
    %1424 = vmatprep.subr.mxu0 0.0
    %1425 = vmatpush1.msra.mxu0 %v1359
    %1426 = vmatprep.subr.mxu0 0.0
    %1427 = vmatpush1.msra.mxu0 %v1360
    %1428 = vmatprep.subr.mxu0 0.0
    %1429 = vmatpush1.msra.mxu0 %v1361
    %1430 = vmatprep.subr.mxu0 0.0
    %1431 = vmatpush1.msra.mxu0 %v1362
    %1432 = vmatprep.subr.mxu0 0.0
    %1433 = vmatpush1.msra.mxu0 %v1363
    %1434 = vmatprep.subr.mxu0 0.0
    %1435 = vmatpush1.msra.mxu0 %v1364
    %1436 = vmatprep.subr.mxu0 0.0
    %1437 = vmatpush1.msra.mxu0 %v1365
    %1438 = vmatprep.subr.mxu0 0.0
    %1439 = vmatpush1.msra.mxu0 %v1366
    %1440 = vmatprep.subr.mxu0 0.0
    %1441 = vmatpush1.msra.mxu0 %v1367
    %1442 = vmatprep.subr.mxu0 0.0
    %1443 = vmatpush1.msra.mxu0 %v1368
    %1444 = vmatprep.subr.mxu0 0.0
    %1445 = vmatpush1.msra.mxu0 %v1369
    %1446 = vmatprep.subr.mxu0 0.0
    %1447 = vmatpush1.msra.mxu0 %v1370
    %1448 = vmatprep.subr.mxu0 0.0
    %1449 = vmatpush1.msra.mxu0 %v1371
    %1450 = vmatprep.subr.mxu0 0.0
    %1451 = vmatpush1.msra.mxu0 %v1372
    %1452 = vmatprep.subr.mxu0 0.0
    %1453 = vmatpush1.msra.mxu0 %v1373
    %1454 = vmatprep.subr.mxu0 0.0
    %1455 = vmatpush1.msra.mxu0 %v1374
    %1456 = vmatprep.subr.mxu0 0.0
    %1457 = vmatpush1.msra.mxu0 %v1375
    %1458 = vmatprep.subr.mxu0 0.0
    %1459 = vmatpush1.msra.mxu0 %v1376
    %1460 = vmatprep.subr.mxu0 0.0
    %1461 = vmatpush1.msra.mxu0 %v1377
    %1462 = vmatprep.subr.mxu0 0.0
    %1463 = vmatpush1.msra.mxu0 %v1378
    %1464 = vmatprep.subr.mxu0 0.0
    %1465 = vmatpush1.msra.mxu0 %v1379
    %1466 = vmatprep.subr.mxu0 0.0
    %1467 = vmatpush1.msra.mxu0 %v1380
    %1468 = vmatprep.subr.mxu0 0.0
    %1469 = vmatpush1.msra.mxu0 %v1381
    %1470 = vmatprep.subr.mxu0 0.0
    %1471 = vmatpush1.msra.mxu0 %v1382
    %1472 = vmatprep.subr.mxu0 0.0
    %1473 = vmatpush1.msra.mxu0 %v1383
    %1474 = vmatprep.subr.mxu0 0.0
    %1475 = vmatpush1.msra.mxu0 %v1384
    %1476 = vmatprep.subr.mxu0 0.0
    %1477 = vmatpush1.msra.mxu0 %v1385
    %1478 = vmatprep.subr.mxu0 0.0
    %1479 = vmatpush1.msra.mxu0 %v1386
    %1480 = vmatprep.subr.mxu0 0.0
    %1481 = vmatpush1.msra.mxu0 %v1387
    %1482 = vmatprep.subr.mxu0 0.0
    %1483 = vmatpush1.msra.mxu0 %v1388
    %1484 = vmatprep.subr.mxu0 0.0
    %1485 = vmatpush1.msra.mxu0 %v1389
    %1486 = vmatprep.mubr.f32.mxu0 %v1072
    %1487 = vmatmul.mubr.f32.gmra.mrb[0].mxu0 %v1070
    %v1488 = vpop.f32.mrb[0].mxu0
    %v1489 = vadd.f32 0.0, %v1488
    %v1490 = vpop.f32.mrb[0].mxu0
    %1491 = vdwg.mxu0
    %1492 = vmatprep.subr.mxu0 0.0
    %1493 = vmatpush1.msra.mxu0 %v1390
    %1494 = vmatprep.subr.mxu0 0.0
    %1495 = vmatpush1.msra.mxu0 %v1391
    %1496 = vmatprep.subr.mxu0 0.0
    %1497 = vmatpush1.msra.mxu0 %v1392
    %1498 = vmatprep.subr.mxu0 0.0
    %1499 = vmatpush1.msra.mxu0 %v1393
    %1500 = vmatprep.subr.mxu0 0.0
    %1501 = vmatpush1.msra.mxu0 %v1394
    %1502 = vmatprep.subr.mxu0 0.0
    %1503 = vmatpush1.msra.mxu0 %v1395
    %1504 = vmatprep.subr.mxu0 0.0
    %1505 = vmatpush1.msra.mxu0 %v1396
    %1506 = vmatprep.subr.mxu0 0.0
    %1507 = vmatpush1.msra.mxu0 %v1397
    %1508 = vmatprep.subr.mxu0 0.0
    %1509 = vmatpush1.msra.mxu0 %v1398
    %1510 = vmatprep.subr.mxu0 0.0
    %1511 = vmatpush1.msra.mxu0 %v1399
    %1512 = vmatprep.subr.mxu0 0.0
    %1513 = vmatpush1.msra.mxu0 %v1400
    %1514 = vmatprep.subr.mxu0 0.0
    %1515 = vmatpush1.msra.mxu0 %v1401
    %1516 = vmatprep.subr.mxu0 0.0
    %1517 = vmatpush1.msra.mxu0 %v1402
    %1518 = vmatprep.subr.mxu0 0.0
    %1519 = vmatpush1.msra.mxu0 %v1403
    %1520 = vmatprep.subr.mxu0 0.0
    %1521 = vmatpush1.msra.mxu0 %v1404
    %1522 = vmatprep.subr.mxu0 0.0
    %1523 = vmatpush1.msra.mxu0 %v1405
    %1524 = vmatprep.subr.mxu0 0.0
    %1525 = vmatpush1.msra.mxu0 %v1406
    %1526 = vmatprep.subr.mxu0 0.0
    %1527 = vmatpush1.msra.mxu0 %v1407
    %1528 = vmatprep.subr.mxu0 0.0
    %1529 = vmatpush1.msra.mxu0 %v1408
    %1530 = vmatprep.subr.mxu0 0.0
    %1531 = vmatpush1.msra.mxu0 %v1409
    %1532 = vmatprep.subr.mxu0 0.0
    %1533 = vmatpush1.msra.mxu0 %v1410
    %1534 = vmatprep.subr.mxu0 0.0
    %1535 = vmatpush1.msra.mxu0 %v1411
    %1536 = vmatprep.subr.mxu0 0.0
    %1537 = vmatpush1.msra.mxu0 %v1412
    %1538 = vmatprep.subr.mxu0 0.0
    %1539 = vmatpush1.msra.mxu0 %v1413
    %1540 = vmatprep.subr.mxu0 0.0
    %1541 = vmatpush1.msra.mxu0 %v1414
    %1542 = vmatprep.subr.mxu0 0.0
    %1543 = vmatpush1.msra.mxu0 %v1415
    %1544 = vmatprep.subr.mxu0 0.0
    %1545 = vmatpush1.msra.mxu0 %v1416
    %1546 = vmatprep.subr.mxu0 0.0
    %1547 = vmatpush1.msra.mxu0 %v1417
    %1548 = vmatprep.subr.mxu0 0.0
    %1549 = vmatpush1.msra.mxu0 %v1418
    %1550 = vmatprep.subr.mxu0 0.0
    %1551 = vmatpush1.msra.mxu0 %v1419
    %1552 = vmatprep.subr.mxu0 0.0
    %1553 = vmatpush1.msra.mxu0 %v1420
    %1554 = vmatprep.subr.mxu0 0.0
    %1555 = vmatpush1.msra.mxu0 %v1421
    %1556 = vmatprep.mubr.f32.mxu0 %v1356
    %1557 = vmatmul.mubr.f32.gmra.mrb[0].mxu0 %v1354
    %v1558 = vpop.f32.mrb[0].mxu0
    %v1559 = vadd.f32 %v1489, %v1558
    %v1560 = vpop.f32.mrb[0].mxu0
    %1561 = vdwg.mxu0
    %vm1562 = vcmask 58368
    %v1563 = vsel %vm1562, %v1559, 0.0
    %v1564 = vrot.slane %v1563, 4
    %v1565 = vadd.f32 %v1563, %v1564
    %v1566 = vrot.slane %v1565, 2
    %v1567 = vadd.f32 %v1565, %v1566
    %v1568 = vrot.slane %v1567, 1
    %v1569 = vadd.f32 %v1567, %v1568
    %v1570 = vmul.f32 %v1569, 0.5
    %v1571 = vld [vmem:[#allocation7] sm:$0xff]
    %v1572 = vld [vmem:[#allocation7 + $0x8] sm:$0xff]
    %v1573 = vld [vmem:[#allocation7 + $0x10] sm:$0xff]
    %v1574 = vld [vmem:[#allocation7 + $0x18] sm:$0xff]
    %vm1575 = vcmask 64512
    %v1577 = vsel %vm1575, %v1570, 0
    %1579 = vmatprep.subr.mxu0 %v1572
    %1580 = vmatpush1.msra.mxu0 %v1571
    %1581 = vmatprep.subr.mxu0 0.0
    %1582 = vmatpush1.msra.mxu0 0.0
    %1583 = vmatprep.subr.mxu0 0.0
    %1584 = vmatpush1.msra.mxu0 0.0
    %1585 = vmatprep.subr.mxu0 0.0
    %1586 = vmatpush1.msra.mxu0 0.0
    %1587 = vmatprep.subr.mxu0 0.0
    %1588 = vmatpush1.msra.mxu0 0.0
    %1589 = vmatprep.subr.mxu0 0.0
    %1590 = vmatpush1.msra.mxu0 0.0
    %1591 = vmatprep.subr.mxu0 0.0
    %1592 = vmatpush1.msra.mxu0 0.0
    %1593 = vmatprep.subr.mxu0 0.0
    %1594 = vmatpush1.msra.mxu0 0.0
    %1595 = vmatprep.subr.mxu0 0.0
    %1596 = vmatpush1.msra.mxu0 0.0
    %1597 = vmatprep.subr.mxu0 0.0
    %1598 = vmatpush1.msra.mxu0 0.0
    %1599 = vmatprep.subr.mxu0 0.0
    %1600 = vmatpush1.msra.mxu0 0.0
    %1601 = vmatprep.subr.mxu0 0.0
    %1602 = vmatpush1.msra.mxu0 0.0
    %1603 = vmatprep.subr.mxu0 0.0
    %1604 = vmatpush1.msra.mxu0 0.0
    %1605 = vmatprep.subr.mxu0 0.0
    %1606 = vmatpush1.msra.mxu0 0.0
    %1607 = vmatprep.subr.mxu0 0.0
    %1608 = vmatpush1.msra.mxu0 0.0
    %1609 = vmatprep.subr.mxu0 0.0
    %1610 = vmatpush1.msra.mxu0 0.0
    %1611 = vmatprep.subr.mxu0 0.0
    %1612 = vmatpush1.msra.mxu0 0.0
    %1613 = vmatprep.subr.mxu0 0.0
    %1614 = vmatpush1.msra.mxu0 0.0
    %1615 = vmatprep.subr.mxu0 0.0
    %1616 = vmatpush1.msra.mxu0 0.0
    %1617 = vmatprep.subr.mxu0 0.0
    %1618 = vmatpush1.msra.mxu0 0.0
    %1619 = vmatprep.subr.mxu0 0.0
    %1620 = vmatpush1.msra.mxu0 0.0
    %1621 = vmatprep.subr.mxu0 0.0
    %1622 = vmatpush1.msra.mxu0 0.0
    %1623 = vmatprep.subr.mxu0 0.0
    %1624 = vmatpush1.msra.mxu0 0.0
    %1625 = vmatprep.subr.mxu0 0.0
    %1626 = vmatpush1.msra.mxu0 0.0
    %1627 = vmatprep.subr.mxu0 0.0
    %1628 = vmatpush1.msra.mxu0 0.0
    %1629 = vmatprep.subr.mxu0 0.0
    %1630 = vmatpush1.msra.mxu0 0.0
    %1631 = vmatprep.subr.mxu0 0.0
    %1632 = vmatpush1.msra.mxu0 0.0
    %1633 = vmatprep.subr.mxu0 0.0
    %1634 = vmatpush1.msra.mxu0 0.0
    %1635 = vmatprep.subr.mxu0 0.0
    %1636 = vmatpush1.msra.mxu0 0.0
    %1637 = vmatprep.subr.mxu0 0.0
    %1638 = vmatpush1.msra.mxu0 0.0
    %1639 = vmatprep.subr.mxu0 0.0
    %1640 = vmatpush1.msra.mxu0 0.0
    %1641 = vmatprep.subr.mxu0 0.0
    %1642 = vmatpush1.msra.mxu0 0.0
    %1643 = vmatprep.mubr.f32.mxu0 0.0
    %1644 = vmatmul.mubr.f32.gmra.mrb[0].mxu0 %v1577
    %v1645 = vpop.f32.mrb[0].mxu0
    %v1646 = vadd.f32 0.0, %v1645
    %v1647 = vpop.f32.mrb[0].mxu0
    %v1648 = vadd.f32 0.0, %v1647
    %1649 = vdwg.mxu0
    %1650 = vmatprep.subr.mxu0 %v1574
    %1651 = vmatpush1.msra.mxu0 %v1573
    %1652 = vmatprep.subr.mxu0 0.0
    %1653 = vmatpush1.msra.mxu0 0.0
    %1654 = vmatprep.subr.mxu0 0.0
    %1655 = vmatpush1.msra.mxu0 0.0
    %1656 = vmatprep.subr.mxu0 0.0
    %1657 = vmatpush1.msra.mxu0 0.0
    %1658 = vmatprep.subr.mxu0 0.0
    %1659 = vmatpush1.msra.mxu0 0.0
    %1660 = vmatprep.subr.mxu0 0.0
    %1661 = vmatpush1.msra.mxu0 0.0
    %1662 = vmatprep.subr.mxu0 0.0
    %1663 = vmatpush1.msra.mxu0 0.0
    %1664 = vmatprep.subr.mxu0 0.0
    %1665 = vmatpush1.msra.mxu0 0.0
    %1666 = vmatprep.subr.mxu0 0.0
    %1667 = vmatpush1.msra.mxu0 0.0
    %1668 = vmatprep.subr.mxu0 0.0
    %1669 = vmatpush1.msra.mxu0 0.0
    %1670 = vmatprep.subr.mxu0 0.0
    %1671 = vmatpush1.msra.mxu0 0.0
    %1672 = vmatprep.subr.mxu0 0.0
    %1673 = vmatpush1.msra.mxu0 0.0
    %1674 = vmatprep.subr.mxu0 0.0
    %1675 = vmatpush1.msra.mxu0 0.0
    %1676 = vmatprep.subr.mxu0 0.0
    %1677 = vmatpush1.msra.mxu0 0.0
    %1678 = vmatprep.subr.mxu0 0.0
    %1679 = vmatpush1.msra.mxu0 0.0
    %1680 = vmatprep.subr.mxu0 0.0
    %1681 = vmatpush1.msra.mxu0 0.0
    %1682 = vmatprep.subr.mxu0 0.0
    %1683 = vmatpush1.msra.mxu0 0.0
    %1684 = vmatprep.subr.mxu0 0.0
    %1685 = vmatpush1.msra.mxu0 0.0
    %1686 = vmatprep.subr.mxu0 0.0
    %1687 = vmatpush1.msra.mxu0 0.0
    %1688 = vmatprep.subr.mxu0 0.0
    %1689 = vmatpush1.msra.mxu0 0.0
    %1690 = vmatprep.subr.mxu0 0.0
    %1691 = vmatpush1.msra.mxu0 0.0
    %1692 = vmatprep.subr.mxu0 0.0
    %1693 = vmatpush1.msra.mxu0 0.0
    %1694 = vmatprep.subr.mxu0 0.0
    %1695 = vmatpush1.msra.mxu0 0.0
    %1696 = vmatprep.subr.mxu0 0.0
    %1697 = vmatpush1.msra.mxu0 0.0
    %1698 = vmatprep.subr.mxu0 0.0
    %1699 = vmatpush1.msra.mxu0 0.0
    %1700 = vmatprep.subr.mxu0 0.0
    %1701 = vmatpush1.msra.mxu0 0.0
    %1702 = vmatprep.subr.mxu0 0.0
    %1703 = vmatpush1.msra.mxu0 0.0
    %1704 = vmatprep.subr.mxu0 0.0
    %1705 = vmatpush1.msra.mxu0 0.0
    %1706 = vmatprep.subr.mxu0 0.0
    %1707 = vmatpush1.msra.mxu0 0.0
    %1708 = vmatprep.subr.mxu0 0.0
    %1709 = vmatpush1.msra.mxu0 0.0
    %1710 = vmatprep.subr.mxu0 0.0
    %1711 = vmatpush1.msra.mxu0 0.0
    %1712 = vmatprep.subr.mxu0 0.0
    %1713 = vmatpush1.msra.mxu0 0.0
    %1714 = vmatprep.mubr.f32.mxu0 0.0
    %1715 = vmatmul.mubr.f32.gmra.mrb[0].mxu0 %v1577
    %v1716 = vpop.f32.mrb[0].mxu0
    %v1717 = vadd.f32 0.0, %v1716
    %v1718 = vpop.f32.mrb[0].mxu0
    %v1719 = vadd.f32 0.0, %v1718
    %1720 = vdwg.mxu0
    %v1721 = vlaneseq
    %v1722 = vshrl.u32 %v1721, 7
    %v1723 = vsub.s32 0, %v1722
    %v1724 = vrot.slane %v1646, %v1723
    %v1725 = vlaneseq
    %v1726 = vshrl.u32 %v1725, 7
    %v1727 = vsub.s32 0, %v1726
    %v1728 = vrot.slane %v1648, %v1727
    %v1729 = vlaneseq
    %v1730 = vshrl.u32 %v1729, 7
    %v1731 = vsub.s32 0, %v1730
    %v1732 = vrot.slane %v1717, %v1731
    %v1733 = vlaneseq
    %v1734 = vshrl.u32 %v1733, 7
    %v1735 = vsub.s32 0, %v1734
    %v1736 = vrot.slane %v1719, %v1735
    %v1737 = vsub.f32 %v1070, %v1724
    %v1738 = vsub.f32 %v1072, %v1728
    %v1739 = vsub.f32 %v1354, %v1732
    %v1740 = vsub.f32 %v1356, %v1736
    %v1741 = vmul.f32 %v1737, %v1737
    %v1742 = vmul.f32 %v1738, %v1738
    %v1743 = vmul.f32 %v1739, %v1739
    %v1744 = vmul.f32 %v1740, %v1740
    %1745 = vmatprep.subr.mxu0 0.0
    %1746 = vmatpush1.msra.mxu0 %v1358
    %1747 = vmatprep.subr.mxu0 0.0
    %1748 = vmatpush1.msra.mxu0 %v1359
    %1749 = vmatprep.subr.mxu0 0.0
    %1750 = vmatpush1.msra.mxu0 %v1360
    %1751 = vmatprep.subr.mxu0 0.0
    %1752 = vmatpush1.msra.mxu0 %v1361
    %1753 = vmatprep.subr.mxu0 0.0
    %1754 = vmatpush1.msra.mxu0 %v1362
    %1755 = vmatprep.subr.mxu0 0.0
    %1756 = vmatpush1.msra.mxu0 %v1363
    %1757 = vmatprep.subr.mxu0 0.0
    %1758 = vmatpush1.msra.mxu0 %v1364
    %1759 = vmatprep.subr.mxu0 0.0
    %1760 = vmatpush1.msra.mxu0 %v1365
    %1761 = vmatprep.subr.mxu0 0.0
    %1762 = vmatpush1.msra.mxu0 %v1366
    %1763 = vmatprep.subr.mxu0 0.0
    %1764 = vmatpush1.msra.mxu0 %v1367
    %1765 = vmatprep.subr.mxu0 0.0
    %1766 = vmatpush1.msra.mxu0 %v1368
    %1767 = vmatprep.subr.mxu0 0.0
    %1768 = vmatpush1.msra.mxu0 %v1369
    %1769 = vmatprep.subr.mxu0 0.0
    %1770 = vmatpush1.msra.mxu0 %v1370
    %1771 = vmatprep.subr.mxu0 0.0
    %1772 = vmatpush1.msra.mxu0 %v1371
    %1773 = vmatprep.subr.mxu0 0.0
    %1774 = vmatpush1.msra.mxu0 %v1372
    %1775 = vmatprep.subr.mxu0 0.0
    %1776 = vmatpush1.msra.mxu0 %v1373
    %1777 = vmatprep.subr.mxu0 0.0
    %1778 = vmatpush1.msra.mxu0 %v1374
    %1779 = vmatprep.subr.mxu0 0.0
    %1780 = vmatpush1.msra.mxu0 %v1375
    %1781 = vmatprep.subr.mxu0 0.0
    %1782 = vmatpush1.msra.mxu0 %v1376
    %1783 = vmatprep.subr.mxu0 0.0
    %1784 = vmatpush1.msra.mxu0 %v1377
    %1785 = vmatprep.subr.mxu0 0.0
    %1786 = vmatpush1.msra.mxu0 %v1378
    %1787 = vmatprep.subr.mxu0 0.0
    %1788 = vmatpush1.msra.mxu0 %v1379
    %1789 = vmatprep.subr.mxu0 0.0
    %1790 = vmatpush1.msra.mxu0 %v1380
    %1791 = vmatprep.subr.mxu0 0.0
    %1792 = vmatpush1.msra.mxu0 %v1381
    %1793 = vmatprep.subr.mxu0 0.0
    %1794 = vmatpush1.msra.mxu0 %v1382
    %1795 = vmatprep.subr.mxu0 0.0
    %1796 = vmatpush1.msra.mxu0 %v1383
    %1797 = vmatprep.subr.mxu0 0.0
    %1798 = vmatpush1.msra.mxu0 %v1384
    %1799 = vmatprep.subr.mxu0 0.0
    %1800 = vmatpush1.msra.mxu0 %v1385
    %1801 = vmatprep.subr.mxu0 0.0
    %1802 = vmatpush1.msra.mxu0 %v1386
    %1803 = vmatprep.subr.mxu0 0.0
    %1804 = vmatpush1.msra.mxu0 %v1387
    %1805 = vmatprep.subr.mxu0 0.0
    %1806 = vmatpush1.msra.mxu0 %v1388
    %1807 = vmatprep.subr.mxu0 0.0
    %1808 = vmatpush1.msra.mxu0 %v1389
    %1809 = vmatprep.mubr.f32.mxu0 %v1742
    %1810 = vmatmul.mubr.f32.gmra.mrb[0].mxu0 %v1741
    %v1811 = vpop.f32.mrb[0].mxu0
    %v1812 = vadd.f32 0.0, %v1811
    %v1813 = vpop.f32.mrb[0].mxu0
    %1814 = vdwg.mxu0
    %1815 = vmatprep.subr.mxu0 0.0
    %1816 = vmatpush1.msra.mxu0 %v1390
    %1817 = vmatprep.subr.mxu0 0.0
    %1818 = vmatpush1.msra.mxu0 %v1391
    %1819 = vmatprep.subr.mxu0 0.0
    %1820 = vmatpush1.msra.mxu0 %v1392
    %1821 = vmatprep.subr.mxu0 0.0
    %1822 = vmatpush1.msra.mxu0 %v1393
    %1823 = vmatprep.subr.mxu0 0.0
    %1824 = vmatpush1.msra.mxu0 %v1394
    %1825 = vmatprep.subr.mxu0 0.0
    %1826 = vmatpush1.msra.mxu0 %v1395
    %1827 = vmatprep.subr.mxu0 0.0
    %1828 = vmatpush1.msra.mxu0 %v1396
    %1829 = vmatprep.subr.mxu0 0.0
    %1830 = vmatpush1.msra.mxu0 %v1397
    %1831 = vmatprep.subr.mxu0 0.0
    %1832 = vmatpush1.msra.mxu0 %v1398
    %1833 = vmatprep.subr.mxu0 0.0
    %1834 = vmatpush1.msra.mxu0 %v1399
    %1835 = vmatprep.subr.mxu0 0.0
    %1836 = vmatpush1.msra.mxu0 %v1400
    %1837 = vmatprep.subr.mxu0 0.0
    %1838 = vmatpush1.msra.mxu0 %v1401
    %1839 = vmatprep.subr.mxu0 0.0
    %1840 = vmatpush1.msra.mxu0 %v1402
    %1841 = vmatprep.subr.mxu0 0.0
    %1842 = vmatpush1.msra.mxu0 %v1403
    %1843 = vmatprep.subr.mxu0 0.0
    %1844 = vmatpush1.msra.mxu0 %v1404
    %1845 = vmatprep.subr.mxu0 0.0
    %1846 = vmatpush1.msra.mxu0 %v1405
    %1847 = vmatprep.subr.mxu0 0.0
    %1848 = vmatpush1.msra.mxu0 %v1406
    %1849 = vmatprep.subr.mxu0 0.0
    %1850 = vmatpush1.msra.mxu0 %v1407
    %1851 = vmatprep.subr.mxu0 0.0
    %1852 = vmatpush1.msra.mxu0 %v1408
    %1853 = vmatprep.subr.mxu0 0.0
    %1854 = vmatpush1.msra.mxu0 %v1409
    %1855 = vmatprep.subr.mxu0 0.0
    %1856 = vmatpush1.msra.mxu0 %v1410
    %1857 = vmatprep.subr.mxu0 0.0
    %1858 = vmatpush1.msra.mxu0 %v1411
    %1859 = vmatprep.subr.mxu0 0.0
    %1860 = vmatpush1.msra.mxu0 %v1412
    %1861 = vmatprep.subr.mxu0 0.0
    %1862 = vmatpush1.msra.mxu0 %v1413
    %1863 = vmatprep.subr.mxu0 0.0
    %1864 = vmatpush1.msra.mxu0 %v1414
    %1865 = vmatprep.subr.mxu0 0.0
    %1866 = vmatpush1.msra.mxu0 %v1415
    %1867 = vmatprep.subr.mxu0 0.0
    %1868 = vmatpush1.msra.mxu0 %v1416
    %1869 = vmatprep.subr.mxu0 0.0
    %1870 = vmatpush1.msra.mxu0 %v1417
    %1871 = vmatprep.subr.mxu0 0.0
    %1872 = vmatpush1.msra.mxu0 %v1418
    %1873 = vmatprep.subr.mxu0 0.0
    %1874 = vmatpush1.msra.mxu0 %v1419
    %1875 = vmatprep.subr.mxu0 0.0
    %1876 = vmatpush1.msra.mxu0 %v1420
    %1877 = vmatprep.subr.mxu0 0.0
    %1878 = vmatpush1.msra.mxu0 %v1421
    %1879 = vmatprep.mubr.f32.mxu0 %v1744
    %1880 = vmatmul.mubr.f32.gmra.mrb[0].mxu0 %v1743
    %v1881 = vpop.f32.mrb[0].mxu0
    %v1882 = vadd.f32 %v1812, %v1881
    %v1883 = vpop.f32.mrb[0].mxu0
    %1884 = vdwg.mxu0
    %v1885 = vsel %vm1562, %v1882, 0.0
    %v1886 = vrot.slane %v1885, 4
    %v1887 = vadd.f32 %v1885, %v1886
    %v1888 = vrot.slane %v1887, 2
    %v1889 = vadd.f32 %v1887, %v1888
    %v1890 = vrot.slane %v1889, 1
    %v1891 = vadd.f32 %v1889, %v1890
    %v1892 = vmul.f32 %v1891, 0.5
    %v1893 = vld [vmem:[#allocation8] sm:$0x1]
    %v1894 = vadd.f32 %v1892, 1e-05
    %v1895 = vrsqrt.pop %v1894
    %v1896 = vmul.f32 %v1893, %v1895
    %v1898 = vsel %vm1575, %v1896, 0
    %1900 = vmatprep.subr.mxu0 %v1572
    %1901 = vmatpush1.msra.mxu0 %v1571
    %1902 = vmatprep.subr.mxu0 0.0
    %1903 = vmatpush1.msra.mxu0 0.0
    %1904 = vmatprep.subr.mxu0 0.0
    %1905 = vmatpush1.msra.mxu0 0.0
    %1906 = vmatprep.subr.mxu0 0.0
    %1907 = vmatpush1.msra.mxu0 0.0
    %1908 = vmatprep.subr.mxu0 0.0
    %1909 = vmatpush1.msra.mxu0 0.0
    %1910 = vmatprep.subr.mxu0 0.0
    %1911 = vmatpush1.msra.mxu0 0.0
    %1912 = vmatprep.subr.mxu0 0.0
    %1913 = vmatpush1.msra.mxu0 0.0
    %1914 = vmatprep.subr.mxu0 0.0
    %1915 = vmatpush1.msra.mxu0 0.0
    %1916 = vmatprep.subr.mxu0 0.0
    %1917 = vmatpush1.msra.mxu0 0.0
    %1918 = vmatprep.subr.mxu0 0.0
    %1919 = vmatpush1.msra.mxu0 0.0
    %1920 = vmatprep.subr.mxu0 0.0
    %1921 = vmatpush1.msra.mxu0 0.0
    %1922 = vmatprep.subr.mxu0 0.0
    %1923 = vmatpush1.msra.mxu0 0.0
    %1924 = vmatprep.subr.mxu0 0.0
    %1925 = vmatpush1.msra.mxu0 0.0
    %1926 = vmatprep.subr.mxu0 0.0
    %1927 = vmatpush1.msra.mxu0 0.0
    %1928 = vmatprep.subr.mxu0 0.0
    %1929 = vmatpush1.msra.mxu0 0.0
    %1930 = vmatprep.subr.mxu0 0.0
    %1931 = vmatpush1.msra.mxu0 0.0
    %1932 = vmatprep.subr.mxu0 0.0
    %1933 = vmatpush1.msra.mxu0 0.0
    %1934 = vmatprep.subr.mxu0 0.0
    %1935 = vmatpush1.msra.mxu0 0.0
    %1936 = vmatprep.subr.mxu0 0.0
    %1937 = vmatpush1.msra.mxu0 0.0
    %1938 = vmatprep.subr.mxu0 0.0
    %1939 = vmatpush1.msra.mxu0 0.0
    %1940 = vmatprep.subr.mxu0 0.0
    %1941 = vmatpush1.msra.mxu0 0.0
    %1942 = vmatprep.subr.mxu0 0.0
    %1943 = vmatpush1.msra.mxu0 0.0
    %1944 = vmatprep.subr.mxu0 0.0
    %1945 = vmatpush1.msra.mxu0 0.0
    %1946 = vmatprep.subr.mxu0 0.0
    %1947 = vmatpush1.msra.mxu0 0.0
    %1948 = vmatprep.subr.mxu0 0.0
    %1949 = vmatpush1.msra.mxu0 0.0
    %1950 = vmatprep.subr.mxu0 0.0
    %1951 = vmatpush1.msra.mxu0 0.0
    %1952 = vmatprep.subr.mxu0 0.0
    %1953 = vmatpush1.msra.mxu0 0.0
    %1954 = vmatprep.subr.mxu0 0.0
    %1955 = vmatpush1.msra.mxu0 0.0
    %1956 = vmatprep.subr.mxu0 0.0
    %1957 = vmatpush1.msra.mxu0 0.0
    %1958 = vmatprep.subr.mxu0 0.0
    %1959 = vmatpush1.msra.mxu0 0.0
    %1960 = vmatprep.subr.mxu0 0.0
    %1961 = vmatpush1.msra.mxu0 0.0
    %1962 = vmatprep.subr.mxu0 0.0
    %1963 = vmatpush1.msra.mxu0 0.0
    %1964 = vmatprep.mubr.f32.mxu0 0.0
    %1965 = vmatmul.mubr.f32.gmra.mrb[0].mxu0 %v1898
    %v1966 = vpop.f32.mrb[0].mxu0
    %v1967 = vadd.f32 0.0, %v1966
    %v1968 = vpop.f32.mrb[0].mxu0
    %v1969 = vadd.f32 0.0, %v1968
    %1970 = vdwg.mxu0
    %1971 = vmatprep.subr.mxu0 %v1574
    %1972 = vmatpush1.msra.mxu0 %v1573
    %1973 = vmatprep.subr.mxu0 0.0
    %1974 = vmatpush1.msra.mxu0 0.0
    %1975 = vmatprep.subr.mxu0 0.0
    %1976 = vmatpush1.msra.mxu0 0.0
    %1977 = vmatprep.subr.mxu0 0.0
    %1978 = vmatpush1.msra.mxu0 0.0
    %1979 = vmatprep.subr.mxu0 0.0
    %1980 = vmatpush1.msra.mxu0 0.0
    %1981 = vmatprep.subr.mxu0 0.0
    %1982 = vmatpush1.msra.mxu0 0.0
    %1983 = vmatprep.subr.mxu0 0.0
    %1984 = vmatpush1.msra.mxu0 0.0
    %1985 = vmatprep.subr.mxu0 0.0
    %1986 = vmatpush1.msra.mxu0 0.0
    %1987 = vmatprep.subr.mxu0 0.0
    %1988 = vmatpush1.msra.mxu0 0.0
    %1989 = vmatprep.subr.mxu0 0.0
    %1990 = vmatpush1.msra.mxu0 0.0
    %1991 = vmatprep.subr.mxu0 0.0
    %1992 = vmatpush1.msra.mxu0 0.0
    %1993 = vmatprep.subr.mxu0 0.0
    %1994 = vmatpush1.msra.mxu0 0.0
    %1995 = vmatprep.subr.mxu0 0.0
    %1996 = vmatpush1.msra.mxu0 0.0
    %1997 = vmatprep.subr.mxu0 0.0
    %1998 = vmatpush1.msra.mxu0 0.0
    %1999 = vmatprep.subr.mxu0 0.0
    %2000 = vmatpush1.msra.mxu0 0.0
    %2001 = vmatprep.subr.mxu0 0.0
    %2002 = vmatpush1.msra.mxu0 0.0
    %2003 = vmatprep.subr.mxu0 0.0
    %2004 = vmatpush1.msra.mxu0 0.0
    %2005 = vmatprep.subr.mxu0 0.0
    %2006 = vmatpush1.msra.mxu0 0.0
    %2007 = vmatprep.subr.mxu0 0.0
    %2008 = vmatpush1.msra.mxu0 0.0
    %2009 = vmatprep.subr.mxu0 0.0
    %2010 = vmatpush1.msra.mxu0 0.0
    %2011 = vmatprep.subr.mxu0 0.0
    %2012 = vmatpush1.msra.mxu0 0.0
    %2013 = vmatprep.subr.mxu0 0.0
    %2014 = vmatpush1.msra.mxu0 0.0
    %2015 = vmatprep.subr.mxu0 0.0
    %2016 = vmatpush1.msra.mxu0 0.0
    %2017 = vmatprep.subr.mxu0 0.0
    %2018 = vmatpush1.msra.mxu0 0.0
    %2019 = vmatprep.subr.mxu0 0.0
    %2020 = vmatpush1.msra.mxu0 0.0
    %2021 = vmatprep.subr.mxu0 0.0
    %2022 = vmatpush1.msra.mxu0 0.0
    %2023 = vmatprep.subr.mxu0 0.0
    %2024 = vmatpush1.msra.mxu0 0.0
    %2025 = vmatprep.subr.mxu0 0.0
    %2026 = vmatpush1.msra.mxu0 0.0
    %2027 = vmatprep.subr.mxu0 0.0
    %2028 = vmatpush1.msra.mxu0 0.0
    %2029 = vmatprep.subr.mxu0 0.0
    %2030 = vmatpush1.msra.mxu0 0.0
    %2031 = vmatprep.subr.mxu0 0.0
    %2032 = vmatpush1.msra.mxu0 0.0
    %2033 = vmatprep.subr.mxu0 0.0
    %2034 = vmatpush1.msra.mxu0 0.0
    %2035 = vmatprep.mubr.f32.mxu0 0.0
    %2036 = vmatmul.mubr.f32.gmra.mrb[0].mxu0 %v1898
    %v2037 = vpop.f32.mrb[0].mxu0
    %v2038 = vadd.f32 0.0, %v2037
    %v2039 = vpop.f32.mrb[0].mxu0
    %v2040 = vadd.f32 0.0, %v2039
    %2041 = vdwg.mxu0
    %v2042 = vlaneseq
    %v2043 = vshrl.u32 %v2042, 7
    %v2044 = vsub.s32 0, %v2043
    %v2045 = vrot.slane %v1967, %v2044
    %v2046 = vlaneseq
    %v2047 = vshrl.u32 %v2046, 7
    %v2048 = vsub.s32 0, %v2047
    %v2049 = vrot.slane %v1969, %v2048
    %v2050 = vlaneseq
    %v2051 = vshrl.u32 %v2050, 7
    %v2052 = vsub.s32 0, %v2051
    %v2053 = vrot.slane %v2038, %v2052
    %v2054 = vlaneseq
    %v2055 = vshrl.u32 %v2054, 7
    %v2056 = vsub.s32 0, %v2055
    %v2057 = vrot.slane %v2040, %v2056
    %v2058 = vmul.f32 %v1737, %v2045
    %v2059 = vmul.f32 %v1738, %v2049
    %v2060 = vmul.f32 %v1739, %v2053
    %v2061 = vmul.f32 %v1740, %v2057
    %v2062 = vld [vmem:[#allocation10] sm:$0xf]
    %v2064 = vlaneseq
    %v2065 = vshrl.u32 %v2064, 7
    %v2066 = vsub.s32 0, %v2065
    %v2067 = vrot.slane %v2062, %v2066
    %v2068 = vlaneseq
    %v2069 = vshrl.u32 %v2068, 7
    %v2070 = vsub.s32 1, %v2069
    %v2071 = vrot.slane %v2062, %v2070
    %v2072 = vlaneseq
    %v2073 = vshrl.u32 %v2072, 7
    %v2074 = vsub.s32 2, %v2073
    %v2075 = vrot.slane %v2062, %v2074
    %v2076 = vlaneseq
    %v2077 = vshrl.u32 %v2076, 7
    %v2078 = vsub.s32 3, %v2077
    %v2079 = vrot.slane %v2062, %v2078
    %v2084 = vadd.f32 %v2058, %v2067
    %v2085 = vadd.f32 %v2059, %v2071
    %v2086 = vadd.f32 %v2060, %v2075
    %v2087 = vadd.f32 %v2061, %v2079
    %v2088 = vmax.f32 %v2084, 0.0
    %v2089 = vmax.f32 %v2085, 0.0
    %v2090 = vmax.f32 %v2086, 0.0
    %v2091 = vmax.f32 %v2087, 0.0
    %v2092 = vld [vmem:[#allocation11] sm:$0xff]
    %v2093 = vld [vmem:[#allocation11 + $0x8] sm:$0xff]
    %v2094 = vld [vmem:[#allocation11 + $0x10] sm:$0xff]
    %v2095 = vld [vmem:[#allocation11 + $0x18] sm:$0xff]
    %v2096 = vld [vmem:[#allocation11 + $0x20] sm:$0xff]
    %v2097 = vld [vmem:[#allocation11 + $0x28] sm:$0xff]
    %v2098 = vld [vmem:[#allocation11 + $0x30] sm:$0xff]
    %v2099 = vld [vmem:[#allocation11 + $0x38] sm:$0xff]
    %v2100 = vld [vmem:[#allocation11 + $0x40] sm:$0xff]
    %v2101 = vld [vmem:[#allocation11 + $0x48] sm:$0xff]
    %v2102 = vld [vmem:[#allocation11 + $0x50] sm:$0xff]
    %v2103 = vld [vmem:[#allocation11 + $0x58] sm:$0xff]
    %v2104 = vld [vmem:[#allocation11 + $0x60] sm:$0xff]
    %v2105 = vld [vmem:[#allocation11 + $0x68] sm:$0xff]
    %v2106 = vld [vmem:[#allocation11 + $0x70] sm:$0xff]
    %v2107 = vld [vmem:[#allocation11 + $0x78] sm:$0xff]
    %v2108 = vld [vmem:[#allocation11 + $0x80] sm:$0xff]
    %v2109 = vld [vmem:[#allocation11 + $0x88] sm:$0xff]
    %v2110 = vld [vmem:[#allocation11 + $0x90] sm:$0xff]
    %v2111 = vld [vmem:[#allocation11 + $0x98] sm:$0xff]
    %v2112 = vld [vmem:[#allocation11 + $0xa0] sm:$0xff]
    %v2113 = vld [vmem:[#allocation11 + $0xa8] sm:$0xff]
    %v2114 = vld [vmem:[#allocation11 + $0xb0] sm:$0xff]
    %v2115 = vld [vmem:[#allocation11 + $0xb8] sm:$0xff]
    %v2116 = vld [vmem:[#allocation11 + $0xc0] sm:$0xff]
    %v2117 = vld [vmem:[#allocation11 + $0xc8] sm:$0xff]
    %v2118 = vld [vmem:[#allocation11 + $0xd0] sm:$0xff]
    %v2119 = vld [vmem:[#allocation11 + $0xd8] sm:$0xff]
    %v2120 = vld [vmem:[#allocation11 + $0xe0] sm:$0xff]
    %v2121 = vld [vmem:[#allocation11 + $0xe8] sm:$0xff]
    %v2122 = vld [vmem:[#allocation11 + $0xf0] sm:$0xff]
    %v2123 = vld [vmem:[#allocation11 + $0xf8] sm:$0xff]
    %v2124 = vld [vmem:[#allocation11 + $0x100] sm:$0xff]
    %v2125 = vld [vmem:[#allocation11 + $0x108] sm:$0xff]
    %v2126 = vld [vmem:[#allocation11 + $0x110] sm:$0xff]
    %v2127 = vld [vmem:[#allocation11 + $0x118] sm:$0xff]
    %v2128 = vld [vmem:[#allocation11 + $0x120] sm:$0xff]
    %v2129 = vld [vmem:[#allocation11 + $0x128] sm:$0xff]
    %v2130 = vld [vmem:[#allocation11 + $0x130] sm:$0xff]
    %v2131 = vld [vmem:[#allocation11 + $0x138] sm:$0xff]
    %v2132 = vld [vmem:[#allocation11 + $0x140] sm:$0xff]
    %v2133 = vld [vmem:[#allocation11 + $0x148] sm:$0xff]
    %v2134 = vld [vmem:[#allocation11 + $0x150] sm:$0xff]
    %v2135 = vld [vmem:[#allocation11 + $0x158] sm:$0xff]
    %v2136 = vld [vmem:[#allocation11 + $0x160] sm:$0xff]
    %v2137 = vld [vmem:[#allocation11 + $0x168] sm:$0xff]
    %v2138 = vld [vmem:[#allocation11 + $0x170] sm:$0xff]
    %v2139 = vld [vmem:[#allocation11 + $0x178] sm:$0xff]
    %v2140 = vld [vmem:[#allocation11 + $0x180] sm:$0xff]
    %v2141 = vld [vmem:[#allocation11 + $0x188] sm:$0xff]
    %v2142 = vld [vmem:[#allocation11 + $0x190] sm:$0xff]
    %v2143 = vld [vmem:[#allocation11 + $0x198] sm:$0xff]
    %v2144 = vld [vmem:[#allocation11 + $0x1a0] sm:$0xff]
    %v2145 = vld [vmem:[#allocation11 + $0x1a8] sm:$0xff]
    %v2146 = vld [vmem:[#allocation11 + $0x1b0] sm:$0xff]
    %v2147 = vld [vmem:[#allocation11 + $0x1b8] sm:$0xff]
    %v2148 = vld [vmem:[#allocation11 + $0x1c0] sm:$0xff]
    %v2149 = vld [vmem:[#allocation11 + $0x1c8] sm:$0xff]
    %v2150 = vld [vmem:[#allocation11 + $0x1d0] sm:$0xff]
    %v2151 = vld [vmem:[#allocation11 + $0x1d8] sm:$0xff]
    %v2152 = vld [vmem:[#allocation11 + $0x1e0] sm:$0xff]
    %v2153 = vld [vmem:[#allocation11 + $0x1e8] sm:$0xff]
    %v2154 = vld [vmem:[#allocation11 + $0x1f0] sm:$0xff]
    %v2155 = vld [vmem:[#allocation11 + $0x1f8] sm:$0xff]
    %v2156 = vld [vmem:[#allocation11 + $0x200] sm:$0xff]
    %v2157 = vld [vmem:[#allocation11 + $0x208] sm:$0xff]
    %v2158 = vld [vmem:[#allocation11 + $0x210] sm:$0xff]
    %v2159 = vld [vmem:[#allocation11 + $0x218] sm:$0xff]
    %v2160 = vld [vmem:[#allocation11 + $0x220] sm:$0xff]
    %v2161 = vld [vmem:[#allocation11 + $0x228] sm:$0xff]
    %v2162 = vld [vmem:[#allocation11 + $0x230] sm:$0xff]
    %v2163 = vld [vmem:[#allocation11 + $0x238] sm:$0xff]
    %v2164 = vld [vmem:[#allocation11 + $0x240] sm:$0xff]
    %v2165 = vld [vmem:[#allocation11 + $0x248] sm:$0xff]
    %v2166 = vld [vmem:[#allocation11 + $0x250] sm:$0xff]
    %v2167 = vld [vmem:[#allocation11 + $0x258] sm:$0xff]
    %v2168 = vld [vmem:[#allocation11 + $0x260] sm:$0xff]
    %v2169 = vld [vmem:[#allocation11 + $0x268] sm:$0xff]
    %v2170 = vld [vmem:[#allocation11 + $0x270] sm:$0xff]
    %v2171 = vld [vmem:[#allocation11 + $0x278] sm:$0xff]
    %v2172 = vld [vmem:[#allocation11 + $0x280] sm:$0xff]
    %v2173 = vld [vmem:[#allocation11 + $0x288] sm:$0xff]
    %v2174 = vld [vmem:[#allocation11 + $0x290] sm:$0xff]
    %v2175 = vld [vmem:[#allocation11 + $0x298] sm:$0xff]
    %v2176 = vld [vmem:[#allocation11 + $0x2a0] sm:$0xff]
    %v2177 = vld [vmem:[#allocation11 + $0x2a8] sm:$0xff]
    %v2178 = vld [vmem:[#allocation11 + $0x2b0] sm:$0xff]
    %v2179 = vld [vmem:[#allocation11 + $0x2b8] sm:$0xff]
    %v2180 = vld [vmem:[#allocation11 + $0x2c0] sm:$0xff]
    %v2181 = vld [vmem:[#allocation11 + $0x2c8] sm:$0xff]
    %v2182 = vld [vmem:[#allocation11 + $0x2d0] sm:$0xff]
    %v2183 = vld [vmem:[#allocation11 + $0x2d8] sm:$0xff]
    %v2184 = vld [vmem:[#allocation11 + $0x2e0] sm:$0xff]
    %v2185 = vld [vmem:[#allocation11 + $0x2e8] sm:$0xff]
    %v2186 = vld [vmem:[#allocation11 + $0x2f0] sm:$0xff]
    %v2187 = vld [vmem:[#allocation11 + $0x2f8] sm:$0xff]
    %v2188 = vld [vmem:[#allocation11 + $0x300] sm:$0xff]
    %v2189 = vld [vmem:[#allocation11 + $0x308] sm:$0xff]
    %v2190 = vld [vmem:[#allocation11 + $0x310] sm:$0xff]
    %v2191 = vld [vmem:[#allocation11 + $0x318] sm:$0xff]
    %v2192 = vld [vmem:[#allocation11 + $0x320] sm:$0xff]
    %v2193 = vld [vmem:[#allocation11 + $0x328] sm:$0xff]
    %v2194 = vld [vmem:[#allocation11 + $0x330] sm:$0xff]
    %v2195 = vld [vmem:[#allocation11 + $0x338] sm:$0xff]
    %v2196 = vld [vmem:[#allocation11 + $0x340] sm:$0xff]
    %v2197 = vld [vmem:[#allocation11 + $0x348] sm:$0xff]
    %v2198 = vld [vmem:[#allocation11 + $0x350] sm:$0xff]
    %v2199 = vld [vmem:[#allocation11 + $0x358] sm:$0xff]
    %v2200 = vld [vmem:[#allocation11 + $0x360] sm:$0xff]
    %v2201 = vld [vmem:[#allocation11 + $0x368] sm:$0xff]
    %v2202 = vld [vmem:[#allocation11 + $0x370] sm:$0xff]
    %v2203 = vld [vmem:[#allocation11 + $0x378] sm:$0xff]
    %v2204 = vld [vmem:[#allocation11 + $0x380] sm:$0xff]
    %v2205 = vld [vmem:[#allocation11 + $0x388] sm:$0xff]
    %v2206 = vld [vmem:[#allocation11 + $0x390] sm:$0xff]
    %v2207 = vld [vmem:[#allocation11 + $0x398] sm:$0xff]
    %v2208 = vld [vmem:[#allocation11 + $0x3a0] sm:$0xff]
    %v2209 = vld [vmem:[#allocation11 + $0x3a8] sm:$0xff]
    %v2210 = vld [vmem:[#allocation11 + $0x3b0] sm:$0xff]
    %v2211 = vld [vmem:[#allocation11 + $0x3b8] sm:$0xff]
    %v2212 = vld [vmem:[#allocation11 + $0x3c0] sm:$0xff]
    %v2213 = vld [vmem:[#allocation11 + $0x3c8] sm:$0xff]
    %v2214 = vld [vmem:[#allocation11 + $0x3d0] sm:$0xff]
    %v2215 = vld [vmem:[#allocation11 + $0x3d8] sm:$0xff]
    %v2216 = vld [vmem:[#allocation11 + $0x3e0] sm:$0xff]
    %v2217 = vld [vmem:[#allocation11 + $0x3e8] sm:$0xff]
    %v2218 = vld [vmem:[#allocation11 + $0x3f0] sm:$0xff]
    %v2219 = vld [vmem:[#allocation11 + $0x3f8] sm:$0xff]
    %2220 = vmatprep.subr.mxu0 %v2093
    %2221 = vmatpush1.msra.mxu0 %v2092
    %2222 = vmatprep.subr.mxu0 %v2095
    %2223 = vmatpush1.msra.mxu0 %v2094
    %2224 = vmatprep.subr.mxu0 %v2097
    %2225 = vmatpush1.msra.mxu0 %v2096
    %2226 = vmatprep.subr.mxu0 %v2099
    %2227 = vmatpush1.msra.mxu0 %v2098
    %2228 = vmatprep.subr.mxu0 %v2101
    %2229 = vmatpush1.msra.mxu0 %v2100
    %2230 = vmatprep.subr.mxu0 %v2103
    %2231 = vmatpush1.msra.mxu0 %v2102
    %2232 = vmatprep.subr.mxu0 %v2105
    %2233 = vmatpush1.msra.mxu0 %v2104
    %2234 = vmatprep.subr.mxu0 %v2107
    %2235 = vmatpush1.msra.mxu0 %v2106
    %2236 = vmatprep.subr.mxu0 %v2109
    %2237 = vmatpush1.msra.mxu0 %v2108
    %2238 = vmatprep.subr.mxu0 %v2111
    %2239 = vmatpush1.msra.mxu0 %v2110
    %2240 = vmatprep.subr.mxu0 %v2113
    %2241 = vmatpush1.msra.mxu0 %v2112
    %2242 = vmatprep.subr.mxu0 %v2115
    %2243 = vmatpush1.msra.mxu0 %v2114
    %2244 = vmatprep.subr.mxu0 %v2117
    %2245 = vmatpush1.msra.mxu0 %v2116
    %2246 = vmatprep.subr.mxu0 %v2119
    %2247 = vmatpush1.msra.mxu0 %v2118
    %2248 = vmatprep.subr.mxu0 %v2121
    %2249 = vmatpush1.msra.mxu0 %v2120
    %2250 = vmatprep.subr.mxu0 %v2123
    %2251 = vmatpush1.msra.mxu0 %v2122
    %2252 = vmatprep.subr.mxu0 %v2125
    %2253 = vmatpush1.msra.mxu0 %v2124
    %2254 = vmatprep.subr.mxu0 %v2127
    %2255 = vmatpush1.msra.mxu0 %v2126
    %2256 = vmatprep.subr.mxu0 %v2129
    %2257 = vmatpush1.msra.mxu0 %v2128
    %2258 = vmatprep.subr.mxu0 %v2131
    %2259 = vmatpush1.msra.mxu0 %v2130
    %2260 = vmatprep.subr.mxu0 %v2133
    %2261 = vmatpush1.msra.mxu0 %v2132
    %2262 = vmatprep.subr.mxu0 %v2135
    %2263 = vmatpush1.msra.mxu0 %v2134
    %2264 = vmatprep.subr.mxu0 %v2137
    %2265 = vmatpush1.msra.mxu0 %v2136
    %2266 = vmatprep.subr.mxu0 %v2139
    %2267 = vmatpush1.msra.mxu0 %v2138
    %2268 = vmatprep.subr.mxu0 %v2141
    %2269 = vmatpush1.msra.mxu0 %v2140
    %2270 = vmatprep.subr.mxu0 %v2143
    %2271 = vmatpush1.msra.mxu0 %v2142
    %2272 = vmatprep.subr.mxu0 %v2145
    %2273 = vmatpush1.msra.mxu0 %v2144
    %2274 = vmatprep.subr.mxu0 %v2147
    %2275 = vmatpush1.msra.mxu0 %v2146
    %2276 = vmatprep.subr.mxu0 %v2149
    %2277 = vmatpush1.msra.mxu0 %v2148
    %2278 = vmatprep.subr.mxu0 %v2151
    %2279 = vmatpush1.msra.mxu0 %v2150
    %2280 = vmatprep.subr.mxu0 %v2153
    %2281 = vmatpush1.msra.mxu0 %v2152
    %2282 = vmatprep.subr.mxu0 %v2155
    %2283 = vmatpush1.msra.mxu0 %v2154
    %2284 = vmatprep.mubr.f32.mxu0 %v2089
    %2285 = vmatmul.mubr.f32.gmra.mrb[0].mxu0 %v2088
    %v2286 = vpop.f32.mrb[0].mxu0
    %v2287 = vadd.f32 0.0, %v2286
    %v2288 = vpop.f32.mrb[0].mxu0
    %v2289 = vadd.f32 0.0, %v2288
    %2290 = vdwg.mxu0
    %2291 = vmatprep.subr.mxu0 %v2157
    %2292 = vmatpush1.msra.mxu0 %v2156
    %2293 = vmatprep.subr.mxu0 %v2159
    %2294 = vmatpush1.msra.mxu0 %v2158
    %2295 = vmatprep.subr.mxu0 %v2161
    %2296 = vmatpush1.msra.mxu0 %v2160
    %2297 = vmatprep.subr.mxu0 %v2163
    %2298 = vmatpush1.msra.mxu0 %v2162
    %2299 = vmatprep.subr.mxu0 %v2165
    %2300 = vmatpush1.msra.mxu0 %v2164
    %2301 = vmatprep.subr.mxu0 %v2167
    %2302 = vmatpush1.msra.mxu0 %v2166
    %2303 = vmatprep.subr.mxu0 %v2169
    %2304 = vmatpush1.msra.mxu0 %v2168
    %2305 = vmatprep.subr.mxu0 %v2171
    %2306 = vmatpush1.msra.mxu0 %v2170
    %2307 = vmatprep.subr.mxu0 %v2173
    %2308 = vmatpush1.msra.mxu0 %v2172
    %2309 = vmatprep.subr.mxu0 %v2175
    %2310 = vmatpush1.msra.mxu0 %v2174
    %2311 = vmatprep.subr.mxu0 %v2177
    %2312 = vmatpush1.msra.mxu0 %v2176
    %2313 = vmatprep.subr.mxu0 %v2179
    %2314 = vmatpush1.msra.mxu0 %v2178
    %2315 = vmatprep.subr.mxu0 %v2181
    %2316 = vmatpush1.msra.mxu0 %v2180
    %2317 = vmatprep.subr.mxu0 %v2183
    %2318 = vmatpush1.msra.mxu0 %v2182
    %2319 = vmatprep.subr.mxu0 %v2185
    %2320 = vmatpush1.msra.mxu0 %v2184
    %2321 = vmatprep.subr.mxu0 %v2187
    %2322 = vmatpush1.msra.mxu0 %v2186
    %2323 = vmatprep.subr.mxu0 %v2189
    %2324 = vmatpush1.msra.mxu0 %v2188
    %2325 = vmatprep.subr.mxu0 %v2191
    %2326 = vmatpush1.msra.mxu0 %v2190
    %2327 = vmatprep.subr.mxu0 %v2193
    %2328 = vmatpush1.msra.mxu0 %v2192
    %2329 = vmatprep.subr.mxu0 %v2195
    %2330 = vmatpush1.msra.mxu0 %v2194
    %2331 = vmatprep.subr.mxu0 %v2197
    %2332 = vmatpush1.msra.mxu0 %v2196
    %2333 = vmatprep.subr.mxu0 %v2199
    %2334 = vmatpush1.msra.mxu0 %v2198
    %2335 = vmatprep.subr.mxu0 %v2201
    %2336 = vmatpush1.msra.mxu0 %v2200
    %2337 = vmatprep.subr.mxu0 %v2203
    %2338 = vmatpush1.msra.mxu0 %v2202
    %2339 = vmatprep.subr.mxu0 %v2205
    %2340 = vmatpush1.msra.mxu0 %v2204
    %2341 = vmatprep.subr.mxu0 %v2207
    %2342 = vmatpush1.msra.mxu0 %v2206
    %2343 = vmatprep.subr.mxu0 %v2209
    %2344 = vmatpush1.msra.mxu0 %v2208
    %2345 = vmatprep.subr.mxu0 %v2211
    %2346 = vmatpush1.msra.mxu0 %v2210
    %2347 = vmatprep.subr.mxu0 %v2213
    %2348 = vmatpush1.msra.mxu0 %v2212
    %2349 = vmatprep.subr.mxu0 %v2215
    %2350 = vmatpush1.msra.mxu0 %v2214
    %2351 = vmatprep.subr.mxu0 %v2217
    %2352 = vmatpush1.msra.mxu0 %v2216
    %2353 = vmatprep.subr.mxu0 %v2219
    %2354 = vmatpush1.msra.mxu0 %v2218
    %2355 = vmatprep.mubr.f32.mxu0 %v2091
    %2356 = vmatmul.mubr.f32.gmra.mrb[0].mxu0 %v2090
    %v2357 = vpop.f32.mrb[0].mxu0
    %v2358 = vadd.f32 %v2287, %v2357
    %v2359 = vpop.f32.mrb[0].mxu0
    %v2360 = vadd.f32 %v2289, %v2359
    %2361 = vdwg.mxu0
    %v2362 = vld [vmem:[%s7] sm:$0xff]
    %v2363 = vld [vmem:[%s7 + $0x8] sm:$0xff]
    %v2364 = vld [vmem:[%s7 + $0x10] sm:$0xff]
    %v2365 = vld [vmem:[%s7 + $0x18] sm:$0xff]
    %v2366 = vld [vmem:[%s7 + $0x20] sm:$0xff]
    %v2367 = vld [vmem:[%s7 + $0x28] sm:$0xff]
    %v2368 = vld [vmem:[%s7 + $0x30] sm:$0xff]
    %v2369 = vld [vmem:[%s7 + $0x38] sm:$0xff]
    %v2370 = vld [vmem:[%s7 + $0x40] sm:$0xff]
    %v2371 = vld [vmem:[%s7 + $0x48] sm:$0xff]
    %v2372 = vld [vmem:[%s7 + $0x50] sm:$0xff]
    %v2373 = vld [vmem:[%s7 + $0x58] sm:$0xff]
    %v2374 = vld [vmem:[%s7 + $0x60] sm:$0xff]
    %v2375 = vld [vmem:[%s7 + $0x68] sm:$0xff]
    %v2376 = vld [vmem:[%s7 + $0x70] sm:$0xff]
    %v2377 = vld [vmem:[%s7 + $0x78] sm:$0xff]
    %v2378 = vld [vmem:[%s7 + $0x80] sm:$0xff]
    %v2379 = vld [vmem:[%s7 + $0x88] sm:$0xff]
    %v2380 = vld [vmem:[%s7 + $0x90] sm:$0xff]
    %v2381 = vld [vmem:[%s7 + $0x98] sm:$0xff]
    %v2382 = vld [vmem:[%s7 + $0xa0] sm:$0xff]
    %v2383 = vld [vmem:[%s7 + $0xa8] sm:$0xff]
    %v2384 = vld [vmem:[%s7 + $0xb0] sm:$0xff]
    %v2385 = vld [vmem:[%s7 + $0xb8] sm:$0xff]
    %v2386 = vld [vmem:[%s7 + $0xc0] sm:$0xff]
    %v2387 = vld [vmem:[%s7 + $0xc8] sm:$0xff]
    %v2388 = vld [vmem:[%s7 + $0xd0] sm:$0xff]
    %v2389 = vld [vmem:[%s7 + $0xd8] sm:$0xff]
    %v2390 = vld [vmem:[%s7 + $0xe0] sm:$0xff]
    %v2391 = vld [vmem:[%s7 + $0xe8] sm:$0xff]
    %v2392 = vld [vmem:[%s7 + $0xf0] sm:$0xff]
    %v2393 = vld [vmem:[%s7 + $0xf8] sm:$0xff]
    %2394 = vmatprep.subr.mxu0 0.0
    %2395 = vmatpush1.msra.mxu0 %v2362
    %2396 = vmatprep.subr.mxu0 0.0
    %2397 = vmatpush1.msra.mxu0 %v2363
    %2398 = vmatprep.subr.mxu0 0.0
    %2399 = vmatpush1.msra.mxu0 %v2364
    %2400 = vmatprep.subr.mxu0 0.0
    %2401 = vmatpush1.msra.mxu0 %v2365
    %2402 = vmatprep.subr.mxu0 0.0
    %2403 = vmatpush1.msra.mxu0 %v2366
    %2404 = vmatprep.subr.mxu0 0.0
    %2405 = vmatpush1.msra.mxu0 %v2367
    %2406 = vmatprep.subr.mxu0 0.0
    %2407 = vmatpush1.msra.mxu0 %v2368
    %2408 = vmatprep.subr.mxu0 0.0
    %2409 = vmatpush1.msra.mxu0 %v2369
    %2410 = vmatprep.subr.mxu0 0.0
    %2411 = vmatpush1.msra.mxu0 %v2370
    %2412 = vmatprep.subr.mxu0 0.0
    %2413 = vmatpush1.msra.mxu0 %v2371
    %2414 = vmatprep.subr.mxu0 0.0
    %2415 = vmatpush1.msra.mxu0 %v2372
    %2416 = vmatprep.subr.mxu0 0.0
    %2417 = vmatpush1.msra.mxu0 %v2373
    %2418 = vmatprep.subr.mxu0 0.0
    %2419 = vmatpush1.msra.mxu0 %v2374
    %2420 = vmatprep.subr.mxu0 0.0
    %2421 = vmatpush1.msra.mxu0 %v2375
    %2422 = vmatprep.subr.mxu0 0.0
    %2423 = vmatpush1.msra.mxu0 %v2376
    %2424 = vmatprep.subr.mxu0 0.0
    %2425 = vmatpush1.msra.mxu0 %v2377
    %2426 = vmatprep.subr.mxu0 0.0
    %2427 = vmatpush1.msra.mxu0 %v2378
    %2428 = vmatprep.subr.mxu0 0.0
    %2429 = vmatpush1.msra.mxu0 %v2379
    %2430 = vmatprep.subr.mxu0 0.0
    %2431 = vmatpush1.msra.mxu0 %v2380
    %2432 = vmatprep.subr.mxu0 0.0
    %2433 = vmatpush1.msra.mxu0 %v2381
    %2434 = vmatprep.subr.mxu0 0.0
    %2435 = vmatpush1.msra.mxu0 %v2382
    %2436 = vmatprep.subr.mxu0 0.0
    %2437 = vmatpush1.msra.mxu0 %v2383
    %2438 = vmatprep.subr.mxu0 0.0
    %2439 = vmatpush1.msra.mxu0 %v2384
    %2440 = vmatprep.subr.mxu0 0.0
    %2441 = vmatpush1.msra.mxu0 %v2385
    %2442 = vmatprep.subr.mxu0 0.0
    %2443 = vmatpush1.msra.mxu0 %v2386
    %2444 = vmatprep.subr.mxu0 0.0
    %2445 = vmatpush1.msra.mxu0 %v2387
    %2446 = vmatprep.subr.mxu0 0.0
    %2447 = vmatpush1.msra.mxu0 %v2388
    %2448 = vmatprep.subr.mxu0 0.0
    %2449 = vmatpush1.msra.mxu0 %v2389
    %2450 = vmatprep.subr.mxu0 0.0
    %2451 = vmatpush1.msra.mxu0 %v2390
    %2452 = vmatprep.subr.mxu0 0.0
    %2453 = vmatpush1.msra.mxu0 %v2391
    %2454 = vmatprep.subr.mxu0 0.0
    %2455 = vmatpush1.msra.mxu0 %v2392
    %2456 = vmatprep.subr.mxu0 0.0
    %2457 = vmatpush1.msra.mxu0 %v2393
    %2458 = vmatprep.mubr.f32.mxu0 %v2360
    %2459 = vmatmul.mubr.f32.gmra.mrb[0].mxu0 %v2358
    %v2460 = vpop.f32.mrb[0].mxu0
    %v2461 = vadd.f32 0.0, %v2460
    %v2462 = vpop.f32.mrb[0].mxu0
    %2463 = vdwg.mxu0
    %vm2464 = vcmask 123904
    %v2465 = vsel %vm2464, %v2461, 0.0
    %v2466 = vrot.slane %v2465, 4
    %v2467 = vadd.f32 %v2465, %v2466
    %v2468 = vrot.slane %v2467, 2
    %v2469 = vadd.f32 %v2467, %v2468
    %v2470 = vrot.slane %v2469, 1
    %v2471 = vadd.f32 %v2469, %v2470
    %v2472 = vmul.f32 %v2471, 0.5
    %v2473 = vld [vmem:[#allocation13] sm:$0xff]
    %v2474 = vld [vmem:[#allocation13 + $0x8] sm:$0xff]
    %v2475 = vld [vmem:[#allocation13 + $0x10] sm:$0xff]
    %v2476 = vld [vmem:[#allocation13 + $0x18] sm:$0xff]
    %vm2477 = vcmask 130048
    %v2479 = vsel %vm2477, %v2472, 0
    %2481 = vmatprep.subr.mxu0 %v2474
    %2482 = vmatpush1.msra.mxu0 %v2473
    %2483 = vmatprep.subr.mxu0 %v2476
    %2484 = vmatpush1.msra.mxu0 %v2475
    %2485 = vmatprep.subr.mxu0 0.0
    %2486 = vmatpush1.msra.mxu0 0.0
    %2487 = vmatprep.subr.mxu0 0.0
    %2488 = vmatpush1.msra.mxu0 0.0
    %2489 = vmatprep.subr.mxu0 0.0
    %2490 = vmatpush1.msra.mxu0 0.0
    %2491 = vmatprep.subr.mxu0 0.0
    %2492 = vmatpush1.msra.mxu0 0.0
    %2493 = vmatprep.subr.mxu0 0.0
    %2494 = vmatpush1.msra.mxu0 0.0
    %2495 = vmatprep.subr.mxu0 0.0
    %2496 = vmatpush1.msra.mxu0 0.0
    %2497 = vmatprep.subr.mxu0 0.0
    %2498 = vmatpush1.msra.mxu0 0.0
    %2499 = vmatprep.subr.mxu0 0.0
    %2500 = vmatpush1.msra.mxu0 0.0
    %2501 = vmatprep.subr.mxu0 0.0
    %2502 = vmatpush1.msra.mxu0 0.0
    %2503 = vmatprep.subr.mxu0 0.0
    %2504 = vmatpush1.msra.mxu0 0.0
    %2505 = vmatprep.subr.mxu0 0.0
    %2506 = vmatpush1.msra.mxu0 0.0
    %2507 = vmatprep.subr.mxu0 0.0
    %2508 = vmatpush1.msra.mxu0 0.0
    %2509 = vmatprep.subr.mxu0 0.0
    %2510 = vmatpush1.msra.mxu0 0.0
    %2511 = vmatprep.subr.mxu0 0.0
    %2512 = vmatpush1.msra.mxu0 0.0
    %2513 = vmatprep.subr.mxu0 0.0
    %2514 = vmatpush1.msra.mxu0 0.0
    %2515 = vmatprep.subr.mxu0 0.0
    %2516 = vmatpush1.msra.mxu0 0.0
    %2517 = vmatprep.subr.mxu0 0.0
    %2518 = vmatpush1.msra.mxu0 0.0
    %2519 = vmatprep.subr.mxu0 0.0
    %2520 = vmatpush1.msra.mxu0 0.0
    %2521 = vmatprep.subr.mxu0 0.0
    %2522 = vmatpush1.msra.mxu0 0.0
    %2523 = vmatprep.subr.mxu0 0.0
    %2524 = vmatpush1.msra.mxu0 0.0
    %2525 = vmatprep.subr.mxu0 0.0
    %2526 = vmatpush1.msra.mxu0 0.0
    %2527 = vmatprep.subr.mxu0 0.0
    %2528 = vmatpush1.msra.mxu0 0.0
    %2529 = vmatprep.subr.mxu0 0.0
    %2530 = vmatpush1.msra.mxu0 0.0
    %2531 = vmatprep.subr.mxu0 0.0
    %2532 = vmatpush1.msra.mxu0 0.0
    %2533 = vmatprep.subr.mxu0 0.0
    %2534 = vmatpush1.msra.mxu0 0.0
    %2535 = vmatprep.subr.mxu0 0.0
    %2536 = vmatpush1.msra.mxu0 0.0
    %2537 = vmatprep.subr.mxu0 0.0
    %2538 = vmatpush1.msra.mxu0 0.0
    %2539 = vmatprep.subr.mxu0 0.0
    %2540 = vmatpush1.msra.mxu0 0.0
    %2541 = vmatprep.subr.mxu0 0.0
    %2542 = vmatpush1.msra.mxu0 0.0
    %2543 = vmatprep.subr.mxu0 0.0
    %2544 = vmatpush1.msra.mxu0 0.0
    %2545 = vmatprep.mubr.f32.mxu0 0.0
    %2546 = vmatmul.mubr.f32.gmra.mrb[0].mxu0 %v2479
    %v2547 = vpop.f32.mrb[0].mxu0
    %v2548 = vadd.f32 0.0, %v2547
    %v2549 = vpop.f32.mrb[0].mxu0
    %v2550 = vadd.f32 0.0, %v2549
    %2551 = vdwg.mxu0
    %v2552 = vlaneseq
    %v2553 = vshrl.u32 %v2552, 7
    %v2554 = vsub.s32 0, %v2553
    %v2555 = vrot.slane %v2548, %v2554
    %v2556 = vlaneseq
    %v2557 = vshrl.u32 %v2556, 7
    %v2558 = vsub.s32 0, %v2557
    %v2559 = vrot.slane %v2550, %v2558
    %v2560 = vsub.f32 %v2358, %v2555
    %v2561 = vsub.f32 %v2360, %v2559
    %v2562 = vmul.f32 %v2560, %v2560
    %v2563 = vmul.f32 %v2561, %v2561
    %2564 = vmatprep.subr.mxu0 0.0
    %2565 = vmatpush1.msra.mxu0 %v2362
    %2566 = vmatprep.subr.mxu0 0.0
    %2567 = vmatpush1.msra.mxu0 %v2363
    %2568 = vmatprep.subr.mxu0 0.0
    %2569 = vmatpush1.msra.mxu0 %v2364
    %2570 = vmatprep.subr.mxu0 0.0
    %2571 = vmatpush1.msra.mxu0 %v2365
    %2572 = vmatprep.subr.mxu0 0.0
    %2573 = vmatpush1.msra.mxu0 %v2366
    %2574 = vmatprep.subr.mxu0 0.0
    %2575 = vmatpush1.msra.mxu0 %v2367
    %2576 = vmatprep.subr.mxu0 0.0
    %2577 = vmatpush1.msra.mxu0 %v2368
    %2578 = vmatprep.subr.mxu0 0.0
    %2579 = vmatpush1.msra.mxu0 %v2369
    %2580 = vmatprep.subr.mxu0 0.0
    %2581 = vmatpush1.msra.mxu0 %v2370
    %2582 = vmatprep.subr.mxu0 0.0
    %2583 = vmatpush1.msra.mxu0 %v2371
    %2584 = vmatprep.subr.mxu0 0.0
    %2585 = vmatpush1.msra.mxu0 %v2372
    %2586 = vmatprep.subr.mxu0 0.0
    %2587 = vmatpush1.msra.mxu0 %v2373
    %2588 = vmatprep.subr.mxu0 0.0
    %2589 = vmatpush1.msra.mxu0 %v2374
    %2590 = vmatprep.subr.mxu0 0.0
    %2591 = vmatpush1.msra.mxu0 %v2375
    %2592 = vmatprep.subr.mxu0 0.0
    %2593 = vmatpush1.msra.mxu0 %v2376
    %2594 = vmatprep.subr.mxu0 0.0
    %2595 = vmatpush1.msra.mxu0 %v2377
    %2596 = vmatprep.subr.mxu0 0.0
    %2597 = vmatpush1.msra.mxu0 %v2378
    %2598 = vmatprep.subr.mxu0 0.0
    %2599 = vmatpush1.msra.mxu0 %v2379
    %2600 = vmatprep.subr.mxu0 0.0
    %2601 = vmatpush1.msra.mxu0 %v2380
    %2602 = vmatprep.subr.mxu0 0.0
    %2603 = vmatpush1.msra.mxu0 %v2381
    %2604 = vmatprep.subr.mxu0 0.0
    %2605 = vmatpush1.msra.mxu0 %v2382
    %2606 = vmatprep.subr.mxu0 0.0
    %2607 = vmatpush1.msra.mxu0 %v2383
    %2608 = vmatprep.subr.mxu0 0.0
    %2609 = vmatpush1.msra.mxu0 %v2384
    %2610 = vmatprep.subr.mxu0 0.0
    %2611 = vmatpush1.msra.mxu0 %v2385
    %2612 = vmatprep.subr.mxu0 0.0
    %2613 = vmatpush1.msra.mxu0 %v2386
    %2614 = vmatprep.subr.mxu0 0.0
    %2615 = vmatpush1.msra.mxu0 %v2387
    %2616 = vmatprep.subr.mxu0 0.0
    %2617 = vmatpush1.msra.mxu0 %v2388
    %2618 = vmatprep.subr.mxu0 0.0
    %2619 = vmatpush1.msra.mxu0 %v2389
    %2620 = vmatprep.subr.mxu0 0.0
    %2621 = vmatpush1.msra.mxu0 %v2390
    %2622 = vmatprep.subr.mxu0 0.0
    %2623 = vmatpush1.msra.mxu0 %v2391
    %2624 = vmatprep.subr.mxu0 0.0
    %2625 = vmatpush1.msra.mxu0 %v2392
    %2626 = vmatprep.subr.mxu0 0.0
    %2627 = vmatpush1.msra.mxu0 %v2393
    %2628 = vmatprep.mubr.f32.mxu0 %v2563
    %2629 = vmatmul.mubr.f32.gmra.mrb[0].mxu0 %v2562
    %v2630 = vpop.f32.mrb[0].mxu0
    %v2631 = vadd.f32 0.0, %v2630
    %v2632 = vpop.f32.mrb[0].mxu0
    %2633 = vdwg.mxu0
    %v2634 = vsel %vm2464, %v2631, 0.0
    %v2635 = vrot.slane %v2634, 4
    %v2636 = vadd.f32 %v2634, %v2635
    %v2637 = vrot.slane %v2636, 2
    %v2638 = vadd.f32 %v2636, %v2637
    %v2639 = vrot.slane %v2638, 1
    %v2640 = vadd.f32 %v2638, %v2639
    %v2641 = vmul.f32 %v2640, 0.5
    %v2642 = vld [vmem:[#allocation14] sm:$0x1]
    %v2643 = vadd.f32 %v2641, 1e-05
    %v2644 = vrsqrt.pop %v2643
    %v2645 = vmul.f32 %v2642, %v2644
    %v2647 = vsel %vm2477, %v2645, 0
    %2649 = vmatprep.subr.mxu0 %v2474
    %2650 = vmatpush1.msra.mxu0 %v2473
    %2651 = vmatprep.subr.mxu0 %v2476
    %2652 = vmatpush1.msra.mxu0 %v2475
    %2653 = vmatprep.subr.mxu0 0.0
    %2654 = vmatpush1.msra.mxu0 0.0
    %2655 = vmatprep.subr.mxu0 0.0
    %2656 = vmatpush1.msra.mxu0 0.0
    %2657 = vmatprep.subr.mxu0 0.0
    %2658 = vmatpush1.msra.mxu0 0.0
    %2659 = vmatprep.subr.mxu0 0.0
    %2660 = vmatpush1.msra.mxu0 0.0
    %2661 = vmatprep.subr.mxu0 0.0
    %2662 = vmatpush1.msra.mxu0 0.0
    %2663 = vmatprep.subr.mxu0 0.0
    %2664 = vmatpush1.msra.mxu0 0.0
    %2665 = vmatprep.subr.mxu0 0.0
    %2666 = vmatpush1.msra.mxu0 0.0
    %2667 = vmatprep.subr.mxu0 0.0
    %2668 = vmatpush1.msra.mxu0 0.0
    %2669 = vmatprep.subr.mxu0 0.0
    %2670 = vmatpush1.msra.mxu0 0.0
    %2671 = vmatprep.subr.mxu0 0.0
    %2672 = vmatpush1.msra.mxu0 0.0
    %2673 = vmatprep.subr.mxu0 0.0
    %2674 = vmatpush1.msra.mxu0 0.0
    %2675 = vmatprep.subr.mxu0 0.0
    %2676 = vmatpush1.msra.mxu0 0.0
    %2677 = vmatprep.subr.mxu0 0.0
    %2678 = vmatpush1.msra.mxu0 0.0
    %2679 = vmatprep.subr.mxu0 0.0
    %2680 = vmatpush1.msra.mxu0 0.0
    %2681 = vmatprep.subr.mxu0 0.0
    %2682 = vmatpush1.msra.mxu0 0.0
    %2683 = vmatprep.subr.mxu0 0.0
    %2684 = vmatpush1.msra.mxu0 0.0
    %2685 = vmatprep.subr.mxu0 0.0
    %2686 = vmatpush1.msra.mxu0 0.0
    %2687 = vmatprep.subr.mxu0 0.0
    %2688 = vmatpush1.msra.mxu0 0.0
    %2689 = vmatprep.subr.mxu0 0.0
    %2690 = vmatpush1.msra.mxu0 0.0
    %2691 = vmatprep.subr.mxu0 0.0
    %2692 = vmatpush1.msra.mxu0 0.0
    %2693 = vmatprep.subr.mxu0 0.0
    %2694 = vmatpush1.msra.mxu0 0.0
    %2695 = vmatprep.subr.mxu0 0.0
    %2696 = vmatpush1.msra.mxu0 0.0
    %2697 = vmatprep.subr.mxu0 0.0
    %2698 = vmatpush1.msra.mxu0 0.0
    %2699 = vmatprep.subr.mxu0 0.0
    %2700 = vmatpush1.msra.mxu0 0.0
    %2701 = vmatprep.subr.mxu0 0.0
    %2702 = vmatpush1.msra.mxu0 0.0
    %2703 = vmatprep.subr.mxu0 0.0
    %2704 = vmatpush1.msra.mxu0 0.0
    %2705 = vmatprep.subr.mxu0 0.0
    %2706 = vmatpush1.msra.mxu0 0.0
    %2707 = vmatprep.subr.mxu0 0.0
    %2708 = vmatpush1.msra.mxu0 0.0
    %2709 = vmatprep.subr.mxu0 0.0
    %2710 = vmatpush1.msra.mxu0 0.0
    %2711 = vmatprep.subr.mxu0 0.0
    %2712 = vmatpush1.msra.mxu0 0.0
    %2713 = vmatprep.mubr.f32.mxu0 0.0
    %2714 = vmatmul.mubr.f32.gmra.mrb[0].mxu0 %v2647
    %v2715 = vpop.f32.mrb[0].mxu0
    %v2716 = vadd.f32 0.0, %v2715
    %v2717 = vpop.f32.mrb[0].mxu0
    %v2718 = vadd.f32 0.0, %v2717
    %2719 = vdwg.mxu0
    %v2720 = vlaneseq
    %v2721 = vshrl.u32 %v2720, 7
    %v2722 = vsub.s32 0, %v2721
    %v2723 = vrot.slane %v2716, %v2722
    %v2724 = vlaneseq
    %v2725 = vshrl.u32 %v2724, 7
    %v2726 = vsub.s32 0, %v2725
    %v2727 = vrot.slane %v2718, %v2726
    %v2728 = vmul.f32 %v2560, %v2723
    %v2729 = vmul.f32 %v2561, %v2727
    %v2730 = vld [vmem:[#allocation16] sm:$0x3]
    %v2732 = vlaneseq
    %v2733 = vshrl.u32 %v2732, 7
    %v2734 = vsub.s32 0, %v2733
    %v2735 = vrot.slane %v2730, %v2734
    %v2736 = vlaneseq
    %v2737 = vshrl.u32 %v2736, 7
    %v2738 = vsub.s32 1, %v2737
    %v2739 = vrot.slane %v2730, %v2738
    %v2742 = vadd.f32 %v2728, %v2735
    %v2743 = vadd.f32 %v2729, %v2739
    %v2744 = vmax.f32 %v2742, 0.0
    %v2745 = vmax.f32 %v2743, 0.0
    %v2746 = vld [vmem:[#allocation17] sm:$0xff]
    %v2747 = vld [vmem:[#allocation17 + $0x8] sm:$0xff]
    %v2748 = vld [vmem:[#allocation17 + $0x10] sm:$0xff]
    %v2749 = vld [vmem:[#allocation17 + $0x18] sm:$0xff]
    %v2750 = vld [vmem:[#allocation17 + $0x20] sm:$0xff]
    %v2751 = vld [vmem:[#allocation17 + $0x28] sm:$0xff]
    %v2752 = vld [vmem:[#allocation17 + $0x30] sm:$0xff]
    %v2753 = vld [vmem:[#allocation17 + $0x38] sm:$0xff]
    %v2754 = vld [vmem:[#allocation17 + $0x40] sm:$0xff]
    %v2755 = vld [vmem:[#allocation17 + $0x48] sm:$0xff]
    %v2756 = vld [vmem:[#allocation17 + $0x50] sm:$0xff]
    %v2757 = vld [vmem:[#allocation17 + $0x58] sm:$0xff]
    %v2758 = vld [vmem:[#allocation17 + $0x60] sm:$0xff]
    %v2759 = vld [vmem:[#allocation17 + $0x68] sm:$0xff]
    %v2760 = vld [vmem:[#allocation17 + $0x70] sm:$0xff]
    %v2761 = vld [vmem:[#allocation17 + $0x78] sm:$0xff]
    %v2762 = vld [vmem:[#allocation17 + $0x80] sm:$0xff]
    %v2763 = vld [vmem:[#allocation17 + $0x88] sm:$0xff]
    %v2764 = vld [vmem:[#allocation17 + $0x90] sm:$0xff]
    %v2765 = vld [vmem:[#allocation17 + $0x98] sm:$0xff]
    %v2766 = vld [vmem:[#allocation17 + $0xa0] sm:$0xff]
    %v2767 = vld [vmem:[#allocation17 + $0xa8] sm:$0xff]
    %v2768 = vld [vmem:[#allocation17 + $0xb0] sm:$0xff]
    %v2769 = vld [vmem:[#allocation17 + $0xb8] sm:$0xff]
    %v2770 = vld [vmem:[#allocation17 + $0xc0] sm:$0xff]
    %v2771 = vld [vmem:[#allocation17 + $0xc8] sm:$0xff]
    %v2772 = vld [vmem:[#allocation17 + $0xd0] sm:$0xff]
    %v2773 = vld [vmem:[#allocation17 + $0xd8] sm:$0xff]
    %v2774 = vld [vmem:[#allocation17 + $0xe0] sm:$0xff]
    %v2775 = vld [vmem:[#allocation17 + $0xe8] sm:$0xff]
    %v2776 = vld [vmem:[#allocation17 + $0xf0] sm:$0xff]
    %v2777 = vld [vmem:[#allocation17 + $0xf8] sm:$0xff]
    %2778 = vmatprep.subr.mxu0 0.0
    %2779 = vmatpush1.msra.mxu0 %v2746
    %2780 = vmatprep.subr.mxu0 0.0
    %2781 = vmatpush1.msra.mxu0 %v2747
    %2782 = vmatprep.subr.mxu0 0.0
    %2783 = vmatpush1.msra.mxu0 %v2748
    %2784 = vmatprep.subr.mxu0 0.0
    %2785 = vmatpush1.msra.mxu0 %v2749
    %2786 = vmatprep.subr.mxu0 0.0
    %2787 = vmatpush1.msra.mxu0 %v2750
    %2788 = vmatprep.subr.mxu0 0.0
    %2789 = vmatpush1.msra.mxu0 %v2751
    %2790 = vmatprep.subr.mxu0 0.0
    %2791 = vmatpush1.msra.mxu0 %v2752
    %2792 = vmatprep.subr.mxu0 0.0
    %2793 = vmatpush1.msra.mxu0 %v2753
    %2794 = vmatprep.subr.mxu0 0.0
    %2795 = vmatpush1.msra.mxu0 %v2754
    %2796 = vmatprep.subr.mxu0 0.0
    %2797 = vmatpush1.msra.mxu0 %v2755
    %2798 = vmatprep.subr.mxu0 0.0
    %2799 = vmatpush1.msra.mxu0 %v2756
    %2800 = vmatprep.subr.mxu0 0.0
    %2801 = vmatpush1.msra.mxu0 %v2757
    %2802 = vmatprep.subr.mxu0 0.0
    %2803 = vmatpush1.msra.mxu0 %v2758
    %2804 = vmatprep.subr.mxu0 0.0
    %2805 = vmatpush1.msra.mxu0 %v2759
    %2806 = vmatprep.subr.mxu0 0.0
    %2807 = vmatpush1.msra.mxu0 %v2760
    %2808 = vmatprep.subr.mxu0 0.0
    %2809 = vmatpush1.msra.mxu0 %v2761
    %2810 = vmatprep.subr.mxu0 0.0
    %2811 = vmatpush1.msra.mxu0 %v2762
    %2812 = vmatprep.subr.mxu0 0.0
    %2813 = vmatpush1.msra.mxu0 %v2763
    %2814 = vmatprep.subr.mxu0 0.0
    %2815 = vmatpush1.msra.mxu0 %v2764
    %2816 = vmatprep.subr.mxu0 0.0
    %2817 = vmatpush1.msra.mxu0 %v2765
    %2818 = vmatprep.subr.mxu0 0.0
    %2819 = vmatpush1.msra.mxu0 %v2766
    %2820 = vmatprep.subr.mxu0 0.0
    %2821 = vmatpush1.msra.mxu0 %v2767
    %2822 = vmatprep.subr.mxu0 0.0
    %2823 = vmatpush1.msra.mxu0 %v2768
    %2824 = vmatprep.subr.mxu0 0.0
    %2825 = vmatpush1.msra.mxu0 %v2769
    %2826 = vmatprep.subr.mxu0 0.0
    %2827 = vmatpush1.msra.mxu0 %v2770
    %2828 = vmatprep.subr.mxu0 0.0
    %2829 = vmatpush1.msra.mxu0 %v2771
    %2830 = vmatprep.subr.mxu0 0.0
    %2831 = vmatpush1.msra.mxu0 %v2772
    %2832 = vmatprep.subr.mxu0 0.0
    %2833 = vmatpush1.msra.mxu0 %v2773
    %2834 = vmatprep.subr.mxu0 0.0
    %2835 = vmatpush1.msra.mxu0 %v2774
    %2836 = vmatprep.subr.mxu0 0.0
    %2837 = vmatpush1.msra.mxu0 %v2775
    %2838 = vmatprep.subr.mxu0 0.0
    %2839 = vmatpush1.msra.mxu0 %v2776
    %2840 = vmatprep.subr.mxu0 0.0
    %2841 = vmatpush1.msra.mxu0 %v2777
    %2842 = vmatprep.mubr.f32.mxu0 %v2745
    %2843 = vmatmul.mubr.f32.gmra.mrb[0].mxu0 %v2744
    %v2844 = vpop.f32.mrb[0].mxu0
    %v2845 = vadd.f32 0.0, %v2844
    %v2846 = vpop.f32.mrb[0].mxu0
    %2847 = vdwg.mxu0
    %v2848 = vld [vmem:[%s12] sm:$0xff]
    %v2849 = vld [vmem:[%s12 + $0x8] sm:$0xff]
    %v2850 = vld [vmem:[%s12 + $0x10] sm:$0xff]
    %v2851 = vld [vmem:[%s12 + $0x18] sm:$0xff]
    %v2852 = vld [vmem:[%s12 + $0x20] sm:$0xff]
    %v2853 = vld [vmem:[%s12 + $0x28] sm:$0xff]
    %v2854 = vld [vmem:[%s12 + $0x30] sm:$0xff]
    %v2855 = vld [vmem:[%s12 + $0x38] sm:$0xff]
    %v2856 = vld [vmem:[%s12 + $0x40] sm:$0xff]
    %v2857 = vld [vmem:[%s12 + $0x48] sm:$0xff]
    %v2858 = vld [vmem:[%s12 + $0x50] sm:$0xff]
    %v2859 = vld [vmem:[%s12 + $0x58] sm:$0xff]
    %v2860 = vld [vmem:[%s12 + $0x60] sm:$0xff]
    %v2861 = vld [vmem:[%s12 + $0x68] sm:$0xff]
    %v2862 = vld [vmem:[%s12 + $0x70] sm:$0xff]
    %v2863 = vld [vmem:[%s12 + $0x78] sm:$0xff]
    %2864 = vmatprep.subr.mxu0 0.0
    %2865 = vmatpush1.msra.mxu0 %v2848
    %2866 = vmatprep.subr.mxu0 0.0
    %2867 = vmatpush1.msra.mxu0 %v2849
    %2868 = vmatprep.subr.mxu0 0.0
    %2869 = vmatpush1.msra.mxu0 %v2850
    %2870 = vmatprep.subr.mxu0 0.0
    %2871 = vmatpush1.msra.mxu0 %v2851
    %2872 = vmatprep.subr.mxu0 0.0
    %2873 = vmatpush1.msra.mxu0 %v2852
    %2874 = vmatprep.subr.mxu0 0.0
    %2875 = vmatpush1.msra.mxu0 %v2853
    %2876 = vmatprep.subr.mxu0 0.0
    %2877 = vmatpush1.msra.mxu0 %v2854
    %2878 = vmatprep.subr.mxu0 0.0
    %2879 = vmatpush1.msra.mxu0 %v2855
    %2880 = vmatprep.subr.mxu0 0.0
    %2881 = vmatpush1.msra.mxu0 %v2856
    %2882 = vmatprep.subr.mxu0 0.0
    %2883 = vmatpush1.msra.mxu0 %v2857
    %2884 = vmatprep.subr.mxu0 0.0
    %2885 = vmatpush1.msra.mxu0 %v2858
    %2886 = vmatprep.subr.mxu0 0.0
    %2887 = vmatpush1.msra.mxu0 %v2859
    %2888 = vmatprep.subr.mxu0 0.0
    %2889 = vmatpush1.msra.mxu0 %v2860
    %2890 = vmatprep.subr.mxu0 0.0
    %2891 = vmatpush1.msra.mxu0 %v2861
    %2892 = vmatprep.subr.mxu0 0.0
    %2893 = vmatpush1.msra.mxu0 %v2862
    %2894 = vmatprep.subr.mxu0 0.0
    %2895 = vmatpush1.msra.mxu0 %v2863
    %2896 = vmatprep.subr.mxu0 0.0
    %2897 = vmatpush1.msra.mxu0 0.0
    %2898 = vmatprep.subr.mxu0 0.0
    %2899 = vmatpush1.msra.mxu0 0.0
    %2900 = vmatprep.subr.mxu0 0.0
    %2901 = vmatpush1.msra.mxu0 0.0
    %2902 = vmatprep.subr.mxu0 0.0
    %2903 = vmatpush1.msra.mxu0 0.0
    %2904 = vmatprep.subr.mxu0 0.0
    %2905 = vmatpush1.msra.mxu0 0.0
    %2906 = vmatprep.subr.mxu0 0.0
    %2907 = vmatpush1.msra.mxu0 0.0
    %2908 = vmatprep.subr.mxu0 0.0
    %2909 = vmatpush1.msra.mxu0 0.0
    %2910 = vmatprep.subr.mxu0 0.0
    %2911 = vmatpush1.msra.mxu0 0.0
    %2912 = vmatprep.subr.mxu0 0.0
    %2913 = vmatpush1.msra.mxu0 0.0
    %2914 = vmatprep.subr.mxu0 0.0
    %2915 = vmatpush1.msra.mxu0 0.0
    %2916 = vmatprep.subr.mxu0 0.0
    %2917 = vmatpush1.msra.mxu0 0.0
    %2918 = vmatprep.subr.mxu0 0.0
    %2919 = vmatpush1.msra.mxu0 0.0
    %2920 = vmatprep.subr.mxu0 0.0
    %2921 = vmatpush1.msra.mxu0 0.0
    %2922 = vmatprep.subr.mxu0 0.0
    %2923 = vmatpush1.msra.mxu0 0.0
    %2924 = vmatprep.subr.mxu0 0.0
    %2925 = vmatpush1.msra.mxu0 0.0
    %2926 = vmatprep.subr.mxu0 0.0
    %2927 = vmatpush1.msra.mxu0 0.0
    %2928 = vmatprep.mubr.f32.mxu0 0.0
    %2929 = vmatmul.mubr.f32.gmra.mrb[0].mxu0 %v2845
    %v2930 = vpop.f32.mrb[0].mxu0
    %v2931 = vadd.f32 0.0, %v2930
    %v2932 = vpop.f32.mrb[0].mxu0
    %2933 = vdwg.mxu0
    %vm2934 = vcmask 254976
    %v2935 = vsel %vm2934, %v2931, 0.0
    %v2936 = vrot.slane %v2935, 4
    %v2937 = vadd.f32 %v2935, %v2936
    %v2938 = vrot.slane %v2937, 2
    %v2939 = vadd.f32 %v2937, %v2938
    %v2940 = vrot.slane %v2939, 1
    %v2941 = vadd.f32 %v2939, %v2940
    %v2942 = vmul.f32 %v2941, 0.5
    %v2943 = vld [vmem:[#allocation19] sm:$0xff]
    %v2944 = vld [vmem:[#allocation19 + $0x8] sm:$0xff]
    %v2945 = vld [vmem:[#allocation19 + $0x10] sm:$0xff]
    %v2946 = vld [vmem:[#allocation19 + $0x18] sm:$0xff]
    %vm2947 = vcmask 261120
    %v2949 = vsel %vm2947, %v2942, 0
    %2951 = vmatprep.subr.mxu0 0.0
    %2952 = vmatpush1.msra.mxu0 %v2943
    %2953 = vmatprep.subr.mxu0 0.0
    %2954 = vmatpush1.msra.mxu0 %v2944
    %2955 = vmatprep.subr.mxu0 0.0
    %2956 = vmatpush1.msra.mxu0 %v2945
    %2957 = vmatprep.subr.mxu0 0.0
    %2958 = vmatpush1.msra.mxu0 %v2946
    %2959 = vmatprep.subr.mxu0 0.0
    %2960 = vmatpush1.msra.mxu0 0.0
    %2961 = vmatprep.subr.mxu0 0.0
    %2962 = vmatpush1.msra.mxu0 0.0
    %2963 = vmatprep.subr.mxu0 0.0
    %2964 = vmatpush1.msra.mxu0 0.0
    %2965 = vmatprep.subr.mxu0 0.0
    %2966 = vmatpush1.msra.mxu0 0.0
    %2967 = vmatprep.subr.mxu0 0.0
    %2968 = vmatpush1.msra.mxu0 0.0
    %2969 = vmatprep.subr.mxu0 0.0
    %2970 = vmatpush1.msra.mxu0 0.0
    %2971 = vmatprep.subr.mxu0 0.0
    %2972 = vmatpush1.msra.mxu0 0.0
    %2973 = vmatprep.subr.mxu0 0.0
    %2974 = vmatpush1.msra.mxu0 0.0
    %2975 = vmatprep.subr.mxu0 0.0
    %2976 = vmatpush1.msra.mxu0 0.0
    %2977 = vmatprep.subr.mxu0 0.0
    %2978 = vmatpush1.msra.mxu0 0.0
    %2979 = vmatprep.subr.mxu0 0.0
    %2980 = vmatpush1.msra.mxu0 0.0
    %2981 = vmatprep.subr.mxu0 0.0
    %2982 = vmatpush1.msra.mxu0 0.0
    %2983 = vmatprep.subr.mxu0 0.0
    %2984 = vmatpush1.msra.mxu0 0.0
    %2985 = vmatprep.subr.mxu0 0.0
    %2986 = vmatpush1.msra.mxu0 0.0
    %2987 = vmatprep.subr.mxu0 0.0
    %2988 = vmatpush1.msra.mxu0 0.0
    %2989 = vmatprep.subr.mxu0 0.0
    %2990 = vmatpush1.msra.mxu0 0.0
    %2991 = vmatprep.subr.mxu0 0.0
    %2992 = vmatpush1.msra.mxu0 0.0
    %2993 = vmatprep.subr.mxu0 0.0
    %2994 = vmatpush1.msra.mxu0 0.0
    %2995 = vmatprep.subr.mxu0 0.0
    %2996 = vmatpush1.msra.mxu0 0.0
    %2997 = vmatprep.subr.mxu0 0.0
    %2998 = vmatpush1.msra.mxu0 0.0
    %2999 = vmatprep.subr.mxu0 0.0
    %3000 = vmatpush1.msra.mxu0 0.0
    %3001 = vmatprep.subr.mxu0 0.0
    %3002 = vmatpush1.msra.mxu0 0.0
    %3003 = vmatprep.subr.mxu0 0.0
    %3004 = vmatpush1.msra.mxu0 0.0
    %3005 = vmatprep.subr.mxu0 0.0
    %3006 = vmatpush1.msra.mxu0 0.0
    %3007 = vmatprep.subr.mxu0 0.0
    %3008 = vmatpush1.msra.mxu0 0.0
    %3009 = vmatprep.subr.mxu0 0.0
    %3010 = vmatpush1.msra.mxu0 0.0
    %3011 = vmatprep.subr.mxu0 0.0
    %3012 = vmatpush1.msra.mxu0 0.0
    %3013 = vmatprep.subr.mxu0 0.0
    %3014 = vmatpush1.msra.mxu0 0.0
    %3015 = vmatprep.mubr.f32.mxu0 0.0
    %3016 = vmatmul.mubr.f32.gmra.mrb[0].mxu0 %v2949
    %v3017 = vpop.f32.mrb[0].mxu0
    %v3018 = vadd.f32 0.0, %v3017
    %v3019 = vpop.f32.mrb[0].mxu0
    %3020 = vdwg.mxu0
    %v3021 = vlaneseq
    %v3022 = vshrl.u32 %v3021, 7
    %v3023 = vsub.s32 0, %v3022
    %v3024 = vrot.slane %v3018, %v3023
    %v3025 = vsub.f32 %v2845, %v3024
    %v3026 = vmul.f32 %v3025, %v3025
    %3027 = vmatprep.subr.mxu0 0.0
    %3028 = vmatpush1.msra.mxu0 %v2848
    %3029 = vmatprep.subr.mxu0 0.0
    %3030 = vmatpush1.msra.mxu0 %v2849
    %3031 = vmatprep.subr.mxu0 0.0
    %3032 = vmatpush1.msra.mxu0 %v2850
    %3033 = vmatprep.subr.mxu0 0.0
    %3034 = vmatpush1.msra.mxu0 %v2851
    %3035 = vmatprep.subr.mxu0 0.0
    %3036 = vmatpush1.msra.mxu0 %v2852
    %3037 = vmatprep.subr.mxu0 0.0
    %3038 = vmatpush1.msra.mxu0 %v2853
    %3039 = vmatprep.subr.mxu0 0.0
    %3040 = vmatpush1.msra.mxu0 %v2854
    %3041 = vmatprep.subr.mxu0 0.0
    %3042 = vmatpush1.msra.mxu0 %v2855
    %3043 = vmatprep.subr.mxu0 0.0
    %3044 = vmatpush1.msra.mxu0 %v2856
    %3045 = vmatprep.subr.mxu0 0.0
    %3046 = vmatpush1.msra.mxu0 %v2857
    %3047 = vmatprep.subr.mxu0 0.0
    %3048 = vmatpush1.msra.mxu0 %v2858
    %3049 = vmatprep.subr.mxu0 0.0
    %3050 = vmatpush1.msra.mxu0 %v2859
    %3051 = vmatprep.subr.mxu0 0.0
    %3052 = vmatpush1.msra.mxu0 %v2860
    %3053 = vmatprep.subr.mxu0 0.0
    %3054 = vmatpush1.msra.mxu0 %v2861
    %3055 = vmatprep.subr.mxu0 0.0
    %3056 = vmatpush1.msra.mxu0 %v2862
    %3057 = vmatprep.subr.mxu0 0.0
    %3058 = vmatpush1.msra.mxu0 %v2863
    %3059 = vmatprep.subr.mxu0 0.0
    %3060 = vmatpush1.msra.mxu0 0.0
    %3061 = vmatprep.subr.mxu0 0.0
    %3062 = vmatpush1.msra.mxu0 0.0
    %3063 = vmatprep.subr.mxu0 0.0
    %3064 = vmatpush1.msra.mxu0 0.0
    %3065 = vmatprep.subr.mxu0 0.0
    %3066 = vmatpush1.msra.mxu0 0.0
    %3067 = vmatprep.subr.mxu0 0.0
    %3068 = vmatpush1.msra.mxu0 0.0
    %3069 = vmatprep.subr.mxu0 0.0
    %3070 = vmatpush1.msra.mxu0 0.0
    %3071 = vmatprep.subr.mxu0 0.0
    %3072 = vmatpush1.msra.mxu0 0.0
    %3073 = vmatprep.subr.mxu0 0.0
    %3074 = vmatpush1.msra.mxu0 0.0
    %3075 = vmatprep.subr.mxu0 0.0
    %3076 = vmatpush1.msra.mxu0 0.0
    %3077 = vmatprep.subr.mxu0 0.0
    %3078 = vmatpush1.msra.mxu0 0.0
    %3079 = vmatprep.subr.mxu0 0.0
    %3080 = vmatpush1.msra.mxu0 0.0
    %3081 = vmatprep.subr.mxu0 0.0
    %3082 = vmatpush1.msra.mxu0 0.0
    %3083 = vmatprep.subr.mxu0 0.0
    %3084 = vmatpush1.msra.mxu0 0.0
    %3085 = vmatprep.subr.mxu0 0.0
    %3086 = vmatpush1.msra.mxu0 0.0
    %3087 = vmatprep.subr.mxu0 0.0
    %3088 = vmatpush1.msra.mxu0 0.0
    %3089 = vmatprep.subr.mxu0 0.0
    %3090 = vmatpush1.msra.mxu0 0.0
    %3091 = vmatprep.mubr.f32.mxu0 0.0
    %3092 = vmatmul.mubr.f32.gmra.mrb[0].mxu0 %v3026
    %v3093 = vpop.f32.mrb[0].mxu0
    %v3094 = vadd.f32 0.0, %v3093
    %v3095 = vpop.f32.mrb[0].mxu0
    %3096 = vdwg.mxu0
    %v3097 = vsel %vm2934, %v3094, 0.0
    %v3098 = vrot.slane %v3097, 4
    %v3099 = vadd.f32 %v3097, %v3098
    %v3100 = vrot.slane %v3099, 2
    %v3101 = vadd.f32 %v3099, %v3100
    %v3102 = vrot.slane %v3101, 1
    %v3103 = vadd.f32 %v3101, %v3102
    %v3104 = vmul.f32 %v3103, 0.5
    %v3105 = vld [vmem:[#allocation20] sm:$0x1]
    %v3106 = vadd.f32 %v3104, 1e-05
    %v3107 = vrsqrt.pop %v3106
    %v3108 = vmul.f32 %v3105, %v3107
    %v3110 = vsel %vm2947, %v3108, 0
    %3112 = vmatprep.subr.mxu0 0.0
    %3113 = vmatpush1.msra.mxu0 %v2943
    %3114 = vmatprep.subr.mxu0 0.0
    %3115 = vmatpush1.msra.mxu0 %v2944
    %3116 = vmatprep.subr.mxu0 0.0
    %3117 = vmatpush1.msra.mxu0 %v2945
    %3118 = vmatprep.subr.mxu0 0.0
    %3119 = vmatpush1.msra.mxu0 %v2946
    %3120 = vmatprep.subr.mxu0 0.0
    %3121 = vmatpush1.msra.mxu0 0.0
    %3122 = vmatprep.subr.mxu0 0.0
    %3123 = vmatpush1.msra.mxu0 0.0
    %3124 = vmatprep.subr.mxu0 0.0
    %3125 = vmatpush1.msra.mxu0 0.0
    %3126 = vmatprep.subr.mxu0 0.0
    %3127 = vmatpush1.msra.mxu0 0.0
    %3128 = vmatprep.subr.mxu0 0.0
    %3129 = vmatpush1.msra.mxu0 0.0
    %3130 = vmatprep.subr.mxu0 0.0
    %3131 = vmatpush1.msra.mxu0 0.0
    %3132 = vmatprep.subr.mxu0 0.0
    %3133 = vmatpush1.msra.mxu0 0.0
    %3134 = vmatprep.subr.mxu0 0.0
    %3135 = vmatpush1.msra.mxu0 0.0
    %3136 = vmatprep.subr.mxu0 0.0
    %3137 = vmatpush1.msra.mxu0 0.0
    %3138 = vmatprep.subr.mxu0 0.0
    %3139 = vmatpush1.msra.mxu0 0.0
    %3140 = vmatprep.subr.mxu0 0.0
    %3141 = vmatpush1.msra.mxu0 0.0
    %3142 = vmatprep.subr.mxu0 0.0
    %3143 = vmatpush1.msra.mxu0 0.0
    %3144 = vmatprep.subr.mxu0 0.0
    %3145 = vmatpush1.msra.mxu0 0.0
    %3146 = vmatprep.subr.mxu0 0.0
    %3147 = vmatpush1.msra.mxu0 0.0
    %3148 = vmatprep.subr.mxu0 0.0
    %3149 = vmatpush1.msra.mxu0 0.0
    %3150 = vmatprep.subr.mxu0 0.0
    %3151 = vmatpush1.msra.mxu0 0.0
    %3152 = vmatprep.subr.mxu0 0.0
    %3153 = vmatpush1.msra.mxu0 0.0
    %3154 = vmatprep.subr.mxu0 0.0
    %3155 = vmatpush1.msra.mxu0 0.0
    %3156 = vmatprep.subr.mxu0 0.0
    %3157 = vmatpush1.msra.mxu0 0.0
    %3158 = vmatprep.subr.mxu0 0.0
    %3159 = vmatpush1.msra.mxu0 0.0
    %3160 = vmatprep.subr.mxu0 0.0
    %3161 = vmatpush1.msra.mxu0 0.0
    %3162 = vmatprep.subr.mxu0 0.0
    %3163 = vmatpush1.msra.mxu0 0.0
    %3164 = vmatprep.subr.mxu0 0.0
    %3165 = vmatpush1.msra.mxu0 0.0
    %3166 = vmatprep.subr.mxu0 0.0
    %3167 = vmatpush1.msra.mxu0 0.0
    %3168 = vmatprep.subr.mxu0 0.0
    %3169 = vmatpush1.msra.mxu0 0.0
    %3170 = vmatprep.subr.mxu0 0.0
    %3171 = vmatpush1.msra.mxu0 0.0
    %3172 = vmatprep.subr.mxu0 0.0
    %3173 = vmatpush1.msra.mxu0 0.0
    %3174 = vmatprep.subr.mxu0 0.0
    %3175 = vmatpush1.msra.mxu0 0.0
    %3176 = vmatprep.mubr.f32.mxu0 0.0
    %3177 = vmatmul.mubr.f32.gmra.mrb[0].mxu0 %v3110
    %v3178 = vpop.f32.mrb[0].mxu0
    %v3179 = vadd.f32 0.0, %v3178
    %v3180 = vpop.f32.mrb[0].mxu0
    %3181 = vdwg.mxu0
    %v3182 = vlaneseq
    %v3183 = vshrl.u32 %v3182, 7
    %v3184 = vsub.s32 0, %v3183
    %v3185 = vrot.slane %v3179, %v3184
    %v3186 = vmul.f32 %v3025, %v3185
    %v3187 = vld [vmem:[#allocation22] sm:$0x1]
    %v3189 = vlaneseq
    %v3190 = vshrl.u32 %v3189, 7
    %v3191 = vsub.s32 0, %v3190
    %v3192 = vrot.slane %v3187, %v3191
    %v3194 = vadd.f32 %v3186, %v3192
    %v3195 = vmax.f32 %v3194, 0.0
    %v3196 = vld [vmem:[%s16] sm:$0xff]
    %v3197 = vld [vmem:[%s16 + $0x8] sm:$0xff]
    %v3198 = vld [vmem:[%s16 + $0x10] sm:$0xff]
    %v3199 = vld [vmem:[%s16 + $0x18] sm:$0xff]
    %v3200 = vld [vmem:[%s16 + $0x20] sm:$0xff]
    %v3201 = vld [vmem:[%s16 + $0x28] sm:$0xff]
    %v3202 = vld [vmem:[%s16 + $0x30] sm:$0xff]
    %v3203 = vld [vmem:[%s16 + $0x38] sm:$0xff]
    %v3204 = vld [vmem:[%s16 + $0x40] sm:$0xff]
    %v3205 = vld [vmem:[%s16 + $0x48] sm:$0xff]
    %v3206 = vld [vmem:[%s16 + $0x50] sm:$0xff]
    %v3207 = vld [vmem:[%s16 + $0x58] sm:$0xff]
    %v3208 = vld [vmem:[%s16 + $0x60] sm:$0xff]
    %v3209 = vld [vmem:[%s16 + $0x68] sm:$0xff]
    %v3210 = vld [vmem:[%s16 + $0x70] sm:$0xff]
    %v3211 = vld [vmem:[%s16 + $0x78] sm:$0xff]
    %v3212 = vld [vmem:[#allocation23] sm:$0x1]
    %v3214 = vlaneseq
    %v3215 = vshrl.u32 %v3214, 7
    %v3216 = vsub.s32 0, %v3215
    %v3217 = vrot.slane %v3212, %v3216
    %3219 = vmatprep.subr.mxu0 0.0
    %3220 = vmatpush1.msra.mxu0 %v3196
    %3221 = vmatprep.subr.mxu0 0.0
    %3222 = vmatpush1.msra.mxu0 %v3197
    %3223 = vmatprep.subr.mxu0 0.0
    %3224 = vmatpush1.msra.mxu0 %v3198
    %3225 = vmatprep.subr.mxu0 0.0
    %3226 = vmatpush1.msra.mxu0 %v3199
    %3227 = vmatprep.subr.mxu0 0.0
    %3228 = vmatpush1.msra.mxu0 %v3200
    %3229 = vmatprep.subr.mxu0 0.0
    %3230 = vmatpush1.msra.mxu0 %v3201
    %3231 = vmatprep.subr.mxu0 0.0
    %3232 = vmatpush1.msra.mxu0 %v3202
    %3233 = vmatprep.subr.mxu0 0.0
    %3234 = vmatpush1.msra.mxu0 %v3203
    %3235 = vmatprep.subr.mxu0 0.0
    %3236 = vmatpush1.msra.mxu0 %v3204
    %3237 = vmatprep.subr.mxu0 0.0
    %3238 = vmatpush1.msra.mxu0 %v3205
    %3239 = vmatprep.subr.mxu0 0.0
    %3240 = vmatpush1.msra.mxu0 %v3206
    %3241 = vmatprep.subr.mxu0 0.0
    %3242 = vmatpush1.msra.mxu0 %v3207
    %3243 = vmatprep.subr.mxu0 0.0
    %3244 = vmatpush1.msra.mxu0 %v3208
    %3245 = vmatprep.subr.mxu0 0.0
    %3246 = vmatpush1.msra.mxu0 %v3209
    %3247 = vmatprep.subr.mxu0 0.0
    %3248 = vmatpush1.msra.mxu0 %v3210
    %3249 = vmatprep.subr.mxu0 0.0
    %3250 = vmatpush1.msra.mxu0 %v3211
    %3251 = vmatprep.subr.mxu0 0.0
    %3252 = vmatpush1.msra.mxu0 0.0
    %3253 = vmatprep.subr.mxu0 0.0
    %3254 = vmatpush1.msra.mxu0 0.0
    %3255 = vmatprep.subr.mxu0 0.0
    %3256 = vmatpush1.msra.mxu0 0.0
    %3257 = vmatprep.subr.mxu0 0.0
    %3258 = vmatpush1.msra.mxu0 0.0
    %3259 = vmatprep.subr.mxu0 0.0
    %3260 = vmatpush1.msra.mxu0 0.0
    %3261 = vmatprep.subr.mxu0 0.0
    %3262 = vmatpush1.msra.mxu0 0.0
    %3263 = vmatprep.subr.mxu0 0.0
    %3264 = vmatpush1.msra.mxu0 0.0
    %3265 = vmatprep.subr.mxu0 0.0
    %3266 = vmatpush1.msra.mxu0 0.0
    %3267 = vmatprep.subr.mxu0 0.0
    %3268 = vmatpush1.msra.mxu0 0.0
    %3269 = vmatprep.subr.mxu0 0.0
    %3270 = vmatpush1.msra.mxu0 0.0
    %3271 = vmatprep.subr.mxu0 0.0
    %3272 = vmatpush1.msra.mxu0 0.0
    %3273 = vmatprep.subr.mxu0 0.0
    %3274 = vmatpush1.msra.mxu0 0.0
    %3275 = vmatprep.subr.mxu0 0.0
    %3276 = vmatpush1.msra.mxu0 0.0
    %3277 = vmatprep.subr.mxu0 0.0
    %3278 = vmatpush1.msra.mxu0 0.0
    %3279 = vmatprep.subr.mxu0 0.0
    %3280 = vmatpush1.msra.mxu0 0.0
    %3281 = vmatprep.subr.mxu0 0.0
    %3282 = vmatpush1.msra.mxu0 0.0
    %3283 = vmatprep.mubr.f32.mxu0 0.0
    %3284 = vmatmul.mubr.f32.gmra.mrb[0].mxu0 %v3195
    %v3285 = vpop.f32.mrb[0].mxu0
    %v3286 = vadd.f32 %v3217, %v3285
    %v3287 = vpop.f32.mrb[0].mxu0
    %3288 = vdwg.mxu0
    %3289 = vst.msk [vmem:[#allocation25] sm:$0x3] %vm2464, %v3286
    // Predicated region
    $region130: #{tpu_custom_call.1} parent=1 // pred_check
      _
    $region131: #{tpu_custom_call.1} parent=1 // pred_check_branch
      %3291 = sbr.rel (0) target = $region133
    $region132: #{tpu_custom_call.1} parent=1 // pred_region
      %s3293 = ssub.s32 32, 32
      %3294 = vsyncadd [#allocation4], %s3293
      %s3296 = sshll.u32 [#allocation25], 4
      %s3297 = int_to_ptr.vmem [resolvable:$true] %s3296
      %3299 = dma.vmem_to_hbm [thread:$0]  %s3297, 32, %s18, [#allocation4]
    $region133: #{tpu_custom_call.1} parent=1 // pred_fallthru
      _
    // Predicated region
    $region134: #{tpu_custom_call.1} parent=1 // pred_check
      _
    $region135: #{tpu_custom_call.1} parent=1 // pred_check_branch
      %3301 = sbr.rel (0) target = $region137
    $region136: #{tpu_custom_call.1} parent=1 // pred_region
      %3302 = dma.done [#allocation4], 32
    $region137: #{tpu_custom_call.1} parent=1 // pred_fallthru
      _
    %3303 = vsyncpa [#allocation3], 1
    %3304 = vsyncpa [#allocation6], 1
    %3305 = vsyncpa [#allocation9], 1
    %3306 = vsyncpa [#allocation12], 1
    %3307 = vsyncpa [#allocation15], 1
    %3308 = vsyncpa [#allocation18], 1
    %3309 = vsyncpa [#allocation21], 1
    %3310 = vsyncpa [#allocation24], 1
    %3311 = vsyncpa [#allocation4], 1

</llo_original>
